<compile_context>
chip_gen: v7x
topology: tpu7x:2x2x1
jax: 0.10.0
libtpu: 0.0.40
codegen_flags: <defaults>
</compile_context>

<pallas_src>
import functools

import jax
import jax.numpy as jnp
from jax.experimental import pallas as pl
from jax.experimental.pallas import tpu as pltpu


def _round_up(x, m):
    return ((x + m - 1) // m) * m


def _hw_config():
    """Per-generation MXU contraction target and VMEM budget."""
    kind = ""
    try:
        kind = jax.devices()[0].device_kind.lower()
    except Exception:
        pass
    try:
        cap = int(pltpu.get_tpu_info().vmem_capacity_bytes)
    except Exception:
        # Conservative default if the query fails and we can't identify the chip.
        cap = 128 * 1024 * 1024 if kind else 64 * 1024 * 1024
    if "v7" in kind or "7x" in kind:
        cap = min(cap, 64 * 1024 * 1024)        # v7x: 64 MiB VMEM per TensorCore
    shallow = any(t in kind for t in ("v2", "v3", "v4", "v5"))
    target_k = 128 if shallow else 256          # MXU contraction depth
    vmem_budget = min(cap * 3 // 4, 100 * 1024 * 1024)
    return target_k, int(vmem_budget)


def _pick_batch_tile(batch, per_row_bytes, fixed_bytes, vmem_budget):
    avail = vmem_budget * 7 // 10 - fixed_bytes
    tb = max(8, min(256, int(avail // max(per_row_bytes, 1))))
    tb = (tb // 8) * 8
    # Guarantee >= 2 grid steps so ("parallel",) can shard across v7x's 2 TensorCores.
    half = max(8, (_round_up(batch, 8) // 2) // 8 * 8)
    tb = max(8, min(tb, half))
    b_pad = _round_up(max(batch, 2 * tb), tb)
    return tb, b_pad


def discriminator_kernel(filter_sizes, num_filters, seq_len, g, num_groups, l_pad, emb_dim,
                         x_ref, wconv_ref, convb_ref,
                         hw_w1_ref, hw_b1_ref, hw_w2_ref, hw_b2_ref,
                         fc_w_ref, fc_b_ref,
                         feat_ref, score_ref, pred_ref, acc_ref):
    """Inputs:
         x_ref     : (TB, S_pad, E)            bf16 embedded (zero padded) tokens
         wconv_ref : (num_groups, g*E, NFp)    bf16 packed per-group conv weights
         convb_ref : (1, NFp)                  f32 packed conv bias (0 in pad cols)
         hw_*      : (NFp, NFp) / (1, NFp)     highway params (zero padded)
         fc_*      : (NFp, Cp) / (1, Cp)       output linear (pad classes get -1e30 bias)
       Outputs (all lane dense, stripped in the wrapper):
         feat_ref (TB, NFp), score_ref (TB, Cp), pred_ref (TB, Cp)
       Scratch:
         acc_ref  (TB*l_pad, NFp) f32 conv accumulator
    """
    tb = x_ref.shape[0]
    nf_pad = convb_ref.shape[-1]
    ge = g * emb_dim
    neg = jnp.float32(-1e30)

    # --- conv stage: per-group accumulating matmuls (K = g*E deep) -----------------
    # window_j[:, t, m*E:(m+1)*E] = x[:, j*g + m + t, :]; summed over groups this is
    # sum_k x[t+k] @ W_k for every position t.  On v7x the += accumulates in the MRB.
    for j in range(num_groups):
        parts = [x_ref[:, j * g + m: j * g + m + l_pad, :] for m in range(g)]
        win = parts[0] if g == 1 else jnp.concatenate(parts, axis=-1)
        win = win.reshape(tb * l_pad, ge)
        prod = jnp.dot(win, wconv_ref[j], preferred_element_type=jnp.float32)
        if j == 0:
            acc_ref[...] = prod
        else:
            acc_ref[...] += prod
    z = acc_ref[...].reshape(tb, l_pad, nf_pad)

    # --- mask invalid (position, filter-bank) pairs, built in-kernel from statics --
    pos = jax.lax.broadcasted_iota(jnp.int32, (l_pad, nf_pad), 0)
    col = jax.lax.broadcasted_iota(jnp.int32, (l_pad, nf_pad), 1)
    valid = None
    c0 = 0
    for f, nf in zip(filter_sizes, num_filters):
        L = seq_len - f + 1
        v = (col >= c0) & (col < c0 + nf) & (pos < L)
        valid = v if valid is None else (valid | v)
        c0 += nf
    z = z + jnp.where(valid, jnp.float32(0.0), neg)[None, :, :]

    pooled = jnp.max(z, axis=1)                                       # (TB, NFp)
    # bias + relu hoisted out of the pool: max_t relu(z_t + b) == relu(max_t z_t + b)
    feature = jnp.maximum(pooled + convb_ref[...], 0.0)

    # --- Highway: t * relu(fc1(x)) + (1 - t) * x ------------------------------------
    fb = feature.astype(jnp.bfloat16)
    gact = jnp.maximum(
        jnp.dot(fb, hw_w1_ref[...], preferred_element_type=jnp.float32) + hw_b1_ref[...],
        0.0)
    tgate = jax.nn.sigmoid(
        jnp.dot(fb, hw_w2_ref[...], preferred_element_type=jnp.float32) + hw_b2_ref[...])
    feature = tgate * gact + (1.0 - tgate) * feature

    # TODO(synk): nn.Dropout is identity at inference (eval mode); omitted here.

    # --- final linear + exact softmax (padded classes carry a -1e30 bias) ----------
    score = jnp.dot(feature.astype(jnp.bfloat16), fc_w_ref[...],
                    preferred_element_type=jnp.float32) + fc_b_ref[...]
    m = jnp.max(score, axis=1, keepdims=True)
    e = jnp.exp(score - m)
    pred = e / jnp.sum(e, axis=1, keepdims=True)

    feat_ref[...] = feature
    score_ref[...] = score
    pred_ref[...] = pred


def discriminator_forward(tokens, params, *, filter_sizes, num_filters, num_classes):
    B, S = tokens.shape
    E = params["embed"].shape[1]
    assert all(f <= S for f in filter_sizes), "filter size must not exceed seq_len"

    f_tot = sum(num_filters)
    max_f, min_f = max(filter_sizes), min(filter_sizes)
    nf_pad = _round_up(f_tot, 128)
    c_pad = _round_up(num_classes, 128)
    neg = jnp.float32(-1e30)

    target_k, vmem_budget = _hw_config()
    # Fold g adjacent offsets into the contraction (K = g*E), capped at real offsets.
    g = max(1, min(target_k // max(E, 1), max_f))
    max_f_pad = _round_up(max_f, g)
    num_groups = max_f_pad // g
    ge = g * E

    l_max = S - min_f + 1
    l_pad = _round_up(l_max, 16)                    # sublane-tile friendly (bf16:16, f32:8)
    s_pad = _round_up(l_pad + max_f_pad - 1, 16)

    # --- derive batch tile from per-generation VMEM budget ---------------------------
    weight_bytes = ((num_groups * ge * nf_pad + 2 * nf_pad * nf_pad + nf_pad * c_pad) * 2
                    + (3 * nf_pad + c_pad) * 4) * 2           # worst case: double-buffered
    per_row_bytes = (2 * s_pad * E * 2                        # x (bf16, double-buffered)
                     + 2 * l_pad * nf_pad * 4                 # f32 accumulator + live copy
                     + l_pad * ge * 2                         # window intermediate (bf16)
                     + 2 * (nf_pad + 2 * c_pad) * 4)          # outputs (f32, double-buffered)
    tb, b_pad = _pick_batch_tile(B, per_row_bytes, weight_bytes, vmem_budget)
    grid = (b_pad // tb,)

    # --- embedding gather + pad directly in bf16 (no f32 activation round trip) -----
    x = jnp.take(params["embed"].astype(jnp.bfloat16), tokens, axis=0)   # (B, S, E) bf16
    x = jnp.pad(x, ((0, b_pad - B), (0, s_pad - S), (0, 0)))
    # TODO(synk): the gather could be fused into the kernel via PrefetchScalarGridSpec
    # + per-row DMA; kept as plain-JAX glue here.

    # --- pack conv weights per (group, offset-within-group), lane dense --------------
    wconv = jnp.zeros((num_groups, ge, nf_pad), jnp.float32)
    convb = jnp.zeros((1, nf_pad), jnp.float32)
    col = 0
    for (f, nf), w_pt, b_pt in zip(zip(filter_sizes, num_filters),
                                   params["conv_w"], params["conv_b"]):
        for k in range(f):
            j, m = divmod(k, g)
            wconv = wconv.at[j, m * E:(m + 1) * E, col:col + nf].set(w_pt[:, 0, k, :].T)
        convb = convb.at[0, col:col + nf].set(b_pt)
        col += nf

    # --- pad highway / fc params to lane-dense widths --------------------------------
    hw_w1 = jnp.zeros((nf_pad, nf_pad), jnp.float32).at[:f_tot, :f_tot].set(params["hw_w1"])
    hw_w2 = jnp.zeros((nf_pad, nf_pad), jnp.float32).at[:f_tot, :f_tot].set(params["hw_w2"])
    hw_b1 = jnp.zeros((1, nf_pad), jnp.float32).at[0, :f_tot].set(params["hw_b1"])
    hw_b2 = jnp.zeros((1, nf_pad), jnp.float32).at[0, :f_tot].set(params["hw_b2"])
    fc_w = jnp.zeros((nf_pad, c_pad), jnp.float32).at[:f_tot, :num_classes].set(params["fc_w"])
    fc_b = jnp.full((1, c_pad), neg, jnp.float32).at[0, :num_classes].set(params["fc_b"])

    # MXU operands bf16, accumulation stays f32 inside the kernel.
    wconv = wconv.astype(jnp.bfloat16)
    hw_w1 = hw_w1.astype(jnp.bfloat16)
    hw_w2 = hw_w2.astype(jnp.bfloat16)
    fc_w = fc_w.astype(jnp.bfloat16)

    kernel = functools.partial(discriminator_kernel, tuple(filter_sizes),
                               tuple(num_filters), S, g, num_groups, l_pad, E)

    act_map = lambda i: (i, 0, 0)
    out_map = lambda i: (i, 0)

    flops = 2 * b_pad * (num_groups * l_pad * ge * nf_pad
                         + 2 * nf_pad * nf_pad + nf_pad * c_pad)
    transcendentals = b_pad * (nf_pad + c_pad)
    bytes_accessed = (x.size * 2
                      + (wconv.size + hw_w1.size + hw_w2.size + fc_w.size) * 2
                      + (convb.size + hw_b1.size + hw_b2.size + fc_b.size) * 4
                      + b_pad * (nf_pad + 2 * c_pad) * 4)

    out_shape = (
        jax.ShapeDtypeStruct((b_pad, nf_pad), jnp.float32),   # feature (lane-dense slab)
        jax.ShapeDtypeStruct((b_pad, c_pad), jnp.float32),    # score
        jax.ShapeDtypeStruct((b_pad, c_pad), jnp.float32),    # pred
    )

    def run(single_buffer):
        def const_spec(shape):
            zeros = (0,) * len(shape)
            if single_buffer:
                return pl.BlockSpec(shape, lambda i, _z=zeros: _z,
                                    pipeline_mode=pl.Buffered(1))
            return pl.BlockSpec(shape, lambda i, _z=zeros: _z)

        in_specs = [
            pl.BlockSpec((tb, s_pad, E), act_map),      # activations: blocked over batch
            const_spec((num_groups, ge, nf_pad)),       # grid-invariant, VMEM resident
            const_spec((1, nf_pad)),
            const_spec((nf_pad, nf_pad)),
            const_spec((1, nf_pad)),
            const_spec((nf_pad, nf_pad)),
            const_spec((1, nf_pad)),
            const_spec((nf_pad, c_pad)),
            const_spec((1, c_pad)),
        ]
        out_specs = (
            pl.BlockSpec((tb, nf_pad), out_map),
            pl.BlockSpec((tb, c_pad), out_map),
            pl.BlockSpec((tb, c_pad), out_map),
        )
        call = pl.pallas_call(
            kernel,
            grid=grid,
            in_specs=in_specs,
            out_specs=out_specs,
            out_shape=out_shape,
            scratch_shapes=[pltpu.VMEM((tb * l_pad, nf_pad), jnp.float32)],
            compiler_params=pltpu.CompilerParams(
                dimension_semantics=("parallel",),
                vmem_limit_bytes=int(vmem_budget)),
            cost_estimate=pl.CostEstimate(flops=flops,
                                          transcendentals=transcendentals,
                                          bytes_accessed=bytes_accessed),
        )
        outs = call(x, wconv, convb, hw_w1, hw_b1, hw_w2, hw_b2, fc_w, fc_b)
        jax.block_until_ready(outs)
        return outs

    try:
        feature, score, pred = run(single_buffer=True)
    except Exception:
        # pl.Buffered(1) not supported on this jax/backend -> default double buffering.
        feature, score, pred = run(single_buffer=False)

    return {"pred": pred[:B, :num_classes],
            "feature": feature[:B, :f_tot],
            "score": score[:B, :num_classes]}


def init_params(key, *, vocab_size, emb_dim, filter_sizes, num_filters, num_classes):
    f_tot = sum(num_filters)
    keys = jax.random.split(key, 6 + len(filter_sizes))
    ki = iter(keys)

    def trunc(k, shape):
        # matches truncated_normal(shape, lower=-0.2, upper=0.2): std normal truncated
        return jax.random.truncated_normal(k, -0.2, 0.2, shape, dtype=jnp.float32)

    params = {}
    # nn.Embedding(vocab_size + 1, emb_dim), uniform(-1, 1)
    params["embed"] = jax.random.uniform(next(ki), (vocab_size + 1, emb_dim),
                                         minval=-1.0, maxval=1.0, dtype=jnp.float32)
    # Conv2d(1, nf, (f, emb)): weight (nf, 1, f, emb) truncated-normal, bias 0.1
    params["conv_w"] = [trunc(next(ki), (nf, 1, f, emb_dim))
                        for f, nf in zip(filter_sizes, num_filters)]
    params["conv_b"] = [jnp.full((nf,), 0.1, jnp.float32) for nf in num_filters]
    # Highway linears (stored in math layout (in, out); bias (out,))
    params["hw_w1"] = trunc(next(ki), (f_tot, f_tot))
    params["hw_b1"] = trunc(next(ki), (f_tot,))
    params["hw_w2"] = trunc(next(ki), (f_tot, f_tot))
    params["hw_b2"] = trunc(next(ki), (f_tot,))
    # fc: truncated-normal weight (stored (in, out)), bias 0.1
    params["fc_w"] = trunc(next(ki), (f_tot, num_classes))
    params["fc_b"] = jnp.full((num_classes,), 0.1, jnp.float32)
    return params


def reference_forward(tokens, params, *, filter_sizes, num_filters):
    """Pure-JAX f32 reference mirroring the PyTorch forward, for validation."""
    emb = jnp.take(params["embed"], tokens, axis=0)
    B, S, E = emb.shape
    pooled = []
    for (f, nf), w_pt, b in zip(zip(filter_sizes, num_filters),
                                params["conv_w"], params["conv_b"]):
        w = w_pt.reshape(nf, f * E).T
        L = S - f + 1
        hs = [jax.nn.relu(emb[:, t:t + f, :].reshape(B, f * E) @ w + b) for t in range(L)]
        pooled.append(jnp.max(jnp.stack(hs, 0), axis=0))
    feat = jnp.concatenate(pooled, axis=1)
    g = jax.nn.relu(feat @ params["hw_w1"] + params["hw_b1"])
    t = jax.nn.sigmoid(feat @ params["hw_w2"] + params["hw_b2"])
    feat = t * g + (1.0 - t) * feat
    score = feat @ params["fc_w"] + params["fc_b"]
    return {"pred": jax.nn.softmax(score, axis=1), "feature": feat, "score": score}


if __name__ == "__main__":
    # Small, module-consistent configuration.
    seq_len = 8
    num_classes = 2
    vocab_size = 20
    dis_emb_dim = 32
    filter_sizes = (2, 3)
    num_filters = (16, 16)
    batch_size = 2

    key = jax.random.PRNGKey(0)
    pkey, tkey = jax.random.split(key)
    params = init_params(pkey, vocab_size=vocab_size, emb_dim=dis_emb_dim,
                         filter_sizes=filter_sizes, num_filters=num_filters,
                         num_classes=num_classes)
    tokens = jax.random.randint(tkey, (batch_size, seq_len), 0, vocab_size + 1,
                                dtype=jnp.int32)

    out = discriminator_forward(tokens, params,
                                filter_sizes=filter_sizes,
                                num_filters=num_filters,
                                num_classes=num_classes)
    jax.block_until_ready(out)

    ref = reference_forward(tokens, params,
                            filter_sizes=filter_sizes, num_filters=num_filters)
    for k in ("pred", "feature", "score"):
        assert out[k].shape == ref[k].shape, (k, out[k].shape, ref[k].shape)
        # bf16 MXU operands (f32 accumulation) vs f32 reference => bf16-level tolerance
        assert jnp.allclose(out[k], ref[k], atol=3e-2, rtol=3e-2), (
            k, float(jnp.max(jnp.abs(out[k] - ref[k]))))

    print("KERNEL_OK")
</pallas_src>

<mosaic_0001>
module attributes {stable_mosaic.version = 11 : i64} {
  func.func @discriminator_kernel(%arg0: i32, %arg1: memref<8x32x32xbf16, #tpu.memory_space<vmem>>, %arg2: memref<1x96x128xbf16, #tpu.memory_space<vmem>>, %arg3: memref<1x128xf32, #tpu.memory_space<vmem>>, %arg4: memref<128x128xbf16, #tpu.memory_space<vmem>>, %arg5: memref<1x128xf32, #tpu.memory_space<vmem>>, %arg6: memref<128x128xbf16, #tpu.memory_space<vmem>>, %arg7: memref<1x128xf32, #tpu.memory_space<vmem>>, %arg8: memref<128x128xbf16, #tpu.memory_space<vmem>>, %arg9: memref<1x128xf32, #tpu.memory_space<vmem>>, %arg10: memref<8x128xf32, #tpu.memory_space<vmem>>, %arg11: memref<8x128xf32, #tpu.memory_space<vmem>>, %arg12: memref<8x128xf32, #tpu.memory_space<vmem>>, %arg13: memref<128x128xf32, #tpu.memory_space<vmem>>) attributes {dimension_semantics = [#tpu.dimension_semantics<parallel>], iteration_bounds = array<i64: 2>, scalar_prefetch = 0 : i64, scratch_operands = 1 : i64, tpu.core_type = #tpu.core_type<tc>, window_params = [{transform_indices = @transform_0, window_bounds = array<i64: 8, 32, 32>}, {pipeline_mode = #tpu.pipeline_mode<synchronous>, transform_indices = @transform_1, window_bounds = array<i64: 1, 96, 128>}, {pipeline_mode = #tpu.pipeline_mode<synchronous>, transform_indices = @transform_2, window_bounds = array<i64: 1, 128>}, {pipeline_mode = #tpu.pipeline_mode<synchronous>, transform_indices = @transform_3, window_bounds = array<i64: 128, 128>}, {pipeline_mode = #tpu.pipeline_mode<synchronous>, transform_indices = @transform_4, window_bounds = array<i64: 1, 128>}, {pipeline_mode = #tpu.pipeline_mode<synchronous>, transform_indices = @transform_5, window_bounds = array<i64: 128, 128>}, {pipeline_mode = #tpu.pipeline_mode<synchronous>, transform_indices = @transform_6, window_bounds = array<i64: 1, 128>}, {pipeline_mode = #tpu.pipeline_mode<synchronous>, transform_indices = @transform_7, window_bounds = array<i64: 128, 128>}, {pipeline_mode = #tpu.pipeline_mode<synchronous>, transform_indices = @transform_8, window_bounds = array<i64: 1, 128>}, {transform_indices = @transform_9, window_bounds = array<i64: 8, 128>}, {transform_indices = @transform_10, window_bounds = array<i64: 8, 128>}, {transform_indices = @transform_11, window_bounds = array<i64: 8, 128>}]} {
    %c0 = arith.constant 0 : index
    %c0_0 = arith.constant 0 : index
    %c0_1 = arith.constant 0 : index
    %0 = vector.load %arg1[%c0, %c0_0, %c0_1] : memref<8x32x32xbf16, #tpu.memory_space<vmem>>, vector<8x16x32xbf16>
    %c0_2 = arith.constant 0 : index
    %c1 = arith.constant 1 : index
    %c0_3 = arith.constant 0 : index
    %1 = vector.load %arg1[%c0_2, %c1, %c0_3] : memref<8x32x32xbf16, #tpu.memory_space<vmem>>, vector<8x16x32xbf16>
    %c0_4 = arith.constant 0 : index
    %c2 = arith.constant 2 : index
    %c0_5 = arith.constant 0 : index
    %2 = vector.load %arg1[%c0_4, %c2, %c0_5] : memref<8x32x32xbf16, #tpu.memory_space<vmem>>, vector<8x16x32xbf16>
    %3 = tpu.concatenate %0, %1, %2 in 2 : vector<8x16x32xbf16>, vector<8x16x32xbf16>, vector<8x16x32xbf16> -> vector<8x16x96xbf16>
    %4 = vector.shape_cast %3 : vector<8x16x96xbf16> to vector<128x96xbf16>
    %c0_6 = arith.constant 0 : index
    %c0_7 = arith.constant 0 : index
    %c0_8 = arith.constant 0 : index
    %5 = vector.load %arg2[%c0_6, %c0_7, %c0_8] : memref<1x96x128xbf16, #tpu.memory_space<vmem>>, vector<1x96x128xbf16>
    %6 = vector.shape_cast %5 : vector<1x96x128xbf16> to vector<96x128xbf16>
    %cst = arith.constant dense<0.000000e+00> : vector<128x128xf32>
    %7 = tpu.matmul %4, %6, %cst {dimension_numbers = #tpu.dot_dimension_numbers<[1], [0], [0], [1], [0, 0, 1, 1], [], []>} : vector<128x96xbf16>, vector<96x128xbf16>, vector<128x128xf32> -> vector<128x128xf32>
    %c0_9 = arith.constant 0 : index
    %c0_10 = arith.constant 0 : index
    %8 = vector.load %arg13[%c0_9, %c0_10] : memref<128x128xf32, #tpu.memory_space<vmem>>, vector<128x128xf32>
    tpu.vector_store %arg13[%c0_9, %c0_10], %7 {strides = array<i32>} : memref<128x128xf32, #tpu.memory_space<vmem>>, vector<128x128xf32>,
    %c0_11 = arith.constant 0 : index
    %c0_12 = arith.constant 0 : index
    %9 = vector.load %arg13[%c0_11, %c0_12] : memref<128x128xf32, #tpu.memory_space<vmem>>, vector<128x128xf32>
    %10 = vector.shape_cast %9 : vector<128x128xf32> to vector<8x16x128xf32>
    %11 = tpu.iota {dimensions = array<i32: 0>} : vector<16x128xi32>
    %12 = tpu.iota {dimensions = array<i32: 1>} : vector<16x128xi32>
    %c0_i32 = arith.constant 0 : i32
    %13 = vector.broadcast %c0_i32 : i32 to vector<16x128xi32>
    %14 = arith.cmpi sge, %12, %13 : vector<16x128xi32>
    %c16_i32 = arith.constant 16 : i32
    %15 = vector.broadcast %c16_i32 : i32 to vector<16x128xi32>
    %16 = arith.cmpi slt, %12, %15 : vector<16x128xi32>
    %17 = arith.andi %14, %16 : vector<16x128xi1>
    %c7_i32 = arith.constant 7 : i32
    %18 = vector.broadcast %c7_i32 : i32 to vector<16x128xi32>
    %19 = arith.cmpi slt, %11, %18 : vector<16x128xi32>
    %20 = arith.andi %17, %19 : vector<16x128xi1>
    %c16_i32_13 = arith.constant 16 : i32
    %21 = vector.broadcast %c16_i32_13 : i32 to vector<16x128xi32>
    %22 = arith.cmpi sge, %12, %21 : vector<16x128xi32>
    %c32_i32 = arith.constant 32 : i32
    %23 = vector.broadcast %c32_i32 : i32 to vector<16x128xi32>
    %24 = arith.cmpi slt, %12, %23 : vector<16x128xi32>
    %25 = arith.andi %22, %24 : vector<16x128xi1>
    %c6_i32 = arith.constant 6 : i32
    %26 = vector.broadcast %c6_i32 : i32 to vector<16x128xi32>
    %27 = arith.cmpi slt, %11, %26 : vector<16x128xi32>
    %28 = arith.andi %25, %27 : vector<16x128xi1>
    %29 = arith.ori %20, %28 : vector<16x128xi1>
    %cst_14 = arith.constant 0.000000e+00 : f32
    %cst_15 = arith.constant -1.000000e+30 : f32
    %30 = vector.broadcast %cst_14 : f32 to vector<16x128xf32>
    %31 = vector.broadcast %cst_15 : f32 to vector<16x128xf32>
    %32 = arith.select %29, %30, %31 : vector<16x128xi1>, vector<16x128xf32>
    %33 = vector.shape_cast %32 : vector<16x128xf32> to vector<1x16x128xf32>
    %34 = vector.broadcast %33 : vector<1x16x128xf32> to vector<8x16x128xf32>
    %35 = arith.addf %10, %34 : vector<8x16x128xf32>
    %cst_16 = arith.constant dense<0xFF800000> : vector<8x128xf32>
    %36 = vector.multi_reduction <maximumf>, %35, %cst_16 [1] : vector<8x16x128xf32> to vector<8x128xf32>
    %c0_17 = arith.constant 0 : index
    %c0_18 = arith.constant 0 : index
    %37 = vector.load %arg3[%c0_17, %c0_18] : memref<1x128xf32, #tpu.memory_space<vmem>>, vector<1x128xf32>
    %38 = vector.broadcast %37 : vector<1x128xf32> to vector<8x128xf32>
    %39 = arith.addf %36, %38 : vector<8x128xf32>
    %cst_19 = arith.constant 0.000000e+00 : f32
    %40 = vector.broadcast %cst_19 : f32 to vector<8x128xf32>
    %41 = arith.maximumf %39, %40 : vector<8x128xf32>
    %42 = arith.truncf %41 : vector<8x128xf32> to vector<8x128xbf16>
    %c0_20 = arith.constant 0 : index
    %c0_21 = arith.constant 0 : index
    %43 = vector.load %arg4[%c0_20, %c0_21] : memref<128x128xbf16, #tpu.memory_space<vmem>>, vector<128x128xbf16>
    %cst_22 = arith.constant dense<0.000000e+00> : vector<8x128xf32>
    %44 = tpu.matmul %42, %43, %cst_22 {dimension_numbers = #tpu.dot_dimension_numbers<[1], [0], [0], [1], [0, 0, 1, 1], [], []>} : vector<8x128xbf16>, vector<128x128xbf16>, vector<8x128xf32> -> vector<8x128xf32>
    %c0_23 = arith.constant 0 : index
    %c0_24 = arith.constant 0 : index
    %45 = vector.load %arg5[%c0_23, %c0_24] : memref<1x128xf32, #tpu.memory_space<vmem>>, vector<1x128xf32>
    %46 = vector.broadcast %45 : vector<1x128xf32> to vector<8x128xf32>
    %47 = arith.addf %44, %46 : vector<8x128xf32>
    %cst_25 = arith.constant 0.000000e+00 : f32
    %48 = vector.broadcast %cst_25 : f32 to vector<8x128xf32>
    %49 = arith.maximumf %47, %48 : vector<8x128xf32>
    %c0_26 = arith.constant 0 : index
    %c0_27 = arith.constant 0 : index
    %50 = vector.load %arg6[%c0_26, %c0_27] : memref<128x128xbf16, #tpu.memory_space<vmem>>, vector<128x128xbf16>
    %cst_28 = arith.constant dense<0.000000e+00> : vector<8x128xf32>
    %51 = tpu.matmul %42, %50, %cst_28 {dimension_numbers = #tpu.dot_dimension_numbers<[1], [0], [0], [1], [0, 0, 1, 1], [], []>} : vector<8x128xbf16>, vector<128x128xbf16>, vector<8x128xf32> -> vector<8x128xf32>
    %c0_29 = arith.constant 0 : index
    %c0_30 = arith.constant 0 : index
    %52 = vector.load %arg7[%c0_29, %c0_30] : memref<1x128xf32, #tpu.memory_space<vmem>>, vector<1x128xf32>
    %53 = vector.broadcast %52 : vector<1x128xf32> to vector<8x128xf32>
    %54 = arith.addf %51, %53 : vector<8x128xf32>
    %55 = arith.negf %54 : vector<8x128xf32>
    %56 = math.exp %55 : vector<8x128xf32>
    %cst_31 = arith.constant 1.000000e+00 : f32
    %57 = vector.broadcast %cst_31 : f32 to vector<8x128xf32>
    %58 = arith.addf %57, %56 : vector<8x128xf32>
    %59 = arith.divf %57, %58 : vector<8x128xf32>
    %60 = arith.mulf %59, %49 : vector<8x128xf32>
    %cst_32 = arith.constant 1.000000e+00 : f32
    %61 = vector.broadcast %cst_32 : f32 to vector<8x128xf32>
    %62 = arith.subf %61, %59 : vector<8x128xf32>
    %63 = arith.mulf %62, %41 : vector<8x128xf32>
    %64 = arith.addf %60, %63 : vector<8x128xf32>
    %65 = arith.truncf %64 : vector<8x128xf32> to vector<8x128xbf16>
    %c0_33 = arith.constant 0 : index
    %c0_34 = arith.constant 0 : index
    %66 = vector.load %arg8[%c0_33, %c0_34] : memref<128x128xbf16, #tpu.memory_space<vmem>>, vector<128x128xbf16>
    %cst_35 = arith.constant dense<0.000000e+00> : vector<8x128xf32>
    %67 = tpu.matmul %65, %66, %cst_35 {dimension_numbers = #tpu.dot_dimension_numbers<[1], [0], [0], [1], [0, 0, 1, 1], [], []>} : vector<8x128xbf16>, vector<128x128xbf16>, vector<8x128xf32> -> vector<8x128xf32>
    %c0_36 = arith.constant 0 : index
    %c0_37 = arith.constant 0 : index
    %68 = vector.load %arg9[%c0_36, %c0_37] : memref<1x128xf32, #tpu.memory_space<vmem>>, vector<1x128xf32>
    %69 = vector.broadcast %68 : vector<1x128xf32> to vector<8x128xf32>
    %70 = arith.addf %67, %69 : vector<8x128xf32>
    %cst_38 = arith.constant dense<0xFF800000> : vector<8xf32>
    %71 = vector.multi_reduction <maximumf>, %70, %cst_38 [1] : vector<8x128xf32> to vector<8xf32>
    %72 = vector.shape_cast %71 : vector<8xf32> to vector<8x1xf32>
    %73 = vector.broadcast %72 : vector<8x1xf32> to vector<8x128xf32>
    %74 = arith.subf %70, %73 : vector<8x128xf32>
    %75 = math.exp %74 : vector<8x128xf32>
    %cst_39 = arith.constant dense<0.000000e+00> : vector<8xf32>
    %76 = vector.multi_reduction <add>, %75, %cst_39 [1] : vector<8x128xf32> to vector<8xf32>
    %77 = vector.shape_cast %76 : vector<8xf32> to vector<8x1xf32>
    %78 = vector.broadcast %77 : vector<8x1xf32> to vector<8x128xf32>
    %79 = arith.divf %75, %78 : vector<8x128xf32>
    %c0_40 = arith.constant 0 : index
    %c0_41 = arith.constant 0 : index
    %80 = vector.load %arg10[%c0_40, %c0_41] : memref<8x128xf32, #tpu.memory_space<vmem>>, vector<8x128xf32>
    tpu.vector_store %arg10[%c0_40, %c0_41], %64 {strides = array<i32>} : memref<8x128xf32, #tpu.memory_space<vmem>>, vector<8x128xf32>,
    %c0_42 = arith.constant 0 : index
    %c0_43 = arith.constant 0 : index
    %81 = vector.load %arg11[%c0_42, %c0_43] : memref<8x128xf32, #tpu.memory_space<vmem>>, vector<8x128xf32>
    tpu.vector_store %arg11[%c0_42, %c0_43], %70 {strides = array<i32>} : memref<8x128xf32, #tpu.memory_space<vmem>>, vector<8x128xf32>,
    %c0_44 = arith.constant 0 : index
    %c0_45 = arith.constant 0 : index
    %82 = vector.load %arg12[%c0_44, %c0_45] : memref<8x128xf32, #tpu.memory_space<vmem>>, vector<8x128xf32>
    tpu.vector_store %arg12[%c0_44, %c0_45], %79 {strides = array<i32>} : memref<8x128xf32, #tpu.memory_space<vmem>>, vector<8x128xf32>,
    return
  }
  func.func @transform_0(%arg0: i32) -> (i32, i32, i32) {
    %c0_i32 = arith.constant 0 : i32
    %c0_i32_0 = arith.constant 0 : i32
    %c0_i32_1 = arith.constant 0 : i32
    return %arg0, %c0_i32, %c0_i32_0 : i32, i32, i32
  }
  func.func @transform_1(%arg0: i32) -> (i32, i32, i32) {
    %c0_i32 = arith.constant 0 : i32
    %c0_i32_0 = arith.constant 0 : i32
    %c0_i32_1 = arith.constant 0 : i32
    %c0_i32_2 = arith.constant 0 : i32
    return %c0_i32, %c0_i32_0, %c0_i32_1 : i32, i32, i32
  }
  func.func @transform_2(%arg0: i32) -> (i32, i32) {
    %c0_i32 = arith.constant 0 : i32
    %c0_i32_0 = arith.constant 0 : i32
    %c0_i32_1 = arith.constant 0 : i32
    return %c0_i32, %c0_i32_0 : i32, i32
  }
  func.func @transform_3(%arg0: i32) -> (i32, i32) {
    %c0_i32 = arith.constant 0 : i32
    %c0_i32_0 = arith.constant 0 : i32
    %c0_i32_1 = arith.constant 0 : i32
    return %c0_i32, %c0_i32_0 : i32, i32
  }
  func.func @transform_4(%arg0: i32) -> (i32, i32) {
    %c0_i32 = arith.constant 0 : i32
    %c0_i32_0 = arith.constant 0 : i32
    %c0_i32_1 = arith.constant 0 : i32
    return %c0_i32, %c0_i32_0 : i32, i32
  }
  func.func @transform_5(%arg0: i32) -> (i32, i32) {
    %c0_i32 = arith.constant 0 : i32
    %c0_i32_0 = arith.constant 0 : i32
    %c0_i32_1 = arith.constant 0 : i32
    return %c0_i32, %c0_i32_0 : i32, i32
  }
  func.func @transform_6(%arg0: i32) -> (i32, i32) {
    %c0_i32 = arith.constant 0 : i32
    %c0_i32_0 = arith.constant 0 : i32
    %c0_i32_1 = arith.constant 0 : i32
    return %c0_i32, %c0_i32_0 : i32, i32
  }
  func.func @transform_7(%arg0: i32) -> (i32, i32) {
    %c0_i32 = arith.constant 0 : i32
    %c0_i32_0 = arith.constant 0 : i32
    %c0_i32_1 = arith.constant 0 : i32
    return %c0_i32, %c0_i32_0 : i32, i32
  }
  func.func @transform_8(%arg0: i32) -> (i32, i32) {
    %c0_i32 = arith.constant 0 : i32
    %c0_i32_0 = arith.constant 0 : i32
    %c0_i32_1 = arith.constant 0 : i32
    return %c0_i32, %c0_i32_0 : i32, i32
  }
  func.func @transform_9(%arg0: i32) -> (i32, i32) {
    %c0_i32 = arith.constant 0 : i32
    %c0_i32_0 = arith.constant 0 : i32
    return %arg0, %c0_i32 : i32, i32
  }
  func.func @transform_10(%arg0: i32) -> (i32, i32) {
    %c0_i32 = arith.constant 0 : i32
    %c0_i32_0 = arith.constant 0 : i32
    return %arg0, %c0_i32 : i32, i32
  }
  func.func @transform_11(%arg0: i32) -> (i32, i32) {
    %c0_i32 = arith.constant 0 : i32
    %c0_i32_0 = arith.constant 0 : i32
    return %arg0, %c0_i32 : i32, i32
  }
}

module attributes {stable_mosaic.version = 11 : i64} {
  func.func @discriminator_kernel(%arg0: i32, %arg1: memref<8x32x32xbf16, #tpu.memory_space<vmem>>, %arg2: memref<1x96x128xbf16, #tpu.memory_space<vmem>>, %arg3: memref<1x128xf32, #tpu.memory_space<vmem>>, %arg4: memref<128x128xbf16, #tpu.memory_space<vmem>>, %arg5: memref<1x128xf32, #tpu.memory_space<vmem>>, %arg6: memref<128x128xbf16, #tpu.memory_space<vmem>>, %arg7: memref<1x128xf32, #tpu.memory_space<vmem>>, %arg8: memref<128x128xbf16, #tpu.memory_space<vmem>>, %arg9: memref<1x128xf32, #tpu.memory_space<vmem>>, %arg10: memref<8x128xf32, #tpu.memory_space<vmem>>, %arg11: memref<8x128xf32, #tpu.memory_space<vmem>>, %arg12: memref<8x128xf32, #tpu.memory_space<vmem>>, %arg13: memref<128x128xf32, #tpu.memory_space<vmem>>) attributes {dimension_semantics = [#tpu.dimension_semantics<parallel>], iteration_bounds = array<i64: 2>, scalar_prefetch = 0 : i64, scratch_operands = 1 : i64, tpu.core_type = #tpu.core_type<tc>, window_params = [{transform_indices = @transform_0, window_bounds = array<i64: 8, 32, 32>}, {pipeline_mode = #tpu.pipeline_mode<synchronous>, transform_indices = @transform_1, window_bounds = array<i64: 1, 96, 128>}, {pipeline_mode = #tpu.pipeline_mode<synchronous>, transform_indices = @transform_2, window_bounds = array<i64: 1, 128>}, {pipeline_mode = #tpu.pipeline_mode<synchronous>, transform_indices = @transform_3, window_bounds = array<i64: 128, 128>}, {pipeline_mode = #tpu.pipeline_mode<synchronous>, transform_indices = @transform_4, window_bounds = array<i64: 1, 128>}, {pipeline_mode = #tpu.pipeline_mode<synchronous>, transform_indices = @transform_5, window_bounds = array<i64: 128, 128>}, {pipeline_mode = #tpu.pipeline_mode<synchronous>, transform_indices = @transform_6, window_bounds = array<i64: 1, 128>}, {pipeline_mode = #tpu.pipeline_mode<synchronous>, transform_indices = @transform_7, window_bounds = array<i64: 128, 128>}, {pipeline_mode = #tpu.pipeline_mode<synchronous>, transform_indices = @transform_8, window_bounds = array<i64: 1, 128>}, {transform_indices = @transform_9, window_bounds = array<i64: 8, 128>}, {transform_indices = @transform_10, window_bounds = array<i64: 8, 128>}, {transform_indices = @transform_11, window_bounds = array<i64: 8, 128>}]} {
    %c0 = arith.constant 0 : index
    %c0_0 = arith.constant 0 : index
    %c0_1 = arith.constant 0 : index
    %0 = vector.load %arg1[%c0, %c0_0, %c0_1] : memref<8x32x32xbf16, #tpu.memory_space<vmem>>, vector<8x16x32xbf16>
    %c0_2 = arith.constant 0 : index
    %c1 = arith.constant 1 : index
    %c0_3 = arith.constant 0 : index
    %1 = vector.load %arg1[%c0_2, %c1, %c0_3] : memref<8x32x32xbf16, #tpu.memory_space<vmem>>, vector<8x16x32xbf16>
    %c0_4 = arith.constant 0 : index
    %c2 = arith.constant 2 : index
    %c0_5 = arith.constant 0 : index
    %2 = vector.load %arg1[%c0_4, %c2, %c0_5] : memref<8x32x32xbf16, #tpu.memory_space<vmem>>, vector<8x16x32xbf16>
    %3 = tpu.concatenate %0, %1, %2 in 2 : vector<8x16x32xbf16>, vector<8x16x32xbf16>, vector<8x16x32xbf16> -> vector<8x16x96xbf16>
    %4 = vector.shape_cast %3 : vector<8x16x96xbf16> to vector<128x96xbf16>
    %c0_6 = arith.constant 0 : index
    %c0_7 = arith.constant 0 : index
    %c0_8 = arith.constant 0 : index
    %5 = vector.load %arg2[%c0_6, %c0_7, %c0_8] : memref<1x96x128xbf16, #tpu.memory_space<vmem>>, vector<1x96x128xbf16>
    %6 = vector.shape_cast %5 : vector<1x96x128xbf16> to vector<96x128xbf16>
    %cst = arith.constant dense<0.000000e+00> : vector<128x128xf32>
    %7 = tpu.matmul %4, %6, %cst {dimension_numbers = #tpu.dot_dimension_numbers<[1], [0], [0], [1], [0, 0, 1, 1], [], []>} : vector<128x96xbf16>, vector<96x128xbf16>, vector<128x128xf32> -> vector<128x128xf32>
    %c0_9 = arith.constant 0 : index
    %c0_10 = arith.constant 0 : index
    %8 = vector.load %arg13[%c0_9, %c0_10] : memref<128x128xf32, #tpu.memory_space<vmem>>, vector<128x128xf32>
    tpu.vector_store %arg13[%c0_9, %c0_10], %7 {strides = array<i32>} : memref<128x128xf32, #tpu.memory_space<vmem>>, vector<128x128xf32>,
    %c0_11 = arith.constant 0 : index
    %c0_12 = arith.constant 0 : index
    %9 = vector.load %arg13[%c0_11, %c0_12] : memref<128x128xf32, #tpu.memory_space<vmem>>, vector<128x128xf32>
    %10 = vector.shape_cast %9 : vector<128x128xf32> to vector<8x16x128xf32>
    %11 = tpu.iota {dimensions = array<i32: 0>} : vector<16x128xi32>
    %12 = tpu.iota {dimensions = array<i32: 1>} : vector<16x128xi32>
    %c0_i32 = arith.constant 0 : i32
    %13 = vector.broadcast %c0_i32 : i32 to vector<16x128xi32>
    %14 = arith.cmpi sge, %12, %13 : vector<16x128xi32>
    %c16_i32 = arith.constant 16 : i32
    %15 = vector.broadcast %c16_i32 : i32 to vector<16x128xi32>
    %16 = arith.cmpi slt, %12, %15 : vector<16x128xi32>
    %17 = arith.andi %14, %16 : vector<16x128xi1>
    %c7_i32 = arith.constant 7 : i32
    %18 = vector.broadcast %c7_i32 : i32 to vector<16x128xi32>
    %19 = arith.cmpi slt, %11, %18 : vector<16x128xi32>
    %20 = arith.andi %17, %19 : vector<16x128xi1>
    %c16_i32_13 = arith.constant 16 : i32
    %21 = vector.broadcast %c16_i32_13 : i32 to vector<16x128xi32>
    %22 = arith.cmpi sge, %12, %21 : vector<16x128xi32>
    %c32_i32 = arith.constant 32 : i32
    %23 = vector.broadcast %c32_i32 : i32 to vector<16x128xi32>
    %24 = arith.cmpi slt, %12, %23 : vector<16x128xi32>
    %25 = arith.andi %22, %24 : vector<16x128xi1>
    %c6_i32 = arith.constant 6 : i32
    %26 = vector.broadcast %c6_i32 : i32 to vector<16x128xi32>
    %27 = arith.cmpi slt, %11, %26 : vector<16x128xi32>
    %28 = arith.andi %25, %27 : vector<16x128xi1>
    %29 = arith.ori %20, %28 : vector<16x128xi1>
    %cst_14 = arith.constant 0.000000e+00 : f32
    %cst_15 = arith.constant -1.000000e+30 : f32
    %30 = vector.broadcast %cst_14 : f32 to vector<16x128xf32>
    %31 = vector.broadcast %cst_15 : f32 to vector<16x128xf32>
    %32 = arith.select %29, %30, %31 : vector<16x128xi1>, vector<16x128xf32>
    %33 = vector.shape_cast %32 : vector<16x128xf32> to vector<1x16x128xf32>
    %34 = vector.broadcast %33 : vector<1x16x128xf32> to vector<8x16x128xf32>
    %35 = arith.addf %10, %34 : vector<8x16x128xf32>
    %cst_16 = arith.constant dense<0xFF800000> : vector<8x128xf32>
    %36 = vector.multi_reduction <maximumf>, %35, %cst_16 [1] : vector<8x16x128xf32> to vector<8x128xf32>
    %c0_17 = arith.constant 0 : index
    %c0_18 = arith.constant 0 : index
    %37 = vector.load %arg3[%c0_17, %c0_18] : memref<1x128xf32, #tpu.memory_space<vmem>>, vector<1x128xf32>
    %38 = vector.broadcast %37 : vector<1x128xf32> to vector<8x128xf32>
    %39 = arith.addf %36, %38 : vector<8x128xf32>
    %cst_19 = arith.constant 0.000000e+00 : f32
    %40 = vector.broadcast %cst_19 : f32 to vector<8x128xf32>
    %41 = arith.maximumf %39, %40 : vector<8x128xf32>
    %42 = arith.truncf %41 : vector<8x128xf32> to vector<8x128xbf16>
    %c0_20 = arith.constant 0 : index
    %c0_21 = arith.constant 0 : index
    %43 = vector.load %arg4[%c0_20, %c0_21] : memref<128x128xbf16, #tpu.memory_space<vmem>>, vector<128x128xbf16>
    %cst_22 = arith.constant dense<0.000000e+00> : vector<8x128xf32>
    %44 = tpu.matmul %42, %43, %cst_22 {dimension_numbers = #tpu.dot_dimension_numbers<[1], [0], [0], [1], [0, 0, 1, 1], [], []>} : vector<8x128xbf16>, vector<128x128xbf16>, vector<8x128xf32> -> vector<8x128xf32>
    %c0_23 = arith.constant 0 : index
    %c0_24 = arith.constant 0 : index
    %45 = vector.load %arg5[%c0_23, %c0_24] : memref<1x128xf32, #tpu.memory_space<vmem>>, vector<1x128xf32>
    %46 = vector.broadcast %45 : vector<1x128xf32> to vector<8x128xf32>
    %47 = arith.addf %44, %46 : vector<8x128xf32>
    %cst_25 = arith.constant 0.000000e+00 : f32
    %48 = vector.broadcast %cst_25 : f32 to vector<8x128xf32>
    %49 = arith.maximumf %47, %48 : vector<8x128xf32>
    %c0_26 = arith.constant 0 : index
    %c0_27 = arith.constant 0 : index
    %50 = vector.load %arg6[%c0_26, %c0_27] : memref<128x128xbf16, #tpu.memory_space<vmem>>, vector<128x128xbf16>
    %cst_28 = arith.constant dense<0.000000e+00> : vector<8x128xf32>
    %51 = tpu.matmul %42, %50, %cst_28 {dimension_numbers = #tpu.dot_dimension_numbers<[1], [0], [0], [1], [0, 0, 1, 1], [], []>} : vector<8x128xbf16>, vector<128x128xbf16>, vector<8x128xf32> -> vector<8x128xf32>
    %c0_29 = arith.constant 0 : index
    %c0_30 = arith.constant 0 : index
    %52 = vector.load %arg7[%c0_29, %c0_30] : memref<1x128xf32, #tpu.memory_space<vmem>>, vector<1x128xf32>
    %53 = vector.broadcast %52 : vector<1x128xf32> to vector<8x128xf32>
    %54 = arith.addf %51, %53 : vector<8x128xf32>
    %55 = arith.negf %54 : vector<8x128xf32>
    %56 = math.exp %55 : vector<8x128xf32>
    %cst_31 = arith.constant 1.000000e+00 : f32
    %57 = vector.broadcast %cst_31 : f32 to vector<8x128xf32>
    %58 = arith.addf %57, %56 : vector<8x128xf32>
    %59 = arith.divf %57, %58 : vector<8x128xf32>
    %60 = arith.mulf %59, %49 : vector<8x128xf32>
    %cst_32 = arith.constant 1.000000e+00 : f32
    %61 = vector.broadcast %cst_32 : f32 to vector<8x128xf32>
    %62 = arith.subf %61, %59 : vector<8x128xf32>
    %63 = arith.mulf %62, %41 : vector<8x128xf32>
    %64 = arith.addf %60, %63 : vector<8x128xf32>
    %65 = arith.truncf %64 : vector<8x128xf32> to vector<8x128xbf16>
    %c0_33 = arith.constant 0 : index
    %c0_34 = arith.constant 0 : index
    %66 = vector.load %arg8[%c0_33, %c0_34] : memref<128x128xbf16, #tpu.memory_space<vmem>>, vector<128x128xbf16>
    %cst_35 = arith.constant dense<0.000000e+00> : vector<8x128xf32>
    %67 = tpu.matmul %65, %66, %cst_35 {dimension_numbers = #tpu.dot_dimension_numbers<[1], [0], [0], [1], [0, 0, 1, 1], [], []>} : vector<8x128xbf16>, vector<128x128xbf16>, vector<8x128xf32> -> vector<8x128xf32>
    %c0_36 = arith.constant 0 : index
    %c0_37 = arith.constant 0 : index
    %68 = vector.load %arg9[%c0_36, %c0_37] : memref<1x128xf32, #tpu.memory_space<vmem>>, vector<1x128xf32>
    %69 = vector.broadcast %68 : vector<1x128xf32> to vector<8x128xf32>
    %70 = arith.addf %67, %69 : vector<8x128xf32>
    %cst_38 = arith.constant dense<0xFF800000> : vector<8xf32>
    %71 = vector.multi_reduction <maximumf>, %70, %cst_38 [1] : vector<8x128xf32> to vector<8xf32>
    %72 = vector.shape_cast %71 : vector<8xf32> to vector<8x1xf32>
    %73 = vector.broadcast %72 : vector<8x1xf32> to vector<8x128xf32>
    %74 = arith.subf %70, %73 : vector<8x128xf32>
    %75 = math.exp %74 : vector<8x128xf32>
    %cst_39 = arith.constant dense<0.000000e+00> : vector<8xf32>
    %76 = vector.multi_reduction <add>, %75, %cst_39 [1] : vector<8x128xf32> to vector<8xf32>
    %77 = vector.shape_cast %76 : vector<8xf32> to vector<8x1xf32>
    %78 = vector.broadcast %77 : vector<8x1xf32> to vector<8x128xf32>
    %79 = arith.divf %75, %78 : vector<8x128xf32>
    %c0_40 = arith.constant 0 : index
    %c0_41 = arith.constant 0 : index
    %80 = vector.load %arg10[%c0_40, %c0_41] : memref<8x128xf32, #tpu.memory_space<vmem>>, vector<8x128xf32>
    tpu.vector_store %arg10[%c0_40, %c0_41], %64 {strides = array<i32>} : memref<8x128xf32, #tpu.memory_space<vmem>>, vector<8x128xf32>,
    %c0_42 = arith.constant 0 : index
    %c0_43 = arith.constant 0 : index
    %81 = vector.load %arg11[%c0_42, %c0_43] : memref<8x128xf32, #tpu.memory_space<vmem>>, vector<8x128xf32>
    tpu.vector_store %arg11[%c0_42, %c0_43], %70 {strides = array<i32>} : memref<8x128xf32, #tpu.memory_space<vmem>>, vector<8x128xf32>,
    %c0_44 = arith.constant 0 : index
    %c0_45 = arith.constant 0 : index
    %82 = vector.load %arg12[%c0_44, %c0_45] : memref<8x128xf32, #tpu.memory_space<vmem>>, vector<8x128xf32>
    tpu.vector_store %arg12[%c0_44, %c0_45], %79 {strides = array<i32>} : memref<8x128xf32, #tpu.memory_space<vmem>>, vector<8x128xf32>,
    return
  }
  func.func @transform_0(%arg0: i32) -> (i32, i32, i32) {
    %c0_i32 = arith.constant 0 : i32
    %c0_i32_0 = arith.constant 0 : i32
    %c0_i32_1 = arith.constant 0 : i32
    return %arg0, %c0_i32, %c0_i32_0 : i32, i32, i32
  }
  func.func @transform_1(%arg0: i32) -> (i32, i32, i32) {
    %c0_i32 = arith.constant 0 : i32
    %c0_i32_0 = arith.constant 0 : i32
    %c0_i32_1 = arith.constant 0 : i32
    %c0_i32_2 = arith.constant 0 : i32
    return %c0_i32, %c0_i32_0, %c0_i32_1 : i32, i32, i32
  }
  func.func @transform_2(%arg0: i32) -> (i32, i32) {
    %c0_i32 = arith.constant 0 : i32
    %c0_i32_0 = arith.constant 0 : i32
    %c0_i32_1 = arith.constant 0 : i32
    return %c0_i32, %c0_i32_0 : i32, i32
  }
  func.func @transform_3(%arg0: i32) -> (i32, i32) {
    %c0_i32 = arith.constant 0 : i32
    %c0_i32_0 = arith.constant 0 : i32
    %c0_i32_1 = arith.constant 0 : i32
    return %c0_i32, %c0_i32_0 : i32, i32
  }
  func.func @transform_4(%arg0: i32) -> (i32, i32) {
    %c0_i32 = arith.constant 0 : i32
    %c0_i32_0 = arith.constant 0 : i32
    %c0_i32_1 = arith.constant 0 : i32
    return %c0_i32, %c0_i32_0 : i32, i32
  }
  func.func @transform_5(%arg0: i32) -> (i32, i32) {
    %c0_i32 = arith.constant 0 : i32
    %c0_i32_0 = arith.constant 0 : i32
    %c0_i32_1 = arith.constant 0 : i32
    return %c0_i32, %c0_i32_0 : i32, i32
  }
  func.func @transform_6(%arg0: i32) -> (i32, i32) {
    %c0_i32 = arith.constant 0 : i32
    %c0_i32_0 = arith.constant 0 : i32
    %c0_i32_1 = arith.constant 0 : i32
    return %c0_i32, %c0_i32_0 : i32, i32
  }
  func.func @transform_7(%arg0: i32) -> (i32, i32) {
    %c0_i32 = arith.constant 0 : i32
    %c0_i32_0 = arith.constant 0 : i32
    %c0_i32_1 = arith.constant 0 : i32
    return %c0_i32, %c0_i32_0 : i32, i32
  }
  func.func @transform_8(%arg0: i32) -> (i32, i32) {
    %c0_i32 = arith.constant 0 : i32
    %c0_i32_0 = arith.constant 0 : i32
    %c0_i32_1 = arith.constant 0 : i32
    return %c0_i32, %c0_i32_0 : i32, i32
  }
  func.func @transform_9(%arg0: i32) -> (i32, i32) {
    %c0_i32 = arith.constant 0 : i32
    %c0_i32_0 = arith.constant 0 : i32
    return %arg0, %c0_i32 : i32, i32
  }
  func.func @transform_10(%arg0: i32) -> (i32, i32) {
    %c0_i32 = arith.constant 0 : i32
    %c0_i32_0 = arith.constant 0 : i32
    return %arg0, %c0_i32 : i32, i32
  }
  func.func @transform_11(%arg0: i32) -> (i32, i32) {
    %c0_i32 = arith.constant 0 : i32
    %c0_i32_0 = arith.constant 0 : i32
    return %arg0, %c0_i32 : i32, i32
  }
}

</mosaic_0001>

<llo_original>
// kernel: tpu_custom_call.1
$region0: #{tpu_custom_call.1}
  #allocation0 [shape = 'u32[]', space=smem, size = 0x4, offset = 0x4, fixed_abs, tag = 'smem constant byte address 0x4 - core index']
  #allocation1 [shape = 'u32[144,128]{1,0:T(1,128)}', space=vmem, size = 0x12000, scoped, tag = 'internal scratch']
  #allocation2 [shape = 'f32[128,128]{1,0:T(8,128)}', space=vmem, size = 0x10000, scoped, tag = 'scratch operand']
  %s0 = inlined_call_operand.hbm [shape: bf16[16,32,32], index: 0, kind: input, shape index: {}]
  %s1 = inlined_call_operand.hbm [shape: bf16[1,96,128], index: 1, kind: input, shape index: {}]
  %s2 = inlined_call_operand.hbm [shape: f32[1,128], index: 2, kind: input, shape index: {}]
  %s3 = inlined_call_operand.hbm [shape: bf16[128,128], index: 3, kind: input, shape index: {}]
  %s4 = inlined_call_operand.hbm [shape: f32[1,128], index: 4, kind: input, shape index: {}]
  %s5 = inlined_call_operand.hbm [shape: bf16[128,128], index: 5, kind: input, shape index: {}]
  %s6 = inlined_call_operand.hbm [shape: f32[1,128], index: 6, kind: input, shape index: {}]
  %s7 = inlined_call_operand.hbm [shape: bf16[128,128], index: 7, kind: input, shape index: {}]
  %s8 = inlined_call_operand.hbm [shape: f32[1,128], index: 8, kind: input, shape index: {}]
  %s9 = inlined_call_operand.hbm [shape: f32[16,128], index: 9, kind: output, shape index: {0}]
  %s10 = inlined_call_operand.hbm [shape: f32[16,128], index: 10, kind: output, shape index: {1}]
  %s11 = inlined_call_operand.hbm [shape: f32[16,128], index: 11, kind: output, shape index: {2}]
  %12 = xla_tuple %s9, %s10, %s11
  %s13 = sld [smem:[#allocation0]]
  $region121: #{tpu_custom_call.1} parent=0
    _
  %s15 = ssub.s32 1, %s13
  %s16 = scalar_select 0, %s15, %s13
  $region1: #{tpu_custom_call.1} parent=0
    #allocation3 [shape = 'u8[131072]{0}', space=vmem, size = 0x20000, scoped, tag = 'input window, operand 0']
    #allocation4 [shape = 's32[2]{0}', space=sflag, size = 0x8, scoped, tag = 'scoped memory for tpu_custom_call.1']
    #allocation5 [shape = 's32[2]{0}', space=sflag, size = 0x8, scoped, tag = 'scoped memory for tpu_custom_call.1']
    #allocation6 [shape = 'u8[24576]{0}', space=vmem, size = 0x6000, scoped, tag = 'input window, operand 1, single buffered']
    #allocation7 [shape = 's32[1]{0}', space=sflag, size = 0x4, scoped, tag = 'scoped memory for tpu_custom_call.1']
    #allocation8 [shape = 'u8[512]{0}', space=vmem, size = 0x400, scoped, tag = 'input window, operand 2, single buffered']
    #allocation9 [shape = 'u8[32768]{0}', space=vmem, size = 0x8000, scoped, tag = 'input window, operand 3, single buffered']
    #allocation10 [shape = 's32[1]{0}', space=sflag, size = 0x4, scoped, tag = 'scoped memory for tpu_custom_call.1']
    #allocation11 [shape = 'u8[512]{0}', space=vmem, size = 0x400, scoped, tag = 'input window, operand 4, single buffered']
    #allocation12 [shape = 'u8[32768]{0}', space=vmem, size = 0x8000, scoped, tag = 'input window, operand 5, single buffered']
    #allocation13 [shape = 's32[1]{0}', space=sflag, size = 0x4, scoped, tag = 'scoped memory for tpu_custom_call.1']
    #allocation14 [shape = 'u8[512]{0}', space=vmem, size = 0x400, scoped, tag = 'input window, operand 6, single buffered']
    #allocation15 [shape = 'u8[32768]{0}', space=vmem, size = 0x8000, scoped, tag = 'input window, operand 7, single buffered']
    #allocation16 [shape = 's32[1]{0}', space=sflag, size = 0x4, scoped, tag = 'scoped memory for tpu_custom_call.1']
    #allocation17 [shape = 'u8[512]{0}', space=vmem, size = 0x400, scoped, tag = 'input window, operand 8, single buffered']
    #allocation18 [shape = 'u8[8192]{0}', space=vmem, size = 0x2000, scoped, tag = 'output window, operand 0']
    #allocation19 [shape = 'u8[8192]{0}', space=vmem, size = 0x2000, scoped, tag = 'output window, operand 1']
    #allocation20 [shape = 's32[2]{0}', space=sflag, size = 0x8, scoped, tag = 'scoped memory for tpu_custom_call.1']
    #allocation21 [shape = 'u8[8192]{0}', space=vmem, size = 0x2000, scoped, tag = 'output window, operand 2']
    %17 = vsyncpa [#allocation4], 0
    %s18 = scalar_lea.sflag [#allocation4], 1
    %19 = vsyncpa %s18, 0
    %20 = vsyncpa [#allocation7], 0
    %21 = vsyncpa [#allocation10], 0
    %22 = vsyncpa [#allocation13], 0
    %23 = vsyncpa [#allocation16], 0
    %24 = vsyncpa [#allocation5], 0
    %s25 = scalar_lea.sflag [#allocation5], 1
    %26 = vsyncpa %s25, 0
    %27 = vsyncpa [#allocation20], 0
    %s28 = scalar_lea.sflag [#allocation20], 1
    %29 = vsyncpa %s28, 0
    loop: start=0, step=1, limit=4
    $region2: #{tpu_custom_call.1} parent=1 // loop_pre_header
      _
    $region3: #{tpu_custom_call.1} parent=1 // loop_header
      %s31 = sphi 0, %s35
      %p32 = scmp.ge.s32.totalorder %s31, 4
      %s41 = sphi 0, %s43
      %s44 = sphi 0, %s41
      %s45 = sphi 0, %s44
      %s61 = sphi 0, %s45
      %s65 = sphi 0, %s65
      %s67 = sphi 0, %s65
      %s68 = sphi 0, %s67
      %s82 = sphi 0, %s68
      %s86 = sphi 0, %s86
      %s88 = sphi 0, %s86
      %s89 = sphi 0, %s88
      %s103 = sphi 0, %s89
      %s107 = sphi 0, %s107
      %s109 = sphi 0, %s107
      %s110 = sphi 0, %s109
      %s124 = sphi 0, %s110
      %s128 = sphi 0, %s128
      %s130 = sphi 0, %s128
      %s131 = sphi 0, %s130
      %s145 = sphi 0, %s131
      %s149 = sphi 0, %s149
      %s151 = sphi 0, %s149
      %s152 = sphi 0, %s151
      %s166 = sphi 0, %s152
      %s170 = sphi 0, %s170
      %s172 = sphi 0, %s170
      %s173 = sphi 0, %s172
      %s187 = sphi 0, %s173
      %s191 = sphi 0, %s191
      %s193 = sphi 0, %s191
      %s194 = sphi 0, %s193
      %s208 = sphi 0, %s194
      %s212 = sphi 0, %s212
      %s214 = sphi 0, %s212
      %s215 = sphi 0, %s214
      %s229 = sphi 0, %s215
      %s235 = sphi 0, %s237
      %s238 = sphi 0, %s235
      %s239 = sphi 0, %s238
      %s255 = sphi 0, %s239
      %s261 = sphi 0, %s263
      %s264 = sphi 0, %s261
      %s265 = sphi 0, %s264
      %s281 = sphi 0, %s265
      %s287 = sphi 0, %s289
      %s290 = sphi 0, %s287
      %s291 = sphi 0, %s290
      %s307 = sphi 0, %s291
    $region4: #{tpu_custom_call.1} parent=1 // loop_header_branch
      %34 = sbr.rel (%p32) target = $region8
    $region5: #{tpu_custom_call.1} parent=1 // loop_body
      %s36 = ssub.s32 %s31, 1
      %s37 = ssub.s32 %s31, 2
      %s38 = sadd.s32 %s31, 1
      %s39 = ssub.s32 %s31, %s38
      %p40 = scmp.eq.s32.totalorder %s39, 0
      %s42 = sadd.s32 %s41, 1
      %s43 = scalar_select %p40, %s41, %s42
      %p46 = pneg %p40
      %p47 = scmp.eq.s32.totalorder %s31, 1
      %p48 = por %p46, %p47
      %p49 = scmp.ne.s32.totalorder %s41, %s44
      %p50 = scmp.eq.s32.totalorder %s31, 0
      %p51 = por %p49, %p50
      %p52 = scmp.ne.s32.totalorder %s41, %s44
      %p53 = scmp.eq.s32.totalorder %s36, 1
      %p54 = por %p52, %p53
      %p55 = scmp.ne.s32.totalorder %s44, %s45
      %p56 = scmp.eq.s32.totalorder %s36, 0
      %p57 = por %p55, %p56
      %p58 = scmp.ne.s32.totalorder %s44, %s45
      %p59 = scmp.eq.s32.totalorder %s37, 1
      %p60 = por %p58, %p59
      %p62 = scmp.ne.s32.totalorder %s45, %s61
      %p63 = scmp.eq.s32.totalorder %s37, 0
      %p64 = por %p62, %p63
      %s66 = sadd.s32 %s65, 1
      %p69 = scmp.eq.s32.totalorder %s31, 1
      %p70 = scmp.ne.s32.totalorder %s65, %s67
      %p71 = scmp.eq.s32.totalorder %s31, 0
      %p72 = por %p70, %p71
      %p73 = scmp.ne.s32.totalorder %s65, %s67
      %p74 = scmp.eq.s32.totalorder %s36, 1
      %p75 = por %p73, %p74
      %p76 = scmp.ne.s32.totalorder %s67, %s68
      %p77 = scmp.eq.s32.totalorder %s36, 0
      %p78 = por %p76, %p77
      %p79 = scmp.ne.s32.totalorder %s67, %s68
      %p80 = scmp.eq.s32.totalorder %s37, 1
      %p81 = por %p79, %p80
      %p83 = scmp.ne.s32.totalorder %s68, %s82
      %p84 = scmp.eq.s32.totalorder %s37, 0
      %p85 = por %p83, %p84
      %s87 = sadd.s32 %s86, 1
      %p90 = scmp.eq.s32.totalorder %s31, 1
      %p91 = scmp.ne.s32.totalorder %s86, %s88
      %p92 = scmp.eq.s32.totalorder %s31, 0
      %p93 = por %p91, %p92
      %p94 = scmp.ne.s32.totalorder %s86, %s88
      %p95 = scmp.eq.s32.totalorder %s36, 1
      %p96 = por %p94, %p95
      %p97 = scmp.ne.s32.totalorder %s88, %s89
      %p98 = scmp.eq.s32.totalorder %s36, 0
      %p99 = por %p97, %p98
      %p100 = scmp.ne.s32.totalorder %s88, %s89
      %p101 = scmp.eq.s32.totalorder %s37, 1
      %p102 = por %p100, %p101
      %p104 = scmp.ne.s32.totalorder %s89, %s103
      %p105 = scmp.eq.s32.totalorder %s37, 0
      %p106 = por %p104, %p105
      %s108 = sadd.s32 %s107, 1
      %p111 = scmp.eq.s32.totalorder %s31, 1
      %p112 = scmp.ne.s32.totalorder %s107, %s109
      %p113 = scmp.eq.s32.totalorder %s31, 0
      %p114 = por %p112, %p113
      %p115 = scmp.ne.s32.totalorder %s107, %s109
      %p116 = scmp.eq.s32.totalorder %s36, 1
      %p117 = por %p115, %p116
      %p118 = scmp.ne.s32.totalorder %s109, %s110
      %p119 = scmp.eq.s32.totalorder %s36, 0
      %p120 = por %p118, %p119
      %p121 = scmp.ne.s32.totalorder %s109, %s110
      %p122 = scmp.eq.s32.totalorder %s37, 1
      %p123 = por %p121, %p122
      %p125 = scmp.ne.s32.totalorder %s110, %s124
      %p126 = scmp.eq.s32.totalorder %s37, 0
      %p127 = por %p125, %p126
      %s129 = sadd.s32 %s128, 1
      %p132 = scmp.eq.s32.totalorder %s31, 1
      %p133 = scmp.ne.s32.totalorder %s128, %s130
      %p134 = scmp.eq.s32.totalorder %s31, 0
      %p135 = por %p133, %p134
      %p136 = scmp.ne.s32.totalorder %s128, %s130
      %p137 = scmp.eq.s32.totalorder %s36, 1
      %p138 = por %p136, %p137
      %p139 = scmp.ne.s32.totalorder %s130, %s131
      %p140 = scmp.eq.s32.totalorder %s36, 0
      %p141 = por %p139, %p140
      %p142 = scmp.ne.s32.totalorder %s130, %s131
      %p143 = scmp.eq.s32.totalorder %s37, 1
      %p144 = por %p142, %p143
      %p146 = scmp.ne.s32.totalorder %s131, %s145
      %p147 = scmp.eq.s32.totalorder %s37, 0
      %p148 = por %p146, %p147
      %s150 = sadd.s32 %s149, 1
      %p153 = scmp.eq.s32.totalorder %s31, 1
      %p154 = scmp.ne.s32.totalorder %s149, %s151
      %p155 = scmp.eq.s32.totalorder %s31, 0
      %p156 = por %p154, %p155
      %p157 = scmp.ne.s32.totalorder %s149, %s151
      %p158 = scmp.eq.s32.totalorder %s36, 1
      %p159 = por %p157, %p158
      %p160 = scmp.ne.s32.totalorder %s151, %s152
      %p161 = scmp.eq.s32.totalorder %s36, 0
      %p162 = por %p160, %p161
      %p163 = scmp.ne.s32.totalorder %s151, %s152
      %p164 = scmp.eq.s32.totalorder %s37, 1
      %p165 = por %p163, %p164
      %p167 = scmp.ne.s32.totalorder %s152, %s166
      %p168 = scmp.eq.s32.totalorder %s37, 0
      %p169 = por %p167, %p168
      %s171 = sadd.s32 %s170, 1
      %p174 = scmp.eq.s32.totalorder %s31, 1
      %p175 = scmp.ne.s32.totalorder %s170, %s172
      %p176 = scmp.eq.s32.totalorder %s31, 0
      %p177 = por %p175, %p176
      %p178 = scmp.ne.s32.totalorder %s170, %s172
      %p179 = scmp.eq.s32.totalorder %s36, 1
      %p180 = por %p178, %p179
      %p181 = scmp.ne.s32.totalorder %s172, %s173
      %p182 = scmp.eq.s32.totalorder %s36, 0
      %p183 = por %p181, %p182
      %p184 = scmp.ne.s32.totalorder %s172, %s173
      %p185 = scmp.eq.s32.totalorder %s37, 1
      %p186 = por %p184, %p185
      %p188 = scmp.ne.s32.totalorder %s173, %s187
      %p189 = scmp.eq.s32.totalorder %s37, 0
      %p190 = por %p188, %p189
      %s192 = sadd.s32 %s191, 1
      %p195 = scmp.eq.s32.totalorder %s31, 1
      %p196 = scmp.ne.s32.totalorder %s191, %s193
      %p197 = scmp.eq.s32.totalorder %s31, 0
      %p198 = por %p196, %p197
      %p199 = scmp.ne.s32.totalorder %s191, %s193
      %p200 = scmp.eq.s32.totalorder %s36, 1
      %p201 = por %p199, %p200
      %p202 = scmp.ne.s32.totalorder %s193, %s194
      %p203 = scmp.eq.s32.totalorder %s36, 0
      %p204 = por %p202, %p203
      %p205 = scmp.ne.s32.totalorder %s193, %s194
      %p206 = scmp.eq.s32.totalorder %s37, 1
      %p207 = por %p205, %p206
      %p209 = scmp.ne.s32.totalorder %s194, %s208
      %p210 = scmp.eq.s32.totalorder %s37, 0
      %p211 = por %p209, %p210
      %s213 = sadd.s32 %s212, 1
      %p216 = scmp.eq.s32.totalorder %s31, 1
      %p217 = scmp.ne.s32.totalorder %s212, %s214
      %p218 = scmp.eq.s32.totalorder %s31, 0
      %p219 = por %p217, %p218
      %p220 = scmp.ne.s32.totalorder %s212, %s214
      %p221 = scmp.eq.s32.totalorder %s36, 1
      %p222 = por %p220, %p221
      %p223 = scmp.ne.s32.totalorder %s214, %s215
      %p224 = scmp.eq.s32.totalorder %s36, 0
      %p225 = por %p223, %p224
      %p226 = scmp.ne.s32.totalorder %s214, %s215
      %p227 = scmp.eq.s32.totalorder %s37, 1
      %p228 = por %p226, %p227
      %p230 = scmp.ne.s32.totalorder %s215, %s229
      %p231 = scmp.eq.s32.totalorder %s37, 0
      %p232 = por %p230, %p231
      %s233 = ssub.s32 %s31, %s38
      %p234 = scmp.eq.s32.totalorder %s233, 0
      %s236 = sadd.s32 %s235, 1
      %s237 = scalar_select %p234, %s235, %s236
      %p240 = pneg %p234
      %p241 = scmp.eq.s32.totalorder %s31, 1
      %p242 = por %p240, %p241
      %p243 = scmp.ne.s32.totalorder %s235, %s238
      %p244 = scmp.eq.s32.totalorder %s31, 0
      %p245 = por %p243, %p244
      %p246 = scmp.ne.s32.totalorder %s235, %s238
      %p247 = scmp.eq.s32.totalorder %s36, 1
      %p248 = por %p246, %p247
      %p249 = scmp.ne.s32.totalorder %s238, %s239
      %p250 = scmp.eq.s32.totalorder %s36, 0
      %p251 = por %p249, %p250
      %p252 = scmp.ne.s32.totalorder %s238, %s239
      %p253 = scmp.eq.s32.totalorder %s37, 1
      %p254 = por %p252, %p253
      %p256 = scmp.ne.s32.totalorder %s239, %s255
      %p257 = scmp.eq.s32.totalorder %s37, 0
      %p258 = por %p256, %p257
      %s259 = ssub.s32 %s31, %s38
      %p260 = scmp.eq.s32.totalorder %s259, 0
      %s262 = sadd.s32 %s261, 1
      %s263 = scalar_select %p260, %s261, %s262
      %p266 = pneg %p260
      %p267 = scmp.eq.s32.totalorder %s31, 1
      %p268 = por %p266, %p267
      %p269 = scmp.ne.s32.totalorder %s261, %s264
      %p270 = scmp.eq.s32.totalorder %s31, 0
      %p271 = por %p269, %p270
      %p272 = scmp.ne.s32.totalorder %s261, %s264
      %p273 = scmp.eq.s32.totalorder %s36, 1
      %p274 = por %p272, %p273
      %p275 = scmp.ne.s32.totalorder %s264, %s265
      %p276 = scmp.eq.s32.totalorder %s36, 0
      %p277 = por %p275, %p276
      %p278 = scmp.ne.s32.totalorder %s264, %s265
      %p279 = scmp.eq.s32.totalorder %s37, 1
      %p280 = por %p278, %p279
      %p282 = scmp.ne.s32.totalorder %s265, %s281
      %p283 = scmp.eq.s32.totalorder %s37, 0
      %p284 = por %p282, %p283
      %s285 = ssub.s32 %s31, %s38
      %p286 = scmp.eq.s32.totalorder %s285, 0
      %s288 = sadd.s32 %s287, 1
      %s289 = scalar_select %p286, %s287, %s288
      %p292 = pneg %p286
      %p293 = scmp.eq.s32.totalorder %s31, 1
      %p294 = por %p292, %p293
      %p295 = scmp.ne.s32.totalorder %s287, %s290
      %p296 = scmp.eq.s32.totalorder %s31, 0
      %p297 = por %p295, %p296
      %p298 = scmp.ne.s32.totalorder %s287, %s290
      %p299 = scmp.eq.s32.totalorder %s36, 1
      %p300 = por %p298, %p299
      %p301 = scmp.ne.s32.totalorder %s290, %s291
      %p302 = scmp.eq.s32.totalorder %s36, 0
      %p303 = por %p301, %p302
      %p304 = scmp.ne.s32.totalorder %s290, %s291
      %p305 = scmp.eq.s32.totalorder %s37, 1
      %p306 = por %p304, %p305
      %p308 = scmp.ne.s32.totalorder %s291, %s307
      %p309 = scmp.eq.s32.totalorder %s37, 0
      %p310 = por %p308, %p309
      %p311 = scmp.le.s32.totalorder 1, %s31
      %p312 = scmp.lt.s32.totalorder %s31, 3
      %p313 = pnand %p311, %p312
      %p314 = pneg %p313
      // Predicated region
      $region9: #{tpu_custom_call.1} parent=5 // pred_check
        _
      $region10: #{tpu_custom_call.1} parent=5 // pred_check_branch
        %316 = sbr.rel (%p313) target = $region12
      $region11: #{tpu_custom_call.1} parent=5 // pred_region
        %s317 = ssub.s32 %s31, 1
        // Predicated region
        $region13: #{tpu_custom_call.1} parent=11 // pred_check
          %p318 = pneg %p78
        $region14: #{tpu_custom_call.1} parent=11 // pred_check_branch
          %320 = sbr.rel (%p318) target = $region16
        $region15: #{tpu_custom_call.1} parent=11 // pred_region
          %s322 = ssub.s32 768, 768
          %323 = vsyncadd [#allocation7], %s322
          %s324 = sshll.u32 [#allocation6], 4
          %s325 = int_to_ptr.vmem [resolvable:$true] %s324
          %330 = dma.hbm_to_vmem [thread:$0]  %s1, 768, %s325, [#allocation7], 64, 64, 4
        $region16: #{tpu_custom_call.1} parent=11 // pred_fallthru
          _
        // Predicated region
        $region17: #{tpu_custom_call.1} parent=11 // pred_check
          %p331 = pneg %p99
        $region18: #{tpu_custom_call.1} parent=11 // pred_check_branch
          %333 = sbr.rel (%p331) target = $region20
        $region19: #{tpu_custom_call.1} parent=11 // pred_region
          %s335 = ssub.s32 16, 16
          %336 = vsyncadd [#allocation7], %s335
          %s338 = sshll.u32 [#allocation8], 4
          %s339 = int_to_ptr.vmem [resolvable:$true] %s338
          %341 = dma.hbm_to_vmem [thread:$0]  %s2, 16, %s339, [#allocation7]
        $region20: #{tpu_custom_call.1} parent=11 // pred_fallthru
          _
        // Predicated region
        $region21: #{tpu_custom_call.1} parent=11 // pred_check
          %p342 = pneg %p120
        $region22: #{tpu_custom_call.1} parent=11 // pred_check_branch
          %344 = sbr.rel (%p342) target = $region24
        $region23: #{tpu_custom_call.1} parent=11 // pred_region
          %s346 = ssub.s32 1024, 1024
          %347 = vsyncadd [#allocation10], %s346
          %s348 = sshll.u32 [#allocation9], 4
          %s349 = int_to_ptr.vmem [resolvable:$true] %s348
          %354 = dma.hbm_to_vmem [thread:$0]  %s3, 1024, %s349, [#allocation10], 64, 64, 4
        $region24: #{tpu_custom_call.1} parent=11 // pred_fallthru
          _
        // Predicated region
        $region25: #{tpu_custom_call.1} parent=11 // pred_check
          %p355 = pneg %p141
        $region26: #{tpu_custom_call.1} parent=11 // pred_check_branch
          %357 = sbr.rel (%p355) target = $region28
        $region27: #{tpu_custom_call.1} parent=11 // pred_region
          %s359 = ssub.s32 16, 16
          %360 = vsyncadd [#allocation10], %s359
          %s362 = sshll.u32 [#allocation11], 4
          %s363 = int_to_ptr.vmem [resolvable:$true] %s362
          %365 = dma.hbm_to_vmem [thread:$0]  %s4, 16, %s363, [#allocation10]
        $region28: #{tpu_custom_call.1} parent=11 // pred_fallthru
          _
        // Predicated region
        $region29: #{tpu_custom_call.1} parent=11 // pred_check
          %p366 = pneg %p162
        $region30: #{tpu_custom_call.1} parent=11 // pred_check_branch
          %368 = sbr.rel (%p366) target = $region32
        $region31: #{tpu_custom_call.1} parent=11 // pred_region
          %s370 = ssub.s32 1024, 1024
          %371 = vsyncadd [#allocation13], %s370
          %s372 = sshll.u32 [#allocation12], 4
          %s373 = int_to_ptr.vmem [resolvable:$true] %s372
          %378 = dma.hbm_to_vmem [thread:$0]  %s5, 1024, %s373, [#allocation13], 64, 64, 4
        $region32: #{tpu_custom_call.1} parent=11 // pred_fallthru
          _
        // Predicated region
        $region33: #{tpu_custom_call.1} parent=11 // pred_check
          %p379 = pneg %p183
        $region34: #{tpu_custom_call.1} parent=11 // pred_check_branch
          %381 = sbr.rel (%p379) target = $region36
        $region35: #{tpu_custom_call.1} parent=11 // pred_region
          %s383 = ssub.s32 16, 16
          %384 = vsyncadd [#allocation13], %s383
          %s386 = sshll.u32 [#allocation14], 4
          %s387 = int_to_ptr.vmem [resolvable:$true] %s386
          %389 = dma.hbm_to_vmem [thread:$0]  %s6, 16, %s387, [#allocation13]
        $region36: #{tpu_custom_call.1} parent=11 // pred_fallthru
          _
        // Predicated region
        $region37: #{tpu_custom_call.1} parent=11 // pred_check
          %p390 = pneg %p204
        $region38: #{tpu_custom_call.1} parent=11 // pred_check_branch
          %392 = sbr.rel (%p390) target = $region40
        $region39: #{tpu_custom_call.1} parent=11 // pred_region
          %s394 = ssub.s32 1024, 1024
          %395 = vsyncadd [#allocation16], %s394
          %s396 = sshll.u32 [#allocation15], 4
          %s397 = int_to_ptr.vmem [resolvable:$true] %s396
          %402 = dma.hbm_to_vmem [thread:$0]  %s7, 1024, %s397, [#allocation16], 64, 64, 4
        $region40: #{tpu_custom_call.1} parent=11 // pred_fallthru
          _
        // Predicated region
        $region41: #{tpu_custom_call.1} parent=11 // pred_check
          %p403 = pneg %p225
        $region42: #{tpu_custom_call.1} parent=11 // pred_check_branch
          %405 = sbr.rel (%p403) target = $region44
        $region43: #{tpu_custom_call.1} parent=11 // pred_region
          %s407 = ssub.s32 16, 16
          %408 = vsyncadd [#allocation16], %s407
          %s410 = sshll.u32 [#allocation17], 4
          %s411 = int_to_ptr.vmem [resolvable:$true] %s410
          %413 = dma.hbm_to_vmem [thread:$0]  %s8, 16, %s411, [#allocation16]
        $region44: #{tpu_custom_call.1} parent=11 // pred_fallthru
          _
      $region12: #{tpu_custom_call.1} parent=5 // pred_fallthru
        _
      %p414 = scmp.lt.s32.totalorder %s31, 2
      // Predicated region
      $region45: #{tpu_custom_call.1} parent=5 // pred_check
        %p415 = pneg %p414
      $region46: #{tpu_custom_call.1} parent=5 // pred_check_branch
        %417 = sbr.rel (%p415) target = $region48
      $region47: #{tpu_custom_call.1} parent=5 // pred_region
        // Predicated region
        $region49: #{tpu_custom_call.1} parent=47 // pred_check
          %p418 = pneg %p51
        $region50: #{tpu_custom_call.1} parent=47 // pred_check_branch
          %420 = sbr.rel (%p418) target = $region52
        $region51: #{tpu_custom_call.1} parent=47 // pred_region
          %s421 = sand.u32 %s41, 1
          %s422 = scalar_lea.sflag [#allocation4], %s421
          %s423 = sand.u32 %s41, 1
          %s424 = smul.addr %s423, 128
          %s425 = scalar_lea.vmem [#allocation3], %s424
          %s426 = smul.u32 8, %s31
          %s428 = ssub.s32 2048, 2048
          %429 = vsyncadd %s422, %s428
          %s430 = smul.addr %s426, 4
          %s431 = smul.addr %s430, 64
          %s432 = scalar_lea.hbm %s0, %s431
          %s433 = sshll.u32 %s425, 4
          %s434 = int_to_ptr.vmem [resolvable:$true] %s433
          %439 = dma.hbm_to_vmem [thread:$0]  %s432, 2048, %s434, %s422, 64, 64, 4
        $region52: #{tpu_custom_call.1} parent=47 // pred_fallthru
          _
      $region48: #{tpu_custom_call.1} parent=5 // pred_fallthru
        _
      %p440 = scmp.le.s32.totalorder 1, %s31
      %p441 = scmp.lt.s32.totalorder %s31, 3
      %p442 = pnand %p440, %p441
      %p443 = pneg %p442
      // Predicated region
      $region53: #{tpu_custom_call.1} parent=5 // pred_check
        _
      $region54: #{tpu_custom_call.1} parent=5 // pred_check_branch
        %445 = sbr.rel (%p442) target = $region56
      $region55: #{tpu_custom_call.1} parent=5 // pred_region
        %s446 = ssub.s32 %s31, 1
        %s447 = sand.u32 %s44, 1
        %s448 = scalar_lea.sflag [#allocation4], %s447
        %s449 = sand.u32 %s44, 1
        %s450 = smul.addr %s449, 128
        %s451 = scalar_lea.vmem [#allocation3], %s450
        // Predicated region
        $region57: #{tpu_custom_call.1} parent=55 // pred_check
          %p452 = pneg %p57
        $region58: #{tpu_custom_call.1} parent=55 // pred_check_branch
          %454 = sbr.rel (%p452) target = $region60
        $region59: #{tpu_custom_call.1} parent=55 // pred_region
          %455 = dma.done %s448, 2048
        $region60: #{tpu_custom_call.1} parent=55 // pred_fallthru
          _
        // Predicated region
        $region61: #{tpu_custom_call.1} parent=55 // pred_check
          %p456 = pneg %p78
        $region62: #{tpu_custom_call.1} parent=55 // pred_check_branch
          %458 = sbr.rel (%p456) target = $region64
        $region63: #{tpu_custom_call.1} parent=55 // pred_region
          %459 = dma.done [#allocation7], 768
        $region64: #{tpu_custom_call.1} parent=55 // pred_fallthru
          _
        // Predicated region
        $region65: #{tpu_custom_call.1} parent=55 // pred_check
          %p460 = pneg %p99
        $region66: #{tpu_custom_call.1} parent=55 // pred_check_branch
          %462 = sbr.rel (%p460) target = $region68
        $region67: #{tpu_custom_call.1} parent=55 // pred_region
          %463 = dma.done [#allocation7], 16
        $region68: #{tpu_custom_call.1} parent=55 // pred_fallthru
          _
        // Predicated region
        $region69: #{tpu_custom_call.1} parent=55 // pred_check
          %p464 = pneg %p120
        $region70: #{tpu_custom_call.1} parent=55 // pred_check_branch
          %466 = sbr.rel (%p464) target = $region72
        $region71: #{tpu_custom_call.1} parent=55 // pred_region
          %467 = dma.done [#allocation10], 1024
        $region72: #{tpu_custom_call.1} parent=55 // pred_fallthru
          _
        // Predicated region
        $region73: #{tpu_custom_call.1} parent=55 // pred_check
          %p468 = pneg %p141
        $region74: #{tpu_custom_call.1} parent=55 // pred_check_branch
          %470 = sbr.rel (%p468) target = $region76
        $region75: #{tpu_custom_call.1} parent=55 // pred_region
          %471 = dma.done [#allocation10], 16
        $region76: #{tpu_custom_call.1} parent=55 // pred_fallthru
          _
        // Predicated region
        $region77: #{tpu_custom_call.1} parent=55 // pred_check
          %p472 = pneg %p162
        $region78: #{tpu_custom_call.1} parent=55 // pred_check_branch
          %474 = sbr.rel (%p472) target = $region80
        $region79: #{tpu_custom_call.1} parent=55 // pred_region
          %475 = dma.done [#allocation13], 1024
        $region80: #{tpu_custom_call.1} parent=55 // pred_fallthru
          _
        // Predicated region
        $region81: #{tpu_custom_call.1} parent=55 // pred_check
          %p476 = pneg %p183
        $region82: #{tpu_custom_call.1} parent=55 // pred_check_branch
          %478 = sbr.rel (%p476) target = $region84
        $region83: #{tpu_custom_call.1} parent=55 // pred_region
          %479 = dma.done [#allocation13], 16
        $region84: #{tpu_custom_call.1} parent=55 // pred_fallthru
          _
        // Predicated region
        $region85: #{tpu_custom_call.1} parent=55 // pred_check
          %p480 = pneg %p204
        $region86: #{tpu_custom_call.1} parent=55 // pred_check_branch
          %482 = sbr.rel (%p480) target = $region88
        $region87: #{tpu_custom_call.1} parent=55 // pred_region
          %483 = dma.done [#allocation16], 1024
        $region88: #{tpu_custom_call.1} parent=55 // pred_fallthru
          _
        // Predicated region
        $region89: #{tpu_custom_call.1} parent=55 // pred_check
          %p484 = pneg %p225
        $region90: #{tpu_custom_call.1} parent=55 // pred_check_branch
          %486 = sbr.rel (%p484) target = $region92
        $region91: #{tpu_custom_call.1} parent=55 // pred_region
          %487 = dma.done [#allocation16], 16
        $region92: #{tpu_custom_call.1} parent=55 // pred_fallthru
          _
        %s488 = sand.u32 %s44, 1
        %s489 = scalar_lea.sflag [#allocation4], %s488
        %s490 = sand.u32 %s44, 1
        %s491 = smul.addr %s490, 128
        %s492 = scalar_lea.vmem [#allocation3], %s491
        %p493 = pneg %p57
        %p494 = pneg %p54
        %p495 = pneg %p78
        %p496 = pneg %p75
        %p497 = pneg %p99
        %p498 = pneg %p96
        %p499 = pneg %p120
        %p500 = pneg %p117
        %p501 = pneg %p141
        %p502 = pneg %p138
        %p503 = pneg %p162
        %p504 = pneg %p159
        %p505 = pneg %p183
        %p506 = pneg %p180
        %p507 = pneg %p204
        %p508 = pneg %p201
        %p509 = pneg %p225
        %p510 = pneg %p222
        %p511 = pneg %p251
        %p512 = pneg %p248
        %s513 = sand.u32 %s238, 1
        %s514 = scalar_lea.sflag [#allocation5], %s513
        %s515 = sand.u32 %s238, 1
        %s516 = smul.addr %s515, 8
        %s517 = scalar_lea.vmem [#allocation18], %s516
        %p518 = pneg %p277
        %p519 = pneg %p274
        %s520 = sand.u32 %s36, 1
        %s521 = scalar_lea.sflag [#allocation20], %s520
        %s522 = sand.u32 %s264, 1
        %s523 = smul.addr %s522, 8
        %s524 = scalar_lea.vmem [#allocation19], %s523
        %p525 = pneg %p303
        %p526 = pneg %p300
        %s527 = sand.u32 %s36, 1
        %s528 = scalar_lea.sflag [#allocation20], %s527
        %s529 = sand.u32 %s290, 1
        %s530 = smul.addr %s529, 8
        %s531 = scalar_lea.vmem [#allocation21], %s530
        %s532 = smul.u32 8, %s36
        %v534 = vld [vmem:[%s451] sm:$0xf]
        %v535 = vld [vmem:[%s451 + $0x4] sm:$0xf]
        %v536 = vld [vmem:[%s451 + $0x10] sm:$0xf]
        %v537 = vld [vmem:[%s451 + $0x14] sm:$0xf]
        %v538 = vld [vmem:[%s451 + $0x20] sm:$0xf]
        %v539 = vld [vmem:[%s451 + $0x24] sm:$0xf]
        %v540 = vld [vmem:[%s451 + $0x30] sm:$0xf]
        %v541 = vld [vmem:[%s451 + $0x34] sm:$0xf]
        %v542 = vld [vmem:[%s451 + $0x40] sm:$0xf]
        %v543 = vld [vmem:[%s451 + $0x44] sm:$0xf]
        %v544 = vld [vmem:[%s451 + $0x50] sm:$0xf]
        %v545 = vld [vmem:[%s451 + $0x54] sm:$0xf]
        %v546 = vld [vmem:[%s451 + $0x60] sm:$0xf]
        %v547 = vld [vmem:[%s451 + $0x64] sm:$0xf]
        %v548 = vld [vmem:[%s451 + $0x70] sm:$0xf]
        %v549 = vld [vmem:[%s451 + $0x74] sm:$0xf]
        %v550 = vld [vmem:[%s451 + $0x8] sm:$0x1]
        %v551 = vld [vmem:[%s451 + $0x18] sm:$0x1]
        %v552 = vld [vmem:[%s451 + $0x28] sm:$0x1]
        %v553 = vld [vmem:[%s451 + $0x38] sm:$0x1]
        %v554 = vld [vmem:[%s451 + $0x48] sm:$0x1]
        %v555 = vld [vmem:[%s451 + $0x58] sm:$0x1]
        %v556 = vld [vmem:[%s451 + $0x68] sm:$0x1]
        %v557 = vld [vmem:[%s451 + $0x78] sm:$0x1]
        %v558 = vld [vmem:[%s451] sm:$0xe]
        %v559 = vld [vmem:[%s451 + $0x10] sm:$0xe]
        %v560 = vld [vmem:[%s451 + $0x20] sm:$0xe]
        %v561 = vld [vmem:[%s451 + $0x30] sm:$0xe]
        %v562 = vld [vmem:[%s451 + $0x40] sm:$0xe]
        %v563 = vld [vmem:[%s451 + $0x50] sm:$0xe]
        %v564 = vld [vmem:[%s451 + $0x60] sm:$0xe]
        %v565 = vld [vmem:[%s451 + $0x70] sm:$0xe]
        %v582 = vunpack.c.l.b16 %v534
        %v583 = vunpack.c.l.b16 %v535
        %v584 = vunpack.c.l.b16 %v536
        %v585 = vunpack.c.l.b16 %v537
        %v586 = vunpack.c.l.b16 %v538
        %v587 = vunpack.c.l.b16 %v539
        %v588 = vunpack.c.l.b16 %v540
        %v589 = vunpack.c.l.b16 %v541
        %v590 = vunpack.c.l.b16 %v542
        %v591 = vunpack.c.l.b16 %v543
        %v592 = vunpack.c.l.b16 %v544
        %v593 = vunpack.c.l.b16 %v545
        %v594 = vunpack.c.l.b16 %v546
        %v595 = vunpack.c.l.b16 %v547
        %v596 = vunpack.c.l.b16 %v548
        %v597 = vunpack.c.l.b16 %v549
        %v598 = vpack.c.b16 %v583, %v582
        %v599 = vpack.c.b16 %v585, %v584
        %v600 = vpack.c.b16 %v587, %v586
        %v601 = vpack.c.b16 %v589, %v588
        %v602 = vpack.c.b16 %v591, %v590
        %v603 = vpack.c.b16 %v593, %v592
        %v604 = vpack.c.b16 %v595, %v594
        %v605 = vpack.c.b16 %v597, %v596
        %v614 = vunpack.c.l.b16 %v550
        %v615 = vunpack.c.l.b16 %v551
        %v616 = vunpack.c.l.b16 %v552
        %v617 = vunpack.c.l.b16 %v553
        %v618 = vunpack.c.l.b16 %v554
        %v619 = vunpack.c.l.b16 %v555
        %v620 = vunpack.c.l.b16 %v556
        %v621 = vunpack.c.l.b16 %v557
        %v622 = vpack.c.b16 %v614, %v614
        %v623 = vpack.c.b16 %v615, %v615
        %v624 = vpack.c.b16 %v616, %v616
        %v625 = vpack.c.b16 %v617, %v617
        %v626 = vpack.c.b16 %v618, %v618
        %v627 = vpack.c.b16 %v619, %v619
        %v628 = vpack.c.b16 %v620, %v620
        %v629 = vpack.c.b16 %v621, %v621
        %vm630 = vsmask.f32 7424
        %v632 = vshrl.u32 %v598, 16
        %v634 = vshll.u32 %v598, 16
        %v636 = vrot.slane %v634, 1
        %v637 = vor.u32 %v632, %v636
        %v639 = vshll.u32 %v622, 16
        %v641 = vrot.slane %v639, 1
        %v642 = vsel %vm630, %v637, %v641
        %v644 = vshrl.u32 %v599, 16
        %v646 = vshll.u32 %v599, 16
        %v648 = vrot.slane %v646, 1
        %v649 = vor.u32 %v644, %v648
        %v651 = vshll.u32 %v623, 16
        %v653 = vrot.slane %v651, 1
        %v654 = vsel %vm630, %v649, %v653
        %v656 = vshrl.u32 %v600, 16
        %v658 = vshll.u32 %v600, 16
        %v660 = vrot.slane %v658, 1
        %v661 = vor.u32 %v656, %v660
        %v663 = vshll.u32 %v624, 16
        %v665 = vrot.slane %v663, 1
        %v666 = vsel %vm630, %v661, %v665
        %v668 = vshrl.u32 %v601, 16
        %v670 = vshll.u32 %v601, 16
        %v672 = vrot.slane %v670, 1
        %v673 = vor.u32 %v668, %v672
        %v675 = vshll.u32 %v625, 16
        %v677 = vrot.slane %v675, 1
        %v678 = vsel %vm630, %v673, %v677
        %v680 = vshrl.u32 %v602, 16
        %v682 = vshll.u32 %v602, 16
        %v684 = vrot.slane %v682, 1
        %v685 = vor.u32 %v680, %v684
        %v687 = vshll.u32 %v626, 16
        %v689 = vrot.slane %v687, 1
        %v690 = vsel %vm630, %v685, %v689
        %v692 = vshrl.u32 %v603, 16
        %v694 = vshll.u32 %v603, 16
        %v696 = vrot.slane %v694, 1
        %v697 = vor.u32 %v692, %v696
        %v699 = vshll.u32 %v627, 16
        %v701 = vrot.slane %v699, 1
        %v702 = vsel %vm630, %v697, %v701
        %v704 = vshrl.u32 %v604, 16
        %v706 = vshll.u32 %v604, 16
        %v708 = vrot.slane %v706, 1
        %v709 = vor.u32 %v704, %v708
        %v711 = vshll.u32 %v628, 16
        %v713 = vrot.slane %v711, 1
        %v714 = vsel %vm630, %v709, %v713
        %v716 = vshrl.u32 %v605, 16
        %v718 = vshll.u32 %v605, 16
        %v720 = vrot.slane %v718, 1
        %v721 = vor.u32 %v716, %v720
        %v723 = vshll.u32 %v629, 16
        %v725 = vrot.slane %v723, 1
        %v726 = vsel %vm630, %v721, %v725
        %727 = vrot.lane.b32.xlu0 %v642, 32
        %v728 = vpop.permute.xlu0 %727
        %729 = vrot.lane.b32.xlu0 %v654, 32
        %v730 = vpop.permute.xlu0 %729
        %731 = vrot.lane.b32.xlu0 %v666, 32
        %v732 = vpop.permute.xlu0 %731
        %733 = vrot.lane.b32.xlu0 %v678, 32
        %v734 = vpop.permute.xlu0 %733
        %735 = vrot.lane.b32.xlu0 %v690, 32
        %v736 = vpop.permute.xlu0 %735
        %737 = vrot.lane.b32.xlu0 %v702, 32
        %v738 = vpop.permute.xlu0 %737
        %739 = vrot.lane.b32.xlu0 %v714, 32
        %v740 = vpop.permute.xlu0 %739
        %741 = vrot.lane.b32.xlu0 %v726, 32
        %v742 = vpop.permute.xlu0 %741
        %v751 = vunpack.c.l.b16 %v558
        %v752 = vunpack.c.l.b16 %v559
        %v753 = vunpack.c.l.b16 %v560
        %v754 = vunpack.c.l.b16 %v561
        %v755 = vunpack.c.l.b16 %v562
        %v756 = vunpack.c.l.b16 %v563
        %v757 = vunpack.c.l.b16 %v564
        %v758 = vunpack.c.l.b16 %v565
        %v759 = vpack.c.b16 %v583, %v751
        %v760 = vpack.c.b16 %v585, %v752
        %v761 = vpack.c.b16 %v587, %v753
        %v762 = vpack.c.b16 %v589, %v754
        %v763 = vpack.c.b16 %v591, %v755
        %v764 = vpack.c.b16 %v593, %v756
        %v765 = vpack.c.b16 %v595, %v757
        %v766 = vpack.c.b16 %v597, %v758
        %vm767 = vcmask 1046528
        %v768 = vrot.slane %v759, 1
        %v769 = vrot.slane %v622, 1
        %v770 = vsel %vm767, %v768, %v769
        %v771 = vrot.slane %v760, 1
        %v772 = vrot.slane %v623, 1
        %v773 = vsel %vm767, %v771, %v772
        %v774 = vrot.slane %v761, 1
        %v775 = vrot.slane %v624, 1
        %v776 = vsel %vm767, %v774, %v775
        %v777 = vrot.slane %v762, 1
        %v778 = vrot.slane %v625, 1
        %v779 = vsel %vm767, %v777, %v778
        %v780 = vrot.slane %v763, 1
        %v781 = vrot.slane %v626, 1
        %v782 = vsel %vm767, %v780, %v781
        %v783 = vrot.slane %v764, 1
        %v784 = vrot.slane %v627, 1
        %v785 = vsel %vm767, %v783, %v784
        %v786 = vrot.slane %v765, 1
        %v787 = vrot.slane %v628, 1
        %v788 = vsel %vm767, %v786, %v787
        %v789 = vrot.slane %v766, 1
        %v790 = vrot.slane %v629, 1
        %v791 = vsel %vm767, %v789, %v790
        %792 = vrot.lane.b32.xlu0 %v770, 64
        %v793 = vpop.permute.xlu0 %792
        %794 = vrot.lane.b32.xlu0 %v773, 64
        %v795 = vpop.permute.xlu0 %794
        %796 = vrot.lane.b32.xlu0 %v776, 64
        %v797 = vpop.permute.xlu0 %796
        %798 = vrot.lane.b32.xlu0 %v779, 64
        %v799 = vpop.permute.xlu0 %798
        %800 = vrot.lane.b32.xlu0 %v782, 64
        %v801 = vpop.permute.xlu0 %800
        %802 = vrot.lane.b32.xlu0 %v785, 64
        %v803 = vpop.permute.xlu0 %802
        %804 = vrot.lane.b32.xlu0 %v788, 64
        %v805 = vpop.permute.xlu0 %804
        %806 = vrot.lane.b32.xlu0 %v791, 64
        %v807 = vpop.permute.xlu0 %806
        %vm808 = vcmask 261120
        %v810 = vsel %vm808, %v598, %v728
        %v812 = vsel %vm808, %v599, %v730
        %v814 = vsel %vm808, %v600, %v732
        %v816 = vsel %vm808, %v601, %v734
        %v818 = vsel %vm808, %v602, %v736
        %v820 = vsel %vm808, %v603, %v738
        %v822 = vsel %vm808, %v604, %v740
        %v824 = vsel %vm808, %v605, %v742
        %vm825 = vcmask 523264
        %v827 = vsel %vm825, %v810, %v793
        %v829 = vsel %vm825, %v812, %v795
        %v831 = vsel %vm825, %v814, %v797
        %v833 = vsel %vm825, %v816, %v799
        %v835 = vsel %vm825, %v818, %v801
        %v837 = vsel %vm825, %v820, %v803
        %v839 = vsel %vm825, %v822, %v805
        %v841 = vsel %vm825, %v824, %v807
        %v842 = vld [vmem:[#allocation6] sm:$0xf]
        %v843 = vld [vmem:[#allocation6 + $0x4] sm:$0xf]
        %v844 = vld [vmem:[#allocation6 + $0x8] sm:$0xf]
        %v845 = vld [vmem:[#allocation6 + $0xc] sm:$0xf]
        %v846 = vld [vmem:[#allocation6 + $0x10] sm:$0xf]
        %v847 = vld [vmem:[#allocation6 + $0x14] sm:$0xf]
        %v848 = vld [vmem:[#allocation6 + $0x18] sm:$0xf]
        %v849 = vld [vmem:[#allocation6 + $0x1c] sm:$0xf]
        %v850 = vld [vmem:[#allocation6 + $0x20] sm:$0xf]
        %v851 = vld [vmem:[#allocation6 + $0x24] sm:$0xf]
        %v852 = vld [vmem:[#allocation6 + $0x28] sm:$0xf]
        %v853 = vld [vmem:[#allocation6 + $0x2c] sm:$0xf]
        %v866 = vunpack.c.l.b16 %v842
        %v867 = vunpack.c.l.b16 %v843
        %v868 = vunpack.c.l.b16 %v844
        %v869 = vunpack.c.l.b16 %v845
        %v870 = vunpack.c.l.b16 %v846
        %v871 = vunpack.c.l.b16 %v847
        %v872 = vunpack.c.l.b16 %v848
        %v873 = vunpack.c.l.b16 %v849
        %v874 = vunpack.c.l.b16 %v850
        %v875 = vunpack.c.l.b16 %v851
        %v876 = vunpack.c.l.b16 %v852
        %v877 = vunpack.c.l.b16 %v853
        %v878 = vpack.c.b16 %v867, %v866
        %v879 = vpack.c.b16 %v869, %v868
        %v880 = vpack.c.b16 %v871, %v870
        %v881 = vpack.c.b16 %v873, %v872
        %v882 = vpack.c.b16 %v875, %v874
        %v883 = vpack.c.b16 %v877, %v876
        %vm890 = vcmask 785408
        %v891 = vsel %vm890, %v827, 0
        %v893 = vsel %vm890, %v829, 0
        %v895 = vsel %vm890, %v831, 0
        %v897 = vsel %vm890, %v833, 0
        %v899 = vsel %vm890, %v835, 0
        %v901 = vsel %vm890, %v837, 0
        %v903 = vsel %vm890, %v839, 0
        %v905 = vsel %vm890, %v841, 0
        %907 = vmatprep.subr.bf16.mxu0 0
        %908 = vmatpush1.bf16.msra.mxu0 %v878
        %909 = vmatprep.subr.bf16.mxu0 0
        %910 = vmatpush1.bf16.msra.mxu0 %v879
        %911 = vmatprep.subr.bf16.mxu0 0
        %912 = vmatpush1.bf16.msra.mxu0 %v880
        %913 = vmatprep.subr.bf16.mxu0 0
        %914 = vmatpush1.bf16.msra.mxu0 %v881
        %915 = vmatprep.subr.bf16.mxu0 0
        %916 = vmatpush1.bf16.msra.mxu0 %v882
        %917 = vmatprep.subr.bf16.mxu0 0
        %918 = vmatpush1.bf16.msra.mxu0 %v883
        %919 = vmatprep.subr.bf16.mxu0 0
        %920 = vmatpush1.bf16.msra.mxu0 0
        %921 = vmatprep.subr.bf16.mxu0 0
        %922 = vmatpush1.bf16.msra.mxu0 0
        %923 = vmatprep.subr.bf16.mxu0 0
        %924 = vmatpush1.bf16.msra.mxu0 0
        %925 = vmatprep.subr.bf16.mxu0 0
        %926 = vmatpush1.bf16.msra.mxu0 0
        %927 = vmatprep.subr.bf16.mxu0 0
        %928 = vmatpush1.bf16.msra.mxu0 0
        %929 = vmatprep.subr.bf16.mxu0 0
        %930 = vmatpush1.bf16.msra.mxu0 0
        %931 = vmatprep.subr.bf16.mxu0 0
        %932 = vmatpush1.bf16.msra.mxu0 0
        %933 = vmatprep.subr.bf16.mxu0 0
        %934 = vmatpush1.bf16.msra.mxu0 0
        %935 = vmatprep.subr.bf16.mxu0 0
        %936 = vmatpush1.bf16.msra.mxu0 0
        %937 = vmatprep.subr.bf16.mxu0 0
        %938 = vmatpush1.bf16.msra.mxu0 0
        %939 = vmatprep.mubr.bf16.mxu0 0
        %940 = vmatmul.mubr.bf16.gmra.mrb[0].mxu0 %v891
        %v941 = vpop.f32.mrb[0].mxu0
        %v942 = vadd.f32 0.0, %v941
        %v943 = vpop.f32.mrb[0].mxu0
        %v944 = vpop.f32.mrb[0].mxu0
        %v945 = vadd.f32 0.0, %v944
        %v946 = vpop.f32.mrb[0].mxu0
        %947 = vmatprep.mubr.bf16.mxu0 0
        %948 = vmatmul.mubr.bf16.gmra.mrb[0].mxu0 %v893
        %v949 = vpop.f32.mrb[0].mxu0
        %v950 = vadd.f32 0.0, %v949
        %v951 = vpop.f32.mrb[0].mxu0
        %v952 = vpop.f32.mrb[0].mxu0
        %v953 = vadd.f32 0.0, %v952
        %v954 = vpop.f32.mrb[0].mxu0
        %955 = vmatprep.mubr.bf16.mxu0 0
        %956 = vmatmul.mubr.bf16.gmra.mrb[0].mxu0 %v895
        %v957 = vpop.f32.mrb[0].mxu0
        %v958 = vadd.f32 0.0, %v957
        %v959 = vpop.f32.mrb[0].mxu0
        %v960 = vpop.f32.mrb[0].mxu0
        %v961 = vadd.f32 0.0, %v960
        %v962 = vpop.f32.mrb[0].mxu0
        %963 = vmatprep.mubr.bf16.mxu0 0
        %964 = vmatmul.mubr.bf16.gmra.mrb[0].mxu0 %v897
        %v965 = vpop.f32.mrb[0].mxu0
        %v966 = vadd.f32 0.0, %v965
        %v967 = vpop.f32.mrb[0].mxu0
        %v968 = vpop.f32.mrb[0].mxu0
        %v969 = vadd.f32 0.0, %v968
        %v970 = vpop.f32.mrb[0].mxu0
        %971 = vmatprep.mubr.bf16.mxu0 0
        %972 = vmatmul.mubr.bf16.gmra.mrb[0].mxu0 %v899
        %v973 = vpop.f32.mrb[0].mxu0
        %v974 = vadd.f32 0.0, %v973
        %v975 = vpop.f32.mrb[0].mxu0
        %v976 = vpop.f32.mrb[0].mxu0
        %v977 = vadd.f32 0.0, %v976
        %v978 = vpop.f32.mrb[0].mxu0
        %979 = vmatprep.mubr.bf16.mxu0 0
        %980 = vmatmul.mubr.bf16.gmra.mrb[0].mxu0 %v901
        %v981 = vpop.f32.mrb[0].mxu0
        %v982 = vadd.f32 0.0, %v981
        %v983 = vpop.f32.mrb[0].mxu0
        %v984 = vpop.f32.mrb[0].mxu0
        %v985 = vadd.f32 0.0, %v984
        %v986 = vpop.f32.mrb[0].mxu0
        %987 = vmatprep.mubr.bf16.mxu0 0
        %988 = vmatmul.mubr.bf16.gmra.mrb[0].mxu0 %v903
        %v989 = vpop.f32.mrb[0].mxu0
        %v990 = vadd.f32 0.0, %v989
        %v991 = vpop.f32.mrb[0].mxu0
        %v992 = vpop.f32.mrb[0].mxu0
        %v993 = vadd.f32 0.0, %v992
        %v994 = vpop.f32.mrb[0].mxu0
        %995 = vmatprep.mubr.bf16.mxu0 0
        %996 = vmatmul.mubr.bf16.gmra.mrb[0].mxu0 %v905
        %v997 = vpop.f32.mrb[0].mxu0
        %v998 = vadd.f32 0.0, %v997
        %v999 = vpop.f32.mrb[0].mxu0
        %v1000 = vpop.f32.mrb[0].mxu0
        %v1001 = vadd.f32 0.0, %v1000
        %v1002 = vpop.f32.mrb[0].mxu0
        %1003 = vdwg.mxu0
        %1004 = vst [vmem:[#allocation2] sm:$0xff] %v942
        %1005 = vst [vmem:[#allocation2 + $0x8] sm:$0xff] %v945
        %1006 = vst [vmem:[#allocation2 + $0x10] sm:$0xff] %v950
        %1007 = vst [vmem:[#allocation2 + $0x18] sm:$0xff] %v953
        %1008 = vst [vmem:[#allocation2 + $0x20] sm:$0xff] %v958
        %1009 = vst [vmem:[#allocation2 + $0x28] sm:$0xff] %v961
        %1010 = vst [vmem:[#allocation2 + $0x30] sm:$0xff] %v966
        %1011 = vst [vmem:[#allocation2 + $0x38] sm:$0xff] %v969
        %1012 = vst [vmem:[#allocation2 + $0x40] sm:$0xff] %v974
        %1013 = vst [vmem:[#allocation2 + $0x48] sm:$0xff] %v977
        %1014 = vst [vmem:[#allocation2 + $0x50] sm:$0xff] %v982
        %1015 = vst [vmem:[#allocation2 + $0x58] sm:$0xff] %v985
        %1016 = vst [vmem:[#allocation2 + $0x60] sm:$0xff] %v990
        %1017 = vst [vmem:[#allocation2 + $0x68] sm:$0xff] %v993
        %1018 = vst [vmem:[#allocation2 + $0x70] sm:$0xff] %v998
        %1019 = vst [vmem:[#allocation2 + $0x78] sm:$0xff] %v1001
        %v1020 = vld [vmem:[#allocation2] sm:$0xff]
        %v1021 = vld [vmem:[#allocation2 + $0x8] sm:$0xff]
        %v1022 = vld [vmem:[#allocation2 + $0x10] sm:$0xff]
        %v1023 = vld [vmem:[#allocation2 + $0x18] sm:$0xff]
        %v1024 = vld [vmem:[#allocation2 + $0x20] sm:$0xff]
        %v1025 = vld [vmem:[#allocation2 + $0x28] sm:$0xff]
        %v1026 = vld [vmem:[#allocation2 + $0x30] sm:$0xff]
        %v1027 = vld [vmem:[#allocation2 + $0x38] sm:$0xff]
        %v1028 = vld [vmem:[#allocation2 + $0x40] sm:$0xff]
        %v1029 = vld [vmem:[#allocation2 + $0x48] sm:$0xff]
        %v1030 = vld [vmem:[#allocation2 + $0x50] sm:$0xff]
        %v1031 = vld [vmem:[#allocation2 + $0x58] sm:$0xff]
        %v1032 = vld [vmem:[#allocation2 + $0x60] sm:$0xff]
        %v1033 = vld [vmem:[#allocation2 + $0x68] sm:$0xff]
        %v1034 = vld [vmem:[#allocation2 + $0x70] sm:$0xff]
        %v1035 = vld [vmem:[#allocation2 + $0x78] sm:$0xff]
        %v1036 = vlaneseq
        %v1037 = vshrl.u32 %v1036, 7
        %v1038 = vadd.s32 %v1037, 8
        %v1039 = vlaneseq
        %v1040 = vand.u32 %v1039, 127
        %vm1041 = vcmp.ge.s32.totalorder %v1040, 0
        %vm1042 = vcmp.lt.s32.totalorder %v1040, 16
        %vm1043 = vmand %vm1041, %vm1042
        %vm1044 = vcmp.lt.s32.totalorder %v1037, 7
        %vm1045 = vcmp.lt.s32.totalorder %v1038, 7
        %vm1046 = vmand %vm1043, %vm1044
        %vm1047 = vmand %vm1043, %vm1045
        %vm1048 = vcmp.ge.s32.totalorder %v1040, 16
        %vm1049 = vcmp.lt.s32.totalorder %v1040, 32
        %vm1050 = vmand %vm1048, %vm1049
        %vm1051 = vcmp.lt.s32.totalorder %v1037, 6
        %vm1052 = vcmp.lt.s32.totalorder %v1038, 6
        %vm1053 = vmand %vm1050, %vm1051
        %vm1054 = vmand %vm1050, %vm1052
        %vm1055 = vmor %vm1046, %vm1053
        %vm1056 = vmor %vm1047, %vm1054
        %v1057 = vsel %vm1055, 0.0, -1e+30
        %v1058 = vsel %vm1056, 0.0, -1e+30
        %v1059 = vadd.f32 %v1020, %v1057
        %v1060 = vadd.f32 %v1021, %v1058
        %v1061 = vadd.f32 %v1022, %v1057
        %v1062 = vadd.f32 %v1023, %v1058
        %v1063 = vadd.f32 %v1024, %v1057
        %v1064 = vadd.f32 %v1025, %v1058
        %v1065 = vadd.f32 %v1026, %v1057
        %v1066 = vadd.f32 %v1027, %v1058
        %v1067 = vadd.f32 %v1028, %v1057
        %v1068 = vadd.f32 %v1029, %v1058
        %v1069 = vadd.f32 %v1030, %v1057
        %v1070 = vadd.f32 %v1031, %v1058
        %v1071 = vadd.f32 %v1032, %v1057
        %v1072 = vadd.f32 %v1033, %v1058
        %v1073 = vadd.f32 %v1034, %v1057
        %v1074 = vadd.f32 %v1035, %v1058
        %v1075 = vmax.f32 %v1059, %v1060
        %v1076 = vrot.slane %v1075, 4
        %v1077 = vmax.f32 %v1075, %v1076
        %v1078 = vrot.slane %v1077, 2
        %v1079 = vmax.f32 %v1077, %v1078
        %v1080 = vrot.slane %v1079, 1
        %v1081 = vmax.f32 %v1079, %v1080
        %v1082 = vmax.f32 %v1061, %v1062
        %v1083 = vrot.slane %v1082, 4
        %v1084 = vmax.f32 %v1082, %v1083
        %v1085 = vrot.slane %v1084, 2
        %v1086 = vmax.f32 %v1084, %v1085
        %v1087 = vrot.slane %v1086, 1
        %v1088 = vmax.f32 %v1086, %v1087
        %v1089 = vmax.f32 %v1063, %v1064
        %v1090 = vrot.slane %v1089, 4
        %v1091 = vmax.f32 %v1089, %v1090
        %v1092 = vrot.slane %v1091, 2
        %v1093 = vmax.f32 %v1091, %v1092
        %v1094 = vrot.slane %v1093, 1
        %v1095 = vmax.f32 %v1093, %v1094
        %v1096 = vmax.f32 %v1065, %v1066
        %v1097 = vrot.slane %v1096, 4
        %v1098 = vmax.f32 %v1096, %v1097
        %v1099 = vrot.slane %v1098, 2
        %v1100 = vmax.f32 %v1098, %v1099
        %v1101 = vrot.slane %v1100, 1
        %v1102 = vmax.f32 %v1100, %v1101
        %v1103 = vmax.f32 %v1067, %v1068
        %v1104 = vrot.slane %v1103, 4
        %v1105 = vmax.f32 %v1103, %v1104
        %v1106 = vrot.slane %v1105, 2
        %v1107 = vmax.f32 %v1105, %v1106
        %v1108 = vrot.slane %v1107, 1
        %v1109 = vmax.f32 %v1107, %v1108
        %v1110 = vmax.f32 %v1069, %v1070
        %v1111 = vrot.slane %v1110, 4
        %v1112 = vmax.f32 %v1110, %v1111
        %v1113 = vrot.slane %v1112, 2
        %v1114 = vmax.f32 %v1112, %v1113
        %v1115 = vrot.slane %v1114, 1
        %v1116 = vmax.f32 %v1114, %v1115
        %v1117 = vmax.f32 %v1071, %v1072
        %v1118 = vrot.slane %v1117, 4
        %v1119 = vmax.f32 %v1117, %v1118
        %v1120 = vrot.slane %v1119, 2
        %v1121 = vmax.f32 %v1119, %v1120
        %v1122 = vrot.slane %v1121, 1
        %v1123 = vmax.f32 %v1121, %v1122
        %v1124 = vmax.f32 %v1073, %v1074
        %v1125 = vrot.slane %v1124, 4
        %v1126 = vmax.f32 %v1124, %v1125
        %v1127 = vrot.slane %v1126, 2
        %v1128 = vmax.f32 %v1126, %v1127
        %v1129 = vrot.slane %v1128, 1
        %v1130 = vmax.f32 %v1128, %v1129
        %v1131 = vld [vmem:[#allocation8] sm:$0x1]
        %v1133 = vlaneseq
        %v1134 = vshrl.u32 %v1133, 7
        %v1135 = vsub.s32 0, %v1134
        %v1136 = vrot.slane %v1131, %v1135
        %v1138 = vadd.f32 %v1081, %v1136
        %v1139 = vadd.f32 %v1088, %v1136
        %v1140 = vadd.f32 %v1095, %v1136
        %v1141 = vadd.f32 %v1102, %v1136
        %v1142 = vadd.f32 %v1109, %v1136
        %v1143 = vadd.f32 %v1116, %v1136
        %v1144 = vadd.f32 %v1123, %v1136
        %v1145 = vadd.f32 %v1130, %v1136
        %v1146 = vmax.f32 %v1138, 0.0
        %v1147 = vmax.f32 %v1139, 0.0
        %v1148 = vmax.f32 %v1140, 0.0
        %v1149 = vmax.f32 %v1141, 0.0
        %v1150 = vmax.f32 %v1142, 0.0
        %v1151 = vmax.f32 %v1143, 0.0
        %v1152 = vmax.f32 %v1144, 0.0
        %v1153 = vmax.f32 %v1145, 0.0
        %v1154 = vpack.c.bf16 %v1146, %v1146
        %v1155 = vpack.c.bf16 %v1147, %v1147
        %v1156 = vpack.c.bf16 %v1148, %v1148
        %v1157 = vpack.c.bf16 %v1149, %v1149
        %v1158 = vpack.c.bf16 %v1150, %v1150
        %v1159 = vpack.c.bf16 %v1151, %v1151
        %v1160 = vpack.c.bf16 %v1152, %v1152
        %v1161 = vpack.c.bf16 %v1153, %v1153
        %v1162 = vld [vmem:[#allocation9] sm:$0xf]
        %v1163 = vld [vmem:[#allocation9 + $0x4] sm:$0xf]
        %v1164 = vld [vmem:[#allocation9 + $0x8] sm:$0xf]
        %v1165 = vld [vmem:[#allocation9 + $0xc] sm:$0xf]
        %v1166 = vld [vmem:[#allocation9 + $0x10] sm:$0xf]
        %v1167 = vld [vmem:[#allocation9 + $0x14] sm:$0xf]
        %v1168 = vld [vmem:[#allocation9 + $0x18] sm:$0xf]
        %v1169 = vld [vmem:[#allocation9 + $0x1c] sm:$0xf]
        %v1170 = vld [vmem:[#allocation9 + $0x20] sm:$0xf]
        %v1171 = vld [vmem:[#allocation9 + $0x24] sm:$0xf]
        %v1172 = vld [vmem:[#allocation9 + $0x28] sm:$0xf]
        %v1173 = vld [vmem:[#allocation9 + $0x2c] sm:$0xf]
        %v1174 = vld [vmem:[#allocation9 + $0x30] sm:$0xf]
        %v1175 = vld [vmem:[#allocation9 + $0x34] sm:$0xf]
        %v1176 = vld [vmem:[#allocation9 + $0x38] sm:$0xf]
        %v1177 = vld [vmem:[#allocation9 + $0x3c] sm:$0xf]
        %v1178 = vld [vmem:[#allocation11] sm:$0x1]
        %v1180 = vlaneseq
        %v1181 = vshrl.u32 %v1180, 7
        %v1182 = vsub.s32 0, %v1181
        %v1183 = vrot.slane %v1178, %v1182
        %v1193 = vunpack.c.l.b16 %v1154
        %v1194 = vunpack.c.l.b16 %v1155
        %v1195 = vunpack.c.l.b16 %v1156
        %v1196 = vunpack.c.l.b16 %v1157
        %v1197 = vunpack.c.l.b16 %v1158
        %v1198 = vunpack.c.l.b16 %v1159
        %v1199 = vunpack.c.l.b16 %v1160
        %v1200 = vunpack.c.l.b16 %v1161
        %v1201 = vrot.slane %v1194, 7
        %vm1202 = vcmask 1041409
        %v1203 = vsel %vm1202, %v1201, %v1193
        %v1204 = vrot.slane %v1195, 6
        %vm1205 = vcmask 1042434
        %v1206 = vsel %vm1205, %v1204, %v1203
        %v1207 = vrot.slane %v1196, 5
        %vm1208 = vcmask 1043459
        %v1209 = vsel %vm1208, %v1207, %v1206
        %v1210 = vrot.slane %v1197, 4
        %vm1211 = vcmask 1044484
        %v1212 = vsel %vm1211, %v1210, %v1209
        %v1213 = vrot.slane %v1198, 3
        %vm1214 = vcmask 1045509
        %v1215 = vsel %vm1214, %v1213, %v1212
        %v1216 = vrot.slane %v1199, 2
        %vm1217 = vcmask 1046534
        %v1218 = vsel %vm1217, %v1216, %v1215
        %v1219 = vrot.slane %v1200, 1
        %vm1220 = vcmask 1047559
        %v1221 = vsel %vm1220, %v1219, %v1218
        %v1222 = vpack.c.b16 %v1221, %v1221
        %v1240 = vunpack.c.l.b16 %v1162
        %v1241 = vunpack.c.l.b16 %v1163
        %v1242 = vunpack.c.l.b16 %v1164
        %v1243 = vunpack.c.l.b16 %v1165
        %v1244 = vunpack.c.l.b16 %v1166
        %v1245 = vunpack.c.l.b16 %v1167
        %v1246 = vunpack.c.l.b16 %v1168
        %v1247 = vunpack.c.l.b16 %v1169
        %v1248 = vunpack.c.l.b16 %v1170
        %v1249 = vunpack.c.l.b16 %v1171
        %v1250 = vunpack.c.l.b16 %v1172
        %v1251 = vunpack.c.l.b16 %v1173
        %v1252 = vunpack.c.l.b16 %v1174
        %v1253 = vunpack.c.l.b16 %v1175
        %v1254 = vunpack.c.l.b16 %v1176
        %v1255 = vunpack.c.l.b16 %v1177
        %v1256 = vpack.c.b16 %v1241, %v1240
        %v1257 = vpack.c.b16 %v1243, %v1242
        %v1258 = vpack.c.b16 %v1245, %v1244
        %v1259 = vpack.c.b16 %v1247, %v1246
        %v1260 = vpack.c.b16 %v1249, %v1248
        %v1261 = vpack.c.b16 %v1251, %v1250
        %v1262 = vpack.c.b16 %v1253, %v1252
        %v1263 = vpack.c.b16 %v1255, %v1254
        %1272 = vmatprep.subr.bf16.mxu0 0
        %1273 = vmatpush1.bf16.msra.mxu0 %v1256
        %1274 = vmatprep.subr.bf16.mxu0 0
        %1275 = vmatpush1.bf16.msra.mxu0 %v1257
        %1276 = vmatprep.subr.bf16.mxu0 0
        %1277 = vmatpush1.bf16.msra.mxu0 %v1258
        %1278 = vmatprep.subr.bf16.mxu0 0
        %1279 = vmatpush1.bf16.msra.mxu0 %v1259
        %1280 = vmatprep.subr.bf16.mxu0 0
        %1281 = vmatpush1.bf16.msra.mxu0 %v1260
        %1282 = vmatprep.subr.bf16.mxu0 0
        %1283 = vmatpush1.bf16.msra.mxu0 %v1261
        %1284 = vmatprep.subr.bf16.mxu0 0
        %1285 = vmatpush1.bf16.msra.mxu0 %v1262
        %1286 = vmatprep.subr.bf16.mxu0 0
        %1287 = vmatpush1.bf16.msra.mxu0 %v1263
        %1288 = vmatprep.subr.bf16.mxu0 0
        %1289 = vmatpush1.bf16.msra.mxu0 0
        %1290 = vmatprep.subr.bf16.mxu0 0
        %1291 = vmatpush1.bf16.msra.mxu0 0
        %1292 = vmatprep.subr.bf16.mxu0 0
        %1293 = vmatpush1.bf16.msra.mxu0 0
        %1294 = vmatprep.subr.bf16.mxu0 0
        %1295 = vmatpush1.bf16.msra.mxu0 0
        %1296 = vmatprep.subr.bf16.mxu0 0
        %1297 = vmatpush1.bf16.msra.mxu0 0
        %1298 = vmatprep.subr.bf16.mxu0 0
        %1299 = vmatpush1.bf16.msra.mxu0 0
        %1300 = vmatprep.subr.bf16.mxu0 0
        %1301 = vmatpush1.bf16.msra.mxu0 0
        %1302 = vmatprep.subr.bf16.mxu0 0
        %1303 = vmatpush1.bf16.msra.mxu0 0
        %1304 = vmatprep.mubr.bf16.mxu0 0
        %1305 = vmatmul.mubr.bf16.gmra.mrb[0].mxu0 %v1222
        %v1306 = vpop.f32.mrb[0].mxu0
        %v1307 = vadd.f32 %v1183, %v1306
        %v1308 = vpop.f32.mrb[0].mxu0
        %v1309 = vpop.f32.mrb[0].mxu0
        %v1310 = vpop.f32.mrb[0].mxu0
        %1311 = vdwg.mxu0
        %v1312 = vmax.f32 %v1307, 0.0
        %v1313 = vld [vmem:[#allocation12] sm:$0xf]
        %v1314 = vld [vmem:[#allocation12 + $0x4] sm:$0xf]
        %v1315 = vld [vmem:[#allocation12 + $0x8] sm:$0xf]
        %v1316 = vld [vmem:[#allocation12 + $0xc] sm:$0xf]
        %v1317 = vld [vmem:[#allocation12 + $0x10] sm:$0xf]
        %v1318 = vld [vmem:[#allocation12 + $0x14] sm:$0xf]
        %v1319 = vld [vmem:[#allocation12 + $0x18] sm:$0xf]
        %v1320 = vld [vmem:[#allocation12 + $0x1c] sm:$0xf]
        %v1321 = vld [vmem:[#allocation12 + $0x20] sm:$0xf]
        %v1322 = vld [vmem:[#allocation12 + $0x24] sm:$0xf]
        %v1323 = vld [vmem:[#allocation12 + $0x28] sm:$0xf]
        %v1324 = vld [vmem:[#allocation12 + $0x2c] sm:$0xf]
        %v1325 = vld [vmem:[#allocation12 + $0x30] sm:$0xf]
        %v1326 = vld [vmem:[#allocation12 + $0x34] sm:$0xf]
        %v1327 = vld [vmem:[#allocation12 + $0x38] sm:$0xf]
        %v1328 = vld [vmem:[#allocation12 + $0x3c] sm:$0xf]
        %v1329 = vld [vmem:[#allocation14] sm:$0x1]
        %v1331 = vlaneseq
        %v1332 = vshrl.u32 %v1331, 7
        %v1333 = vsub.s32 0, %v1332
        %v1334 = vrot.slane %v1329, %v1333
        %v1352 = vunpack.c.l.b16 %v1313
        %v1353 = vunpack.c.l.b16 %v1314
        %v1354 = vunpack.c.l.b16 %v1315
        %v1355 = vunpack.c.l.b16 %v1316
        %v1356 = vunpack.c.l.b16 %v1317
        %v1357 = vunpack.c.l.b16 %v1318
        %v1358 = vunpack.c.l.b16 %v1319
        %v1359 = vunpack.c.l.b16 %v1320
        %v1360 = vunpack.c.l.b16 %v1321
        %v1361 = vunpack.c.l.b16 %v1322
        %v1362 = vunpack.c.l.b16 %v1323
        %v1363 = vunpack.c.l.b16 %v1324
        %v1364 = vunpack.c.l.b16 %v1325
        %v1365 = vunpack.c.l.b16 %v1326
        %v1366 = vunpack.c.l.b16 %v1327
        %v1367 = vunpack.c.l.b16 %v1328
        %v1368 = vpack.c.b16 %v1353, %v1352
        %v1369 = vpack.c.b16 %v1355, %v1354
        %v1370 = vpack.c.b16 %v1357, %v1356
        %v1371 = vpack.c.b16 %v1359, %v1358
        %v1372 = vpack.c.b16 %v1361, %v1360
        %v1373 = vpack.c.b16 %v1363, %v1362
        %v1374 = vpack.c.b16 %v1365, %v1364
        %v1375 = vpack.c.b16 %v1367, %v1366
        %1384 = vmatprep.subr.bf16.mxu0 0
        %1385 = vmatpush1.bf16.msra.mxu0 %v1368
        %1386 = vmatprep.subr.bf16.mxu0 0
        %1387 = vmatpush1.bf16.msra.mxu0 %v1369
        %1388 = vmatprep.subr.bf16.mxu0 0
        %1389 = vmatpush1.bf16.msra.mxu0 %v1370
        %1390 = vmatprep.subr.bf16.mxu0 0
        %1391 = vmatpush1.bf16.msra.mxu0 %v1371
        %1392 = vmatprep.subr.bf16.mxu0 0
        %1393 = vmatpush1.bf16.msra.mxu0 %v1372
        %1394 = vmatprep.subr.bf16.mxu0 0
        %1395 = vmatpush1.bf16.msra.mxu0 %v1373
        %1396 = vmatprep.subr.bf16.mxu0 0
        %1397 = vmatpush1.bf16.msra.mxu0 %v1374
        %1398 = vmatprep.subr.bf16.mxu0 0
        %1399 = vmatpush1.bf16.msra.mxu0 %v1375
        %1400 = vmatprep.subr.bf16.mxu0 0
        %1401 = vmatpush1.bf16.msra.mxu0 0
        %1402 = vmatprep.subr.bf16.mxu0 0
        %1403 = vmatpush1.bf16.msra.mxu0 0
        %1404 = vmatprep.subr.bf16.mxu0 0
        %1405 = vmatpush1.bf16.msra.mxu0 0
        %1406 = vmatprep.subr.bf16.mxu0 0
        %1407 = vmatpush1.bf16.msra.mxu0 0
        %1408 = vmatprep.subr.bf16.mxu0 0
        %1409 = vmatpush1.bf16.msra.mxu0 0
        %1410 = vmatprep.subr.bf16.mxu0 0
        %1411 = vmatpush1.bf16.msra.mxu0 0
        %1412 = vmatprep.subr.bf16.mxu0 0
        %1413 = vmatpush1.bf16.msra.mxu0 0
        %1414 = vmatprep.subr.bf16.mxu0 0
        %1415 = vmatpush1.bf16.msra.mxu0 0
        %1416 = vmatprep.mubr.bf16.mxu0 0
        %1417 = vmatmul.mubr.bf16.gmra.mrb[0].mxu0 %v1222
        %v1418 = vpop.f32.mrb[0].mxu0
        %v1419 = vadd.f32 %v1334, %v1418
        %v1420 = vpop.f32.mrb[0].mxu0
        %v1421 = vpop.f32.mrb[0].mxu0
        %v1422 = vpop.f32.mrb[0].mxu0
        %1423 = vdwg.mxu0
        %v1424 = vxor.u32 %v1419, 2147483648
        %v1425 = vmul.f32 %v1424, 1.442695
        %v1426 = vpow.pop %v1425
        %v1427 = vadd.f32 %v1426, 1.0
        %v1428 = vrcp.pop %v1427
        %v1429 = vmul.f32 1.0, %v1428
        %v1430 = vmul.f32 %v1429, %v1312
        %v1431 = vsub.f32 1.0, %v1429
        %v1440 = vrot.slane %v1147, 7
        %v1441 = vsel %vm1202, %v1440, %v1146
        %v1442 = vrot.slane %v1148, 6
        %v1443 = vsel %vm1205, %v1442, %v1441
        %v1444 = vrot.slane %v1149, 5
        %v1445 = vsel %vm1208, %v1444, %v1443
        %v1446 = vrot.slane %v1150, 4
        %v1447 = vsel %vm1211, %v1446, %v1445
        %v1448 = vrot.slane %v1151, 3
        %v1449 = vsel %vm1214, %v1448, %v1447
        %v1450 = vrot.slane %v1152, 2
        %v1451 = vsel %vm1217, %v1450, %v1449
        %v1452 = vrot.slane %v1153, 1
        %v1453 = vsel %vm1220, %v1452, %v1451
        %v1455 = vmul.f32 %v1431, %v1453
        %v1456 = vadd.f32 %v1430, %v1455
        %v1457 = vpack.c.bf16 %v1456, %v1456
        %v1458 = vld [vmem:[#allocation15] sm:$0xf]
        %v1459 = vld [vmem:[#allocation15 + $0x4] sm:$0xf]
        %v1460 = vld [vmem:[#allocation15 + $0x8] sm:$0xf]
        %v1461 = vld [vmem:[#allocation15 + $0xc] sm:$0xf]
        %v1462 = vld [vmem:[#allocation15 + $0x10] sm:$0xf]
        %v1463 = vld [vmem:[#allocation15 + $0x14] sm:$0xf]
        %v1464 = vld [vmem:[#allocation15 + $0x18] sm:$0xf]
        %v1465 = vld [vmem:[#allocation15 + $0x1c] sm:$0xf]
        %v1466 = vld [vmem:[#allocation15 + $0x20] sm:$0xf]
        %v1467 = vld [vmem:[#allocation15 + $0x24] sm:$0xf]
        %v1468 = vld [vmem:[#allocation15 + $0x28] sm:$0xf]
        %v1469 = vld [vmem:[#allocation15 + $0x2c] sm:$0xf]
        %v1470 = vld [vmem:[#allocation15 + $0x30] sm:$0xf]
        %v1471 = vld [vmem:[#allocation15 + $0x34] sm:$0xf]
        %v1472 = vld [vmem:[#allocation15 + $0x38] sm:$0xf]
        %v1473 = vld [vmem:[#allocation15 + $0x3c] sm:$0xf]
        %v1474 = vld [vmem:[#allocation17] sm:$0x1]
        %v1476 = vlaneseq
        %v1477 = vshrl.u32 %v1476, 7
        %v1478 = vsub.s32 0, %v1477
        %v1479 = vrot.slane %v1474, %v1478
        %v1497 = vunpack.c.l.b16 %v1458
        %v1498 = vunpack.c.l.b16 %v1459
        %v1499 = vunpack.c.l.b16 %v1460
        %v1500 = vunpack.c.l.b16 %v1461
        %v1501 = vunpack.c.l.b16 %v1462
        %v1502 = vunpack.c.l.b16 %v1463
        %v1503 = vunpack.c.l.b16 %v1464
        %v1504 = vunpack.c.l.b16 %v1465
        %v1505 = vunpack.c.l.b16 %v1466
        %v1506 = vunpack.c.l.b16 %v1467
        %v1507 = vunpack.c.l.b16 %v1468
        %v1508 = vunpack.c.l.b16 %v1469
        %v1509 = vunpack.c.l.b16 %v1470
        %v1510 = vunpack.c.l.b16 %v1471
        %v1511 = vunpack.c.l.b16 %v1472
        %v1512 = vunpack.c.l.b16 %v1473
        %v1513 = vpack.c.b16 %v1498, %v1497
        %v1514 = vpack.c.b16 %v1500, %v1499
        %v1515 = vpack.c.b16 %v1502, %v1501
        %v1516 = vpack.c.b16 %v1504, %v1503
        %v1517 = vpack.c.b16 %v1506, %v1505
        %v1518 = vpack.c.b16 %v1508, %v1507
        %v1519 = vpack.c.b16 %v1510, %v1509
        %v1520 = vpack.c.b16 %v1512, %v1511
        %1529 = vmatprep.subr.bf16.mxu0 0
        %1530 = vmatpush1.bf16.msra.mxu0 %v1513
        %1531 = vmatprep.subr.bf16.mxu0 0
        %1532 = vmatpush1.bf16.msra.mxu0 %v1514
        %1533 = vmatprep.subr.bf16.mxu0 0
        %1534 = vmatpush1.bf16.msra.mxu0 %v1515
        %1535 = vmatprep.subr.bf16.mxu0 0
        %1536 = vmatpush1.bf16.msra.mxu0 %v1516
        %1537 = vmatprep.subr.bf16.mxu0 0
        %1538 = vmatpush1.bf16.msra.mxu0 %v1517
        %1539 = vmatprep.subr.bf16.mxu0 0
        %1540 = vmatpush1.bf16.msra.mxu0 %v1518
        %1541 = vmatprep.subr.bf16.mxu0 0
        %1542 = vmatpush1.bf16.msra.mxu0 %v1519
        %1543 = vmatprep.subr.bf16.mxu0 0
        %1544 = vmatpush1.bf16.msra.mxu0 %v1520
        %1545 = vmatprep.subr.bf16.mxu0 0
        %1546 = vmatpush1.bf16.msra.mxu0 0
        %1547 = vmatprep.subr.bf16.mxu0 0
        %1548 = vmatpush1.bf16.msra.mxu0 0
        %1549 = vmatprep.subr.bf16.mxu0 0
        %1550 = vmatpush1.bf16.msra.mxu0 0
        %1551 = vmatprep.subr.bf16.mxu0 0
        %1552 = vmatpush1.bf16.msra.mxu0 0
        %1553 = vmatprep.subr.bf16.mxu0 0
        %1554 = vmatpush1.bf16.msra.mxu0 0
        %1555 = vmatprep.subr.bf16.mxu0 0
        %1556 = vmatpush1.bf16.msra.mxu0 0
        %1557 = vmatprep.subr.bf16.mxu0 0
        %1558 = vmatpush1.bf16.msra.mxu0 0
        %1559 = vmatprep.subr.bf16.mxu0 0
        %1560 = vmatpush1.bf16.msra.mxu0 0
        %1561 = vmatprep.mubr.bf16.mxu0 0
        %1562 = vmatmul.mubr.bf16.gmra.mrb[0].mxu0 %v1457
        %v1563 = vpop.f32.mrb[0].mxu0
        %v1564 = vadd.f32 %v1479, %v1563
        %v1565 = vpop.f32.mrb[0].mxu0
        %v1566 = vpop.f32.mrb[0].mxu0
        %v1567 = vpop.f32.mrb[0].mxu0
        %1568 = vdwg.mxu0
        %1569 = vmax.xlane.f32.xlu0 %v1564
        %v1570 = vpop.xlane.xlu0 %1569
        %v1571 = vsub.f32 %v1564, %v1570
        %v1572 = vmul.f32 %v1571, 1.442695
        %v1573 = vpow.pop %v1572
        %1574 = vadd.xlane.f32.xlu0 %v1573
        %v1575 = vpop.xlane.xlu0 %1574
        %v1576 = vrcp.pop %v1575
        %v1577 = vmul.f32 %v1573, %v1576
        %1578 = vst [vmem:[%s517] sm:$0xff] %v1456
        %1579 = vst [vmem:[%s524] sm:$0xff] %v1564
        %1580 = vst [vmem:[%s531] sm:$0xff] %v1577
        %s1581 = sand.u32 %s238, 1
        %s1582 = scalar_lea.sflag [#allocation5], %s1581
        %s1583 = sand.u32 %s238, 1
        %s1584 = smul.addr %s1583, 8
        %s1585 = scalar_lea.vmem [#allocation18], %s1584
        %s1586 = sand.u32 %s36, 1
        %s1587 = scalar_lea.sflag [#allocation20], %s1586
        %s1588 = sand.u32 %s264, 1
        %s1589 = smul.addr %s1588, 8
        %s1590 = scalar_lea.vmem [#allocation19], %s1589
        %s1591 = sand.u32 %s36, 1
        %s1592 = scalar_lea.sflag [#allocation20], %s1591
        %s1593 = sand.u32 %s290, 1
        %s1594 = smul.addr %s1593, 8
        %s1595 = scalar_lea.vmem [#allocation21], %s1594
        // Predicated region
        $region93: #{tpu_custom_call.1} parent=55 // pred_check
          %p1596 = pneg %p248
        $region94: #{tpu_custom_call.1} parent=55 // pred_check_branch
          %1598 = sbr.rel (%p1596) target = $region96
        $region95: #{tpu_custom_call.1} parent=55 // pred_region
          %s1600 = ssub.s32 128, 128
          %1601 = vsyncadd %s1582, %s1600
          %s1602 = smul.addr %s36, 128
          %s1603 = scalar_lea.hbm %s9, %s1602
          %s1605 = sshll.u32 %s1585, 4
          %s1606 = int_to_ptr.vmem [resolvable:$true] %s1605
          %1608 = dma.vmem_to_hbm [thread:$0]  %s1606, 128, %s1603, %s1582
        $region96: #{tpu_custom_call.1} parent=55 // pred_fallthru
          _
        // Predicated region
        $region97: #{tpu_custom_call.1} parent=55 // pred_check
          %p1609 = pneg %p274
        $region98: #{tpu_custom_call.1} parent=55 // pred_check_branch
          %1611 = sbr.rel (%p1609) target = $region100
        $region99: #{tpu_custom_call.1} parent=55 // pred_region
          %s1613 = ssub.s32 128, 128
          %1614 = vsyncadd %s1587, %s1613
          %s1615 = smul.addr %s36, 128
          %s1616 = scalar_lea.hbm %s10, %s1615
          %s1618 = sshll.u32 %s1590, 4
          %s1619 = int_to_ptr.vmem [resolvable:$true] %s1618
          %1621 = dma.vmem_to_hbm [thread:$0]  %s1619, 128, %s1616, %s1587
        $region100: #{tpu_custom_call.1} parent=55 // pred_fallthru
          _
        // Predicated region
        $region101: #{tpu_custom_call.1} parent=55 // pred_check
          %p1622 = pneg %p300
        $region102: #{tpu_custom_call.1} parent=55 // pred_check_branch
          %1624 = sbr.rel (%p1622) target = $region104
        $region103: #{tpu_custom_call.1} parent=55 // pred_region
          %s1626 = ssub.s32 128, 128
          %1627 = vsyncadd %s1592, %s1626
          %s1628 = smul.addr %s36, 128
          %s1629 = scalar_lea.hbm %s11, %s1628
          %s1631 = sshll.u32 %s1595, 4
          %s1632 = int_to_ptr.vmem [resolvable:$true] %s1631
          %1634 = dma.vmem_to_hbm [thread:$0]  %s1632, 128, %s1629, %s1592
        $region104: #{tpu_custom_call.1} parent=55 // pred_fallthru
          _
      $region56: #{tpu_custom_call.1} parent=5 // pred_fallthru
        _
      %p1635 = scmp.le.s32.totalorder 2, %s31
      // Predicated region
      $region105: #{tpu_custom_call.1} parent=5 // pred_check
        %p1636 = pneg %p1635
      $region106: #{tpu_custom_call.1} parent=5 // pred_check_branch
        %1638 = sbr.rel (%p1636) target = $region108
      $region107: #{tpu_custom_call.1} parent=5 // pred_region
        %s1639 = ssub.s32 %s31, 2
        // Predicated region
        $region109: #{tpu_custom_call.1} parent=107 // pred_check
          %p1640 = pneg %p254
        $region110: #{tpu_custom_call.1} parent=107 // pred_check_branch
          %1642 = sbr.rel (%p1640) target = $region112
        $region111: #{tpu_custom_call.1} parent=107 // pred_region
          %s1643 = sand.u32 %s239, 1
          %s1644 = scalar_lea.sflag [#allocation5], %s1643
          %s1645 = sand.u32 %s239, 1
          %s1646 = smul.addr %s1645, 8
          %s1647 = scalar_lea.vmem [#allocation18], %s1646
          %1648 = dma.done %s1644, 128
        $region112: #{tpu_custom_call.1} parent=107 // pred_fallthru
          _
        // Predicated region
        $region113: #{tpu_custom_call.1} parent=107 // pred_check
          %p1649 = pneg %p280
        $region114: #{tpu_custom_call.1} parent=107 // pred_check_branch
          %1651 = sbr.rel (%p1649) target = $region116
        $region115: #{tpu_custom_call.1} parent=107 // pred_region
          %s1652 = sand.u32 %s37, 1
          %s1653 = scalar_lea.sflag [#allocation20], %s1652
          %s1654 = sand.u32 %s265, 1
          %s1655 = smul.addr %s1654, 8
          %s1656 = scalar_lea.vmem [#allocation19], %s1655
          %1657 = dma.done %s1653, 128
        $region116: #{tpu_custom_call.1} parent=107 // pred_fallthru
          _
        // Predicated region
        $region117: #{tpu_custom_call.1} parent=107 // pred_check
          %p1658 = pneg %p306
        $region118: #{tpu_custom_call.1} parent=107 // pred_check_branch
          %1660 = sbr.rel (%p1658) target = $region120
        $region119: #{tpu_custom_call.1} parent=107 // pred_region
          %s1661 = sand.u32 %s37, 1
          %s1662 = scalar_lea.sflag [#allocation20], %s1661
          %s1663 = sand.u32 %s291, 1
          %s1664 = smul.addr %s1663, 8
          %s1665 = scalar_lea.vmem [#allocation21], %s1664
          %1666 = dma.done %s1662, 128
        $region120: #{tpu_custom_call.1} parent=107 // pred_fallthru
          _
      $region108: #{tpu_custom_call.1} parent=5 // pred_fallthru
        _
    $region6: #{tpu_custom_call.1} parent=1 // loop_footer
      %s35 = sadd.s32 1, %s31
    $region7: #{tpu_custom_call.1} parent=1 // loop_footer_branch
      %30 = sbr.rel target = $region3
    $region8: #{tpu_custom_call.1} parent=1 // loop_exit
      _
    %1667 = vsyncpa [#allocation4], 1
    %s1668 = scalar_lea.sflag [#allocation4], 1
    %1669 = vsyncpa %s1668, 1
    %1670 = vsyncpa [#allocation7], 1
    %1671 = vsyncpa [#allocation10], 1
    %1672 = vsyncpa [#allocation13], 1
    %1673 = vsyncpa [#allocation16], 1
    %1674 = vsyncpa [#allocation5], 1
    %s1675 = scalar_lea.sflag [#allocation5], 1
    %1676 = vsyncpa %s1675, 1
    %1677 = vsyncpa [#allocation20], 1
    %s1678 = scalar_lea.sflag [#allocation20], 1
    %1679 = vsyncpa %s1678, 1

// kernel: tpu_custom_call.1
$region0: #{tpu_custom_call.1}
  #allocation0 [shape = 'u32[]', space=smem, size = 0x4, offset = 0x4, fixed_abs, tag = 'smem constant byte address 0x4 - core index']
  #allocation1 [shape = 'u32[144,128]{1,0:T(1,128)}', space=vmem, size = 0x12000, scoped, tag = 'internal scratch']
  #allocation2 [shape = 'f32[128,128]{1,0:T(8,128)}', space=vmem, size = 0x10000, scoped, tag = 'scratch operand']
  %s0 = inlined_call_operand.hbm [shape: bf16[16,32,32], index: 0, kind: input, shape index: {}]
  %s1 = inlined_call_operand.hbm [shape: bf16[1,96,128], index: 1, kind: input, shape index: {}]
  %s2 = inlined_call_operand.hbm [shape: f32[1,128], index: 2, kind: input, shape index: {}]
  %s3 = inlined_call_operand.hbm [shape: bf16[128,128], index: 3, kind: input, shape index: {}]
  %s4 = inlined_call_operand.hbm [shape: f32[1,128], index: 4, kind: input, shape index: {}]
  %s5 = inlined_call_operand.hbm [shape: bf16[128,128], index: 5, kind: input, shape index: {}]
  %s6 = inlined_call_operand.hbm [shape: f32[1,128], index: 6, kind: input, shape index: {}]
  %s7 = inlined_call_operand.hbm [shape: bf16[128,128], index: 7, kind: input, shape index: {}]
  %s8 = inlined_call_operand.hbm [shape: f32[1,128], index: 8, kind: input, shape index: {}]
  %s9 = inlined_call_operand.hbm [shape: f32[16,128], index: 9, kind: output, shape index: {0}]
  %s10 = inlined_call_operand.hbm [shape: f32[16,128], index: 10, kind: output, shape index: {1}]
  %s11 = inlined_call_operand.hbm [shape: f32[16,128], index: 11, kind: output, shape index: {2}]
  %12 = xla_tuple %s9, %s10, %s11
  %s13 = sld [smem:[#allocation0]]
  $region121: #{tpu_custom_call.1} parent=0
    _
  %s15 = ssub.s32 1, %s13
  %s16 = scalar_select 0, %s15, %s13
  $region1: #{tpu_custom_call.1} parent=0
    #allocation3 [shape = 'u8[131072]{0}', space=vmem, size = 0x20000, scoped, tag = 'input window, operand 0']
    #allocation4 [shape = 's32[2]{0}', space=sflag, size = 0x8, scoped, tag = 'scoped memory for tpu_custom_call.1']
    #allocation5 [shape = 's32[2]{0}', space=sflag, size = 0x8, scoped, tag = 'scoped memory for tpu_custom_call.1']
    #allocation6 [shape = 'u8[24576]{0}', space=vmem, size = 0x6000, scoped, tag = 'input window, operand 1, single buffered']
    #allocation7 [shape = 's32[1]{0}', space=sflag, size = 0x4, scoped, tag = 'scoped memory for tpu_custom_call.1']
    #allocation8 [shape = 'u8[512]{0}', space=vmem, size = 0x400, scoped, tag = 'input window, operand 2, single buffered']
    #allocation9 [shape = 'u8[32768]{0}', space=vmem, size = 0x8000, scoped, tag = 'input window, operand 3, single buffered']
    #allocation10 [shape = 's32[1]{0}', space=sflag, size = 0x4, scoped, tag = 'scoped memory for tpu_custom_call.1']
    #allocation11 [shape = 'u8[512]{0}', space=vmem, size = 0x400, scoped, tag = 'input window, operand 4, single buffered']
    #allocation12 [shape = 'u8[32768]{0}', space=vmem, size = 0x8000, scoped, tag = 'input window, operand 5, single buffered']
    #allocation13 [shape = 's32[1]{0}', space=sflag, size = 0x4, scoped, tag = 'scoped memory for tpu_custom_call.1']
    #allocation14 [shape = 'u8[512]{0}', space=vmem, size = 0x400, scoped, tag = 'input window, operand 6, single buffered']
    #allocation15 [shape = 'u8[32768]{0}', space=vmem, size = 0x8000, scoped, tag = 'input window, operand 7, single buffered']
    #allocation16 [shape = 's32[1]{0}', space=sflag, size = 0x4, scoped, tag = 'scoped memory for tpu_custom_call.1']
    #allocation17 [shape = 'u8[512]{0}', space=vmem, size = 0x400, scoped, tag = 'input window, operand 8, single buffered']
    #allocation18 [shape = 'u8[8192]{0}', space=vmem, size = 0x2000, scoped, tag = 'output window, operand 0']
    #allocation19 [shape = 'u8[8192]{0}', space=vmem, size = 0x2000, scoped, tag = 'output window, operand 1']
    #allocation20 [shape = 's32[2]{0}', space=sflag, size = 0x8, scoped, tag = 'scoped memory for tpu_custom_call.1']
    #allocation21 [shape = 'u8[8192]{0}', space=vmem, size = 0x2000, scoped, tag = 'output window, operand 2']
    %17 = vsyncpa [#allocation4], 0
    %s18 = scalar_lea.sflag [#allocation4], 1
    %19 = vsyncpa %s18, 0
    %20 = vsyncpa [#allocation7], 0
    %21 = vsyncpa [#allocation10], 0
    %22 = vsyncpa [#allocation13], 0
    %23 = vsyncpa [#allocation16], 0
    %24 = vsyncpa [#allocation5], 0
    %s25 = scalar_lea.sflag [#allocation5], 1
    %26 = vsyncpa %s25, 0
    %27 = vsyncpa [#allocation20], 0
    %s28 = scalar_lea.sflag [#allocation20], 1
    %29 = vsyncpa %s28, 0
    loop: start=0, step=1, limit=4
    $region2: #{tpu_custom_call.1} parent=1 // loop_pre_header
      _
    $region3: #{tpu_custom_call.1} parent=1 // loop_header
      %s31 = sphi 0, %s35
      %p32 = scmp.ge.s32.totalorder %s31, 4
      %s41 = sphi 0, %s43
      %s44 = sphi 0, %s41
      %s45 = sphi 0, %s44
      %s61 = sphi 0, %s45
      %s65 = sphi 0, %s65
      %s67 = sphi 0, %s65
      %s68 = sphi 0, %s67
      %s82 = sphi 0, %s68
      %s86 = sphi 0, %s86
      %s88 = sphi 0, %s86
      %s89 = sphi 0, %s88
      %s103 = sphi 0, %s89
      %s107 = sphi 0, %s107
      %s109 = sphi 0, %s107
      %s110 = sphi 0, %s109
      %s124 = sphi 0, %s110
      %s128 = sphi 0, %s128
      %s130 = sphi 0, %s128
      %s131 = sphi 0, %s130
      %s145 = sphi 0, %s131
      %s149 = sphi 0, %s149
      %s151 = sphi 0, %s149
      %s152 = sphi 0, %s151
      %s166 = sphi 0, %s152
      %s170 = sphi 0, %s170
      %s172 = sphi 0, %s170
      %s173 = sphi 0, %s172
      %s187 = sphi 0, %s173
      %s191 = sphi 0, %s191
      %s193 = sphi 0, %s191
      %s194 = sphi 0, %s193
      %s208 = sphi 0, %s194
      %s212 = sphi 0, %s212
      %s214 = sphi 0, %s212
      %s215 = sphi 0, %s214
      %s229 = sphi 0, %s215
      %s235 = sphi 0, %s237
      %s238 = sphi 0, %s235
      %s239 = sphi 0, %s238
      %s255 = sphi 0, %s239
      %s261 = sphi 0, %s263
      %s264 = sphi 0, %s261
      %s265 = sphi 0, %s264
      %s281 = sphi 0, %s265
      %s287 = sphi 0, %s289
      %s290 = sphi 0, %s287
      %s291 = sphi 0, %s290
      %s307 = sphi 0, %s291
    $region4: #{tpu_custom_call.1} parent=1 // loop_header_branch
      %34 = sbr.rel (%p32) target = $region8
    $region5: #{tpu_custom_call.1} parent=1 // loop_body
      %s36 = ssub.s32 %s31, 1
      %s37 = ssub.s32 %s31, 2
      %s38 = sadd.s32 %s31, 1
      %s39 = ssub.s32 %s31, %s38
      %p40 = scmp.eq.s32.totalorder %s39, 0
      %s42 = sadd.s32 %s41, 1
      %s43 = scalar_select %p40, %s41, %s42
      %p46 = pneg %p40
      %p47 = scmp.eq.s32.totalorder %s31, 1
      %p48 = por %p46, %p47
      %p49 = scmp.ne.s32.totalorder %s41, %s44
      %p50 = scmp.eq.s32.totalorder %s31, 0
      %p51 = por %p49, %p50
      %p52 = scmp.ne.s32.totalorder %s41, %s44
      %p53 = scmp.eq.s32.totalorder %s36, 1
      %p54 = por %p52, %p53
      %p55 = scmp.ne.s32.totalorder %s44, %s45
      %p56 = scmp.eq.s32.totalorder %s36, 0
      %p57 = por %p55, %p56
      %p58 = scmp.ne.s32.totalorder %s44, %s45
      %p59 = scmp.eq.s32.totalorder %s37, 1
      %p60 = por %p58, %p59
      %p62 = scmp.ne.s32.totalorder %s45, %s61
      %p63 = scmp.eq.s32.totalorder %s37, 0
      %p64 = por %p62, %p63
      %s66 = sadd.s32 %s65, 1
      %p69 = scmp.eq.s32.totalorder %s31, 1
      %p70 = scmp.ne.s32.totalorder %s65, %s67
      %p71 = scmp.eq.s32.totalorder %s31, 0
      %p72 = por %p70, %p71
      %p73 = scmp.ne.s32.totalorder %s65, %s67
      %p74 = scmp.eq.s32.totalorder %s36, 1
      %p75 = por %p73, %p74
      %p76 = scmp.ne.s32.totalorder %s67, %s68
      %p77 = scmp.eq.s32.totalorder %s36, 0
      %p78 = por %p76, %p77
      %p79 = scmp.ne.s32.totalorder %s67, %s68
      %p80 = scmp.eq.s32.totalorder %s37, 1
      %p81 = por %p79, %p80
      %p83 = scmp.ne.s32.totalorder %s68, %s82
      %p84 = scmp.eq.s32.totalorder %s37, 0
      %p85 = por %p83, %p84
      %s87 = sadd.s32 %s86, 1
      %p90 = scmp.eq.s32.totalorder %s31, 1
      %p91 = scmp.ne.s32.totalorder %s86, %s88
      %p92 = scmp.eq.s32.totalorder %s31, 0
      %p93 = por %p91, %p92
      %p94 = scmp.ne.s32.totalorder %s86, %s88
      %p95 = scmp.eq.s32.totalorder %s36, 1
      %p96 = por %p94, %p95
      %p97 = scmp.ne.s32.totalorder %s88, %s89
      %p98 = scmp.eq.s32.totalorder %s36, 0
      %p99 = por %p97, %p98
      %p100 = scmp.ne.s32.totalorder %s88, %s89
      %p101 = scmp.eq.s32.totalorder %s37, 1
      %p102 = por %p100, %p101
      %p104 = scmp.ne.s32.totalorder %s89, %s103
      %p105 = scmp.eq.s32.totalorder %s37, 0
      %p106 = por %p104, %p105
      %s108 = sadd.s32 %s107, 1
      %p111 = scmp.eq.s32.totalorder %s31, 1
      %p112 = scmp.ne.s32.totalorder %s107, %s109
      %p113 = scmp.eq.s32.totalorder %s31, 0
      %p114 = por %p112, %p113
      %p115 = scmp.ne.s32.totalorder %s107, %s109
      %p116 = scmp.eq.s32.totalorder %s36, 1
      %p117 = por %p115, %p116
      %p118 = scmp.ne.s32.totalorder %s109, %s110
      %p119 = scmp.eq.s32.totalorder %s36, 0
      %p120 = por %p118, %p119
      %p121 = scmp.ne.s32.totalorder %s109, %s110
      %p122 = scmp.eq.s32.totalorder %s37, 1
      %p123 = por %p121, %p122
      %p125 = scmp.ne.s32.totalorder %s110, %s124
      %p126 = scmp.eq.s32.totalorder %s37, 0
      %p127 = por %p125, %p126
      %s129 = sadd.s32 %s128, 1
      %p132 = scmp.eq.s32.totalorder %s31, 1
      %p133 = scmp.ne.s32.totalorder %s128, %s130
      %p134 = scmp.eq.s32.totalorder %s31, 0
      %p135 = por %p133, %p134
      %p136 = scmp.ne.s32.totalorder %s128, %s130
      %p137 = scmp.eq.s32.totalorder %s36, 1
      %p138 = por %p136, %p137
      %p139 = scmp.ne.s32.totalorder %s130, %s131
      %p140 = scmp.eq.s32.totalorder %s36, 0
      %p141 = por %p139, %p140
      %p142 = scmp.ne.s32.totalorder %s130, %s131
      %p143 = scmp.eq.s32.totalorder %s37, 1
      %p144 = por %p142, %p143
      %p146 = scmp.ne.s32.totalorder %s131, %s145
      %p147 = scmp.eq.s32.totalorder %s37, 0
      %p148 = por %p146, %p147
      %s150 = sadd.s32 %s149, 1
      %p153 = scmp.eq.s32.totalorder %s31, 1
      %p154 = scmp.ne.s32.totalorder %s149, %s151
      %p155 = scmp.eq.s32.totalorder %s31, 0
      %p156 = por %p154, %p155
      %p157 = scmp.ne.s32.totalorder %s149, %s151
      %p158 = scmp.eq.s32.totalorder %s36, 1
      %p159 = por %p157, %p158
      %p160 = scmp.ne.s32.totalorder %s151, %s152
      %p161 = scmp.eq.s32.totalorder %s36, 0
      %p162 = por %p160, %p161
      %p163 = scmp.ne.s32.totalorder %s151, %s152
      %p164 = scmp.eq.s32.totalorder %s37, 1
      %p165 = por %p163, %p164
      %p167 = scmp.ne.s32.totalorder %s152, %s166
      %p168 = scmp.eq.s32.totalorder %s37, 0
      %p169 = por %p167, %p168
      %s171 = sadd.s32 %s170, 1
      %p174 = scmp.eq.s32.totalorder %s31, 1
      %p175 = scmp.ne.s32.totalorder %s170, %s172
      %p176 = scmp.eq.s32.totalorder %s31, 0
      %p177 = por %p175, %p176
      %p178 = scmp.ne.s32.totalorder %s170, %s172
      %p179 = scmp.eq.s32.totalorder %s36, 1
      %p180 = por %p178, %p179
      %p181 = scmp.ne.s32.totalorder %s172, %s173
      %p182 = scmp.eq.s32.totalorder %s36, 0
      %p183 = por %p181, %p182
      %p184 = scmp.ne.s32.totalorder %s172, %s173
      %p185 = scmp.eq.s32.totalorder %s37, 1
      %p186 = por %p184, %p185
      %p188 = scmp.ne.s32.totalorder %s173, %s187
      %p189 = scmp.eq.s32.totalorder %s37, 0
      %p190 = por %p188, %p189
      %s192 = sadd.s32 %s191, 1
      %p195 = scmp.eq.s32.totalorder %s31, 1
      %p196 = scmp.ne.s32.totalorder %s191, %s193
      %p197 = scmp.eq.s32.totalorder %s31, 0
      %p198 = por %p196, %p197
      %p199 = scmp.ne.s32.totalorder %s191, %s193
      %p200 = scmp.eq.s32.totalorder %s36, 1
      %p201 = por %p199, %p200
      %p202 = scmp.ne.s32.totalorder %s193, %s194
      %p203 = scmp.eq.s32.totalorder %s36, 0
      %p204 = por %p202, %p203
      %p205 = scmp.ne.s32.totalorder %s193, %s194
      %p206 = scmp.eq.s32.totalorder %s37, 1
      %p207 = por %p205, %p206
      %p209 = scmp.ne.s32.totalorder %s194, %s208
      %p210 = scmp.eq.s32.totalorder %s37, 0
      %p211 = por %p209, %p210
      %s213 = sadd.s32 %s212, 1
      %p216 = scmp.eq.s32.totalorder %s31, 1
      %p217 = scmp.ne.s32.totalorder %s212, %s214
      %p218 = scmp.eq.s32.totalorder %s31, 0
      %p219 = por %p217, %p218
      %p220 = scmp.ne.s32.totalorder %s212, %s214
      %p221 = scmp.eq.s32.totalorder %s36, 1
      %p222 = por %p220, %p221
      %p223 = scmp.ne.s32.totalorder %s214, %s215
      %p224 = scmp.eq.s32.totalorder %s36, 0
      %p225 = por %p223, %p224
      %p226 = scmp.ne.s32.totalorder %s214, %s215
      %p227 = scmp.eq.s32.totalorder %s37, 1
      %p228 = por %p226, %p227
      %p230 = scmp.ne.s32.totalorder %s215, %s229
      %p231 = scmp.eq.s32.totalorder %s37, 0
      %p232 = por %p230, %p231
      %s233 = ssub.s32 %s31, %s38
      %p234 = scmp.eq.s32.totalorder %s233, 0
      %s236 = sadd.s32 %s235, 1
      %s237 = scalar_select %p234, %s235, %s236
      %p240 = pneg %p234
      %p241 = scmp.eq.s32.totalorder %s31, 1
      %p242 = por %p240, %p241
      %p243 = scmp.ne.s32.totalorder %s235, %s238
      %p244 = scmp.eq.s32.totalorder %s31, 0
      %p245 = por %p243, %p244
      %p246 = scmp.ne.s32.totalorder %s235, %s238
      %p247 = scmp.eq.s32.totalorder %s36, 1
      %p248 = por %p246, %p247
      %p249 = scmp.ne.s32.totalorder %s238, %s239
      %p250 = scmp.eq.s32.totalorder %s36, 0
      %p251 = por %p249, %p250
      %p252 = scmp.ne.s32.totalorder %s238, %s239
      %p253 = scmp.eq.s32.totalorder %s37, 1
      %p254 = por %p252, %p253
      %p256 = scmp.ne.s32.totalorder %s239, %s255
      %p257 = scmp.eq.s32.totalorder %s37, 0
      %p258 = por %p256, %p257
      %s259 = ssub.s32 %s31, %s38
      %p260 = scmp.eq.s32.totalorder %s259, 0
      %s262 = sadd.s32 %s261, 1
      %s263 = scalar_select %p260, %s261, %s262
      %p266 = pneg %p260
      %p267 = scmp.eq.s32.totalorder %s31, 1
      %p268 = por %p266, %p267
      %p269 = scmp.ne.s32.totalorder %s261, %s264
      %p270 = scmp.eq.s32.totalorder %s31, 0
      %p271 = por %p269, %p270
      %p272 = scmp.ne.s32.totalorder %s261, %s264
      %p273 = scmp.eq.s32.totalorder %s36, 1
      %p274 = por %p272, %p273
      %p275 = scmp.ne.s32.totalorder %s264, %s265
      %p276 = scmp.eq.s32.totalorder %s36, 0
      %p277 = por %p275, %p276
      %p278 = scmp.ne.s32.totalorder %s264, %s265
      %p279 = scmp.eq.s32.totalorder %s37, 1
      %p280 = por %p278, %p279
      %p282 = scmp.ne.s32.totalorder %s265, %s281
      %p283 = scmp.eq.s32.totalorder %s37, 0
      %p284 = por %p282, %p283
      %s285 = ssub.s32 %s31, %s38
      %p286 = scmp.eq.s32.totalorder %s285, 0
      %s288 = sadd.s32 %s287, 1
      %s289 = scalar_select %p286, %s287, %s288
      %p292 = pneg %p286
      %p293 = scmp.eq.s32.totalorder %s31, 1
      %p294 = por %p292, %p293
      %p295 = scmp.ne.s32.totalorder %s287, %s290
      %p296 = scmp.eq.s32.totalorder %s31, 0
      %p297 = por %p295, %p296
      %p298 = scmp.ne.s32.totalorder %s287, %s290
      %p299 = scmp.eq.s32.totalorder %s36, 1
      %p300 = por %p298, %p299
      %p301 = scmp.ne.s32.totalorder %s290, %s291
      %p302 = scmp.eq.s32.totalorder %s36, 0
      %p303 = por %p301, %p302
      %p304 = scmp.ne.s32.totalorder %s290, %s291
      %p305 = scmp.eq.s32.totalorder %s37, 1
      %p306 = por %p304, %p305
      %p308 = scmp.ne.s32.totalorder %s291, %s307
      %p309 = scmp.eq.s32.totalorder %s37, 0
      %p310 = por %p308, %p309
      %p311 = scmp.le.s32.totalorder 1, %s31
      %p312 = scmp.lt.s32.totalorder %s31, 3
      %p313 = pnand %p311, %p312
      %p314 = pneg %p313
      // Predicated region
      $region9: #{tpu_custom_call.1} parent=5 // pred_check
        _
      $region10: #{tpu_custom_call.1} parent=5 // pred_check_branch
        %316 = sbr.rel (%p313) target = $region12
      $region11: #{tpu_custom_call.1} parent=5 // pred_region
        %s317 = ssub.s32 %s31, 1
        // Predicated region
        $region13: #{tpu_custom_call.1} parent=11 // pred_check
          %p318 = pneg %p78
        $region14: #{tpu_custom_call.1} parent=11 // pred_check_branch
          %320 = sbr.rel (%p318) target = $region16
        $region15: #{tpu_custom_call.1} parent=11 // pred_region
          %s322 = ssub.s32 768, 768
          %323 = vsyncadd [#allocation7], %s322
          %s324 = sshll.u32 [#allocation6], 4
          %s325 = int_to_ptr.vmem [resolvable:$true] %s324
          %330 = dma.hbm_to_vmem [thread:$0]  %s1, 768, %s325, [#allocation7], 64, 64, 4
        $region16: #{tpu_custom_call.1} parent=11 // pred_fallthru
          _
        // Predicated region
        $region17: #{tpu_custom_call.1} parent=11 // pred_check
          %p331 = pneg %p99
        $region18: #{tpu_custom_call.1} parent=11 // pred_check_branch
          %333 = sbr.rel (%p331) target = $region20
        $region19: #{tpu_custom_call.1} parent=11 // pred_region
          %s335 = ssub.s32 16, 16
          %336 = vsyncadd [#allocation7], %s335
          %s338 = sshll.u32 [#allocation8], 4
          %s339 = int_to_ptr.vmem [resolvable:$true] %s338
          %341 = dma.hbm_to_vmem [thread:$0]  %s2, 16, %s339, [#allocation7]
        $region20: #{tpu_custom_call.1} parent=11 // pred_fallthru
          _
        // Predicated region
        $region21: #{tpu_custom_call.1} parent=11 // pred_check
          %p342 = pneg %p120
        $region22: #{tpu_custom_call.1} parent=11 // pred_check_branch
          %344 = sbr.rel (%p342) target = $region24
        $region23: #{tpu_custom_call.1} parent=11 // pred_region
          %s346 = ssub.s32 1024, 1024
          %347 = vsyncadd [#allocation10], %s346
          %s348 = sshll.u32 [#allocation9], 4
          %s349 = int_to_ptr.vmem [resolvable:$true] %s348
          %354 = dma.hbm_to_vmem [thread:$0]  %s3, 1024, %s349, [#allocation10], 64, 64, 4
        $region24: #{tpu_custom_call.1} parent=11 // pred_fallthru
          _
        // Predicated region
        $region25: #{tpu_custom_call.1} parent=11 // pred_check
          %p355 = pneg %p141
        $region26: #{tpu_custom_call.1} parent=11 // pred_check_branch
          %357 = sbr.rel (%p355) target = $region28
        $region27: #{tpu_custom_call.1} parent=11 // pred_region
          %s359 = ssub.s32 16, 16
          %360 = vsyncadd [#allocation10], %s359
          %s362 = sshll.u32 [#allocation11], 4
          %s363 = int_to_ptr.vmem [resolvable:$true] %s362
          %365 = dma.hbm_to_vmem [thread:$0]  %s4, 16, %s363, [#allocation10]
        $region28: #{tpu_custom_call.1} parent=11 // pred_fallthru
          _
        // Predicated region
        $region29: #{tpu_custom_call.1} parent=11 // pred_check
          %p366 = pneg %p162
        $region30: #{tpu_custom_call.1} parent=11 // pred_check_branch
          %368 = sbr.rel (%p366) target = $region32
        $region31: #{tpu_custom_call.1} parent=11 // pred_region
          %s370 = ssub.s32 1024, 1024
          %371 = vsyncadd [#allocation13], %s370
          %s372 = sshll.u32 [#allocation12], 4
          %s373 = int_to_ptr.vmem [resolvable:$true] %s372
          %378 = dma.hbm_to_vmem [thread:$0]  %s5, 1024, %s373, [#allocation13], 64, 64, 4
        $region32: #{tpu_custom_call.1} parent=11 // pred_fallthru
          _
        // Predicated region
        $region33: #{tpu_custom_call.1} parent=11 // pred_check
          %p379 = pneg %p183
        $region34: #{tpu_custom_call.1} parent=11 // pred_check_branch
          %381 = sbr.rel (%p379) target = $region36
        $region35: #{tpu_custom_call.1} parent=11 // pred_region
          %s383 = ssub.s32 16, 16
          %384 = vsyncadd [#allocation13], %s383
          %s386 = sshll.u32 [#allocation14], 4
          %s387 = int_to_ptr.vmem [resolvable:$true] %s386
          %389 = dma.hbm_to_vmem [thread:$0]  %s6, 16, %s387, [#allocation13]
        $region36: #{tpu_custom_call.1} parent=11 // pred_fallthru
          _
        // Predicated region
        $region37: #{tpu_custom_call.1} parent=11 // pred_check
          %p390 = pneg %p204
        $region38: #{tpu_custom_call.1} parent=11 // pred_check_branch
          %392 = sbr.rel (%p390) target = $region40
        $region39: #{tpu_custom_call.1} parent=11 // pred_region
          %s394 = ssub.s32 1024, 1024
          %395 = vsyncadd [#allocation16], %s394
          %s396 = sshll.u32 [#allocation15], 4
          %s397 = int_to_ptr.vmem [resolvable:$true] %s396
          %402 = dma.hbm_to_vmem [thread:$0]  %s7, 1024, %s397, [#allocation16], 64, 64, 4
        $region40: #{tpu_custom_call.1} parent=11 // pred_fallthru
          _
        // Predicated region
        $region41: #{tpu_custom_call.1} parent=11 // pred_check
          %p403 = pneg %p225
        $region42: #{tpu_custom_call.1} parent=11 // pred_check_branch
          %405 = sbr.rel (%p403) target = $region44
        $region43: #{tpu_custom_call.1} parent=11 // pred_region
          %s407 = ssub.s32 16, 16
          %408 = vsyncadd [#allocation16], %s407
          %s410 = sshll.u32 [#allocation17], 4
          %s411 = int_to_ptr.vmem [resolvable:$true] %s410
          %413 = dma.hbm_to_vmem [thread:$0]  %s8, 16, %s411, [#allocation16]
        $region44: #{tpu_custom_call.1} parent=11 // pred_fallthru
          _
      $region12: #{tpu_custom_call.1} parent=5 // pred_fallthru
        _
      %p414 = scmp.lt.s32.totalorder %s31, 2
      // Predicated region
      $region45: #{tpu_custom_call.1} parent=5 // pred_check
        %p415 = pneg %p414
      $region46: #{tpu_custom_call.1} parent=5 // pred_check_branch
        %417 = sbr.rel (%p415) target = $region48
      $region47: #{tpu_custom_call.1} parent=5 // pred_region
        // Predicated region
        $region49: #{tpu_custom_call.1} parent=47 // pred_check
          %p418 = pneg %p51
        $region50: #{tpu_custom_call.1} parent=47 // pred_check_branch
          %420 = sbr.rel (%p418) target = $region52
        $region51: #{tpu_custom_call.1} parent=47 // pred_region
          %s421 = sand.u32 %s41, 1
          %s422 = scalar_lea.sflag [#allocation4], %s421
          %s423 = sand.u32 %s41, 1
          %s424 = smul.addr %s423, 128
          %s425 = scalar_lea.vmem [#allocation3], %s424
          %s426 = smul.u32 8, %s31
          %s428 = ssub.s32 2048, 2048
          %429 = vsyncadd %s422, %s428
          %s430 = smul.addr %s426, 4
          %s431 = smul.addr %s430, 64
          %s432 = scalar_lea.hbm %s0, %s431
          %s433 = sshll.u32 %s425, 4
          %s434 = int_to_ptr.vmem [resolvable:$true] %s433
          %439 = dma.hbm_to_vmem [thread:$0]  %s432, 2048, %s434, %s422, 64, 64, 4
        $region52: #{tpu_custom_call.1} parent=47 // pred_fallthru
          _
      $region48: #{tpu_custom_call.1} parent=5 // pred_fallthru
        _
      %p440 = scmp.le.s32.totalorder 1, %s31
      %p441 = scmp.lt.s32.totalorder %s31, 3
      %p442 = pnand %p440, %p441
      %p443 = pneg %p442
      // Predicated region
      $region53: #{tpu_custom_call.1} parent=5 // pred_check
        _
      $region54: #{tpu_custom_call.1} parent=5 // pred_check_branch
        %445 = sbr.rel (%p442) target = $region56
      $region55: #{tpu_custom_call.1} parent=5 // pred_region
        %s446 = ssub.s32 %s31, 1
        %s447 = sand.u32 %s44, 1
        %s448 = scalar_lea.sflag [#allocation4], %s447
        %s449 = sand.u32 %s44, 1
        %s450 = smul.addr %s449, 128
        %s451 = scalar_lea.vmem [#allocation3], %s450
        // Predicated region
        $region57: #{tpu_custom_call.1} parent=55 // pred_check
          %p452 = pneg %p57
        $region58: #{tpu_custom_call.1} parent=55 // pred_check_branch
          %454 = sbr.rel (%p452) target = $region60
        $region59: #{tpu_custom_call.1} parent=55 // pred_region
          %455 = dma.done %s448, 2048
        $region60: #{tpu_custom_call.1} parent=55 // pred_fallthru
          _
        // Predicated region
        $region61: #{tpu_custom_call.1} parent=55 // pred_check
          %p456 = pneg %p78
        $region62: #{tpu_custom_call.1} parent=55 // pred_check_branch
          %458 = sbr.rel (%p456) target = $region64
        $region63: #{tpu_custom_call.1} parent=55 // pred_region
          %459 = dma.done [#allocation7], 768
        $region64: #{tpu_custom_call.1} parent=55 // pred_fallthru
          _
        // Predicated region
        $region65: #{tpu_custom_call.1} parent=55 // pred_check
          %p460 = pneg %p99
        $region66: #{tpu_custom_call.1} parent=55 // pred_check_branch
          %462 = sbr.rel (%p460) target = $region68
        $region67: #{tpu_custom_call.1} parent=55 // pred_region
          %463 = dma.done [#allocation7], 16
        $region68: #{tpu_custom_call.1} parent=55 // pred_fallthru
          _
        // Predicated region
        $region69: #{tpu_custom_call.1} parent=55 // pred_check
          %p464 = pneg %p120
        $region70: #{tpu_custom_call.1} parent=55 // pred_check_branch
          %466 = sbr.rel (%p464) target = $region72
        $region71: #{tpu_custom_call.1} parent=55 // pred_region
          %467 = dma.done [#allocation10], 1024
        $region72: #{tpu_custom_call.1} parent=55 // pred_fallthru
          _
        // Predicated region
        $region73: #{tpu_custom_call.1} parent=55 // pred_check
          %p468 = pneg %p141
        $region74: #{tpu_custom_call.1} parent=55 // pred_check_branch
          %470 = sbr.rel (%p468) target = $region76
        $region75: #{tpu_custom_call.1} parent=55 // pred_region
          %471 = dma.done [#allocation10], 16
        $region76: #{tpu_custom_call.1} parent=55 // pred_fallthru
          _
        // Predicated region
        $region77: #{tpu_custom_call.1} parent=55 // pred_check
          %p472 = pneg %p162
        $region78: #{tpu_custom_call.1} parent=55 // pred_check_branch
          %474 = sbr.rel (%p472) target = $region80
        $region79: #{tpu_custom_call.1} parent=55 // pred_region
          %475 = dma.done [#allocation13], 1024
        $region80: #{tpu_custom_call.1} parent=55 // pred_fallthru
          _
        // Predicated region
        $region81: #{tpu_custom_call.1} parent=55 // pred_check
          %p476 = pneg %p183
        $region82: #{tpu_custom_call.1} parent=55 // pred_check_branch
          %478 = sbr.rel (%p476) target = $region84
        $region83: #{tpu_custom_call.1} parent=55 // pred_region
          %479 = dma.done [#allocation13], 16
        $region84: #{tpu_custom_call.1} parent=55 // pred_fallthru
          _
        // Predicated region
        $region85: #{tpu_custom_call.1} parent=55 // pred_check
          %p480 = pneg %p204
        $region86: #{tpu_custom_call.1} parent=55 // pred_check_branch
          %482 = sbr.rel (%p480) target = $region88
        $region87: #{tpu_custom_call.1} parent=55 // pred_region
          %483 = dma.done [#allocation16], 1024
        $region88: #{tpu_custom_call.1} parent=55 // pred_fallthru
          _
        // Predicated region
        $region89: #{tpu_custom_call.1} parent=55 // pred_check
          %p484 = pneg %p225
        $region90: #{tpu_custom_call.1} parent=55 // pred_check_branch
          %486 = sbr.rel (%p484) target = $region92
        $region91: #{tpu_custom_call.1} parent=55 // pred_region
          %487 = dma.done [#allocation16], 16
        $region92: #{tpu_custom_call.1} parent=55 // pred_fallthru
          _
        %s488 = sand.u32 %s44, 1
        %s489 = scalar_lea.sflag [#allocation4], %s488
        %s490 = sand.u32 %s44, 1
        %s491 = smul.addr %s490, 128
        %s492 = scalar_lea.vmem [#allocation3], %s491
        %p493 = pneg %p57
        %p494 = pneg %p54
        %p495 = pneg %p78
        %p496 = pneg %p75
        %p497 = pneg %p99
        %p498 = pneg %p96
        %p499 = pneg %p120
        %p500 = pneg %p117
        %p501 = pneg %p141
        %p502 = pneg %p138
        %p503 = pneg %p162
        %p504 = pneg %p159
        %p505 = pneg %p183
        %p506 = pneg %p180
        %p507 = pneg %p204
        %p508 = pneg %p201
        %p509 = pneg %p225
        %p510 = pneg %p222
        %p511 = pneg %p251
        %p512 = pneg %p248
        %s513 = sand.u32 %s238, 1
        %s514 = scalar_lea.sflag [#allocation5], %s513
        %s515 = sand.u32 %s238, 1
        %s516 = smul.addr %s515, 8
        %s517 = scalar_lea.vmem [#allocation18], %s516
        %p518 = pneg %p277
        %p519 = pneg %p274
        %s520 = sand.u32 %s36, 1
        %s521 = scalar_lea.sflag [#allocation20], %s520
        %s522 = sand.u32 %s264, 1
        %s523 = smul.addr %s522, 8
        %s524 = scalar_lea.vmem [#allocation19], %s523
        %p525 = pneg %p303
        %p526 = pneg %p300
        %s527 = sand.u32 %s36, 1
        %s528 = scalar_lea.sflag [#allocation20], %s527
        %s529 = sand.u32 %s290, 1
        %s530 = smul.addr %s529, 8
        %s531 = scalar_lea.vmem [#allocation21], %s530
        %s532 = smul.u32 8, %s36
        %v534 = vld [vmem:[%s451] sm:$0xf]
        %v535 = vld [vmem:[%s451 + $0x4] sm:$0xf]
        %v536 = vld [vmem:[%s451 + $0x10] sm:$0xf]
        %v537 = vld [vmem:[%s451 + $0x14] sm:$0xf]
        %v538 = vld [vmem:[%s451 + $0x20] sm:$0xf]
        %v539 = vld [vmem:[%s451 + $0x24] sm:$0xf]
        %v540 = vld [vmem:[%s451 + $0x30] sm:$0xf]
        %v541 = vld [vmem:[%s451 + $0x34] sm:$0xf]
        %v542 = vld [vmem:[%s451 + $0x40] sm:$0xf]
        %v543 = vld [vmem:[%s451 + $0x44] sm:$0xf]
        %v544 = vld [vmem:[%s451 + $0x50] sm:$0xf]
        %v545 = vld [vmem:[%s451 + $0x54] sm:$0xf]
        %v546 = vld [vmem:[%s451 + $0x60] sm:$0xf]
        %v547 = vld [vmem:[%s451 + $0x64] sm:$0xf]
        %v548 = vld [vmem:[%s451 + $0x70] sm:$0xf]
        %v549 = vld [vmem:[%s451 + $0x74] sm:$0xf]
        %v550 = vld [vmem:[%s451 + $0x8] sm:$0x1]
        %v551 = vld [vmem:[%s451 + $0x18] sm:$0x1]
        %v552 = vld [vmem:[%s451 + $0x28] sm:$0x1]
        %v553 = vld [vmem:[%s451 + $0x38] sm:$0x1]
        %v554 = vld [vmem:[%s451 + $0x48] sm:$0x1]
        %v555 = vld [vmem:[%s451 + $0x58] sm:$0x1]
        %v556 = vld [vmem:[%s451 + $0x68] sm:$0x1]
        %v557 = vld [vmem:[%s451 + $0x78] sm:$0x1]
        %v558 = vld [vmem:[%s451] sm:$0xe]
        %v559 = vld [vmem:[%s451 + $0x10] sm:$0xe]
        %v560 = vld [vmem:[%s451 + $0x20] sm:$0xe]
        %v561 = vld [vmem:[%s451 + $0x30] sm:$0xe]
        %v562 = vld [vmem:[%s451 + $0x40] sm:$0xe]
        %v563 = vld [vmem:[%s451 + $0x50] sm:$0xe]
        %v564 = vld [vmem:[%s451 + $0x60] sm:$0xe]
        %v565 = vld [vmem:[%s451 + $0x70] sm:$0xe]
        %v582 = vunpack.c.l.b16 %v534
        %v583 = vunpack.c.l.b16 %v535
        %v584 = vunpack.c.l.b16 %v536
        %v585 = vunpack.c.l.b16 %v537
        %v586 = vunpack.c.l.b16 %v538
        %v587 = vunpack.c.l.b16 %v539
        %v588 = vunpack.c.l.b16 %v540
        %v589 = vunpack.c.l.b16 %v541
        %v590 = vunpack.c.l.b16 %v542
        %v591 = vunpack.c.l.b16 %v543
        %v592 = vunpack.c.l.b16 %v544
        %v593 = vunpack.c.l.b16 %v545
        %v594 = vunpack.c.l.b16 %v546
        %v595 = vunpack.c.l.b16 %v547
        %v596 = vunpack.c.l.b16 %v548
        %v597 = vunpack.c.l.b16 %v549
        %v598 = vpack.c.b16 %v583, %v582
        %v599 = vpack.c.b16 %v585, %v584
        %v600 = vpack.c.b16 %v587, %v586
        %v601 = vpack.c.b16 %v589, %v588
        %v602 = vpack.c.b16 %v591, %v590
        %v603 = vpack.c.b16 %v593, %v592
        %v604 = vpack.c.b16 %v595, %v594
        %v605 = vpack.c.b16 %v597, %v596
        %v614 = vunpack.c.l.b16 %v550
        %v615 = vunpack.c.l.b16 %v551
        %v616 = vunpack.c.l.b16 %v552
        %v617 = vunpack.c.l.b16 %v553
        %v618 = vunpack.c.l.b16 %v554
        %v619 = vunpack.c.l.b16 %v555
        %v620 = vunpack.c.l.b16 %v556
        %v621 = vunpack.c.l.b16 %v557
        %v622 = vpack.c.b16 %v614, %v614
        %v623 = vpack.c.b16 %v615, %v615
        %v624 = vpack.c.b16 %v616, %v616
        %v625 = vpack.c.b16 %v617, %v617
        %v626 = vpack.c.b16 %v618, %v618
        %v627 = vpack.c.b16 %v619, %v619
        %v628 = vpack.c.b16 %v620, %v620
        %v629 = vpack.c.b16 %v621, %v621
        %vm630 = vsmask.f32 7424
        %v632 = vshrl.u32 %v598, 16
        %v634 = vshll.u32 %v598, 16
        %v636 = vrot.slane %v634, 1
        %v637 = vor.u32 %v632, %v636
        %v639 = vshll.u32 %v622, 16
        %v641 = vrot.slane %v639, 1
        %v642 = vsel %vm630, %v637, %v641
        %v644 = vshrl.u32 %v599, 16
        %v646 = vshll.u32 %v599, 16
        %v648 = vrot.slane %v646, 1
        %v649 = vor.u32 %v644, %v648
        %v651 = vshll.u32 %v623, 16
        %v653 = vrot.slane %v651, 1
        %v654 = vsel %vm630, %v649, %v653
        %v656 = vshrl.u32 %v600, 16
        %v658 = vshll.u32 %v600, 16
        %v660 = vrot.slane %v658, 1
        %v661 = vor.u32 %v656, %v660
        %v663 = vshll.u32 %v624, 16
        %v665 = vrot.slane %v663, 1
        %v666 = vsel %vm630, %v661, %v665
        %v668 = vshrl.u32 %v601, 16
        %v670 = vshll.u32 %v601, 16
        %v672 = vrot.slane %v670, 1
        %v673 = vor.u32 %v668, %v672
        %v675 = vshll.u32 %v625, 16
        %v677 = vrot.slane %v675, 1
        %v678 = vsel %vm630, %v673, %v677
        %v680 = vshrl.u32 %v602, 16
        %v682 = vshll.u32 %v602, 16
        %v684 = vrot.slane %v682, 1
        %v685 = vor.u32 %v680, %v684
        %v687 = vshll.u32 %v626, 16
        %v689 = vrot.slane %v687, 1
        %v690 = vsel %vm630, %v685, %v689
        %v692 = vshrl.u32 %v603, 16
        %v694 = vshll.u32 %v603, 16
        %v696 = vrot.slane %v694, 1
        %v697 = vor.u32 %v692, %v696
        %v699 = vshll.u32 %v627, 16
        %v701 = vrot.slane %v699, 1
        %v702 = vsel %vm630, %v697, %v701
        %v704 = vshrl.u32 %v604, 16
        %v706 = vshll.u32 %v604, 16
        %v708 = vrot.slane %v706, 1
        %v709 = vor.u32 %v704, %v708
        %v711 = vshll.u32 %v628, 16
        %v713 = vrot.slane %v711, 1
        %v714 = vsel %vm630, %v709, %v713
        %v716 = vshrl.u32 %v605, 16
        %v718 = vshll.u32 %v605, 16
        %v720 = vrot.slane %v718, 1
        %v721 = vor.u32 %v716, %v720
        %v723 = vshll.u32 %v629, 16
        %v725 = vrot.slane %v723, 1
        %v726 = vsel %vm630, %v721, %v725
        %727 = vrot.lane.b32.xlu0 %v642, 32
        %v728 = vpop.permute.xlu0 %727
        %729 = vrot.lane.b32.xlu0 %v654, 32
        %v730 = vpop.permute.xlu0 %729
        %731 = vrot.lane.b32.xlu0 %v666, 32
        %v732 = vpop.permute.xlu0 %731
        %733 = vrot.lane.b32.xlu0 %v678, 32
        %v734 = vpop.permute.xlu0 %733
        %735 = vrot.lane.b32.xlu0 %v690, 32
        %v736 = vpop.permute.xlu0 %735
        %737 = vrot.lane.b32.xlu0 %v702, 32
        %v738 = vpop.permute.xlu0 %737
        %739 = vrot.lane.b32.xlu0 %v714, 32
        %v740 = vpop.permute.xlu0 %739
        %741 = vrot.lane.b32.xlu0 %v726, 32
        %v742 = vpop.permute.xlu0 %741
        %v751 = vunpack.c.l.b16 %v558
        %v752 = vunpack.c.l.b16 %v559
        %v753 = vunpack.c.l.b16 %v560
        %v754 = vunpack.c.l.b16 %v561
        %v755 = vunpack.c.l.b16 %v562
        %v756 = vunpack.c.l.b16 %v563
        %v757 = vunpack.c.l.b16 %v564
        %v758 = vunpack.c.l.b16 %v565
        %v759 = vpack.c.b16 %v583, %v751
        %v760 = vpack.c.b16 %v585, %v752
        %v761 = vpack.c.b16 %v587, %v753
        %v762 = vpack.c.b16 %v589, %v754
        %v763 = vpack.c.b16 %v591, %v755
        %v764 = vpack.c.b16 %v593, %v756
        %v765 = vpack.c.b16 %v595, %v757
        %v766 = vpack.c.b16 %v597, %v758
        %vm767 = vcmask 1046528
        %v768 = vrot.slane %v759, 1
        %v769 = vrot.slane %v622, 1
        %v770 = vsel %vm767, %v768, %v769
        %v771 = vrot.slane %v760, 1
        %v772 = vrot.slane %v623, 1
        %v773 = vsel %vm767, %v771, %v772
        %v774 = vrot.slane %v761, 1
        %v775 = vrot.slane %v624, 1
        %v776 = vsel %vm767, %v774, %v775
        %v777 = vrot.slane %v762, 1
        %v778 = vrot.slane %v625, 1
        %v779 = vsel %vm767, %v777, %v778
        %v780 = vrot.slane %v763, 1
        %v781 = vrot.slane %v626, 1
        %v782 = vsel %vm767, %v780, %v781
        %v783 = vrot.slane %v764, 1
        %v784 = vrot.slane %v627, 1
        %v785 = vsel %vm767, %v783, %v784
        %v786 = vrot.slane %v765, 1
        %v787 = vrot.slane %v628, 1
        %v788 = vsel %vm767, %v786, %v787
        %v789 = vrot.slane %v766, 1
        %v790 = vrot.slane %v629, 1
        %v791 = vsel %vm767, %v789, %v790
        %792 = vrot.lane.b32.xlu0 %v770, 64
        %v793 = vpop.permute.xlu0 %792
        %794 = vrot.lane.b32.xlu0 %v773, 64
        %v795 = vpop.permute.xlu0 %794
        %796 = vrot.lane.b32.xlu0 %v776, 64
        %v797 = vpop.permute.xlu0 %796
        %798 = vrot.lane.b32.xlu0 %v779, 64
        %v799 = vpop.permute.xlu0 %798
        %800 = vrot.lane.b32.xlu0 %v782, 64
        %v801 = vpop.permute.xlu0 %800
        %802 = vrot.lane.b32.xlu0 %v785, 64
        %v803 = vpop.permute.xlu0 %802
        %804 = vrot.lane.b32.xlu0 %v788, 64
        %v805 = vpop.permute.xlu0 %804
        %806 = vrot.lane.b32.xlu0 %v791, 64
        %v807 = vpop.permute.xlu0 %806
        %vm808 = vcmask 261120
        %v810 = vsel %vm808, %v598, %v728
        %v812 = vsel %vm808, %v599, %v730
        %v814 = vsel %vm808, %v600, %v732
        %v816 = vsel %vm808, %v601, %v734
        %v818 = vsel %vm808, %v602, %v736
        %v820 = vsel %vm808, %v603, %v738
        %v822 = vsel %vm808, %v604, %v740
        %v824 = vsel %vm808, %v605, %v742
        %vm825 = vcmask 523264
        %v827 = vsel %vm825, %v810, %v793
        %v829 = vsel %vm825, %v812, %v795
        %v831 = vsel %vm825, %v814, %v797
        %v833 = vsel %vm825, %v816, %v799
        %v835 = vsel %vm825, %v818, %v801
        %v837 = vsel %vm825, %v820, %v803
        %v839 = vsel %vm825, %v822, %v805
        %v841 = vsel %vm825, %v824, %v807
        %v842 = vld [vmem:[#allocation6] sm:$0xf]
        %v843 = vld [vmem:[#allocation6 + $0x4] sm:$0xf]
        %v844 = vld [vmem:[#allocation6 + $0x8] sm:$0xf]
        %v845 = vld [vmem:[#allocation6 + $0xc] sm:$0xf]
        %v846 = vld [vmem:[#allocation6 + $0x10] sm:$0xf]
        %v847 = vld [vmem:[#allocation6 + $0x14] sm:$0xf]
        %v848 = vld [vmem:[#allocation6 + $0x18] sm:$0xf]
        %v849 = vld [vmem:[#allocation6 + $0x1c] sm:$0xf]
        %v850 = vld [vmem:[#allocation6 + $0x20] sm:$0xf]
        %v851 = vld [vmem:[#allocation6 + $0x24] sm:$0xf]
        %v852 = vld [vmem:[#allocation6 + $0x28] sm:$0xf]
        %v853 = vld [vmem:[#allocation6 + $0x2c] sm:$0xf]
        %v866 = vunpack.c.l.b16 %v842
        %v867 = vunpack.c.l.b16 %v843
        %v868 = vunpack.c.l.b16 %v844
        %v869 = vunpack.c.l.b16 %v845
        %v870 = vunpack.c.l.b16 %v846
        %v871 = vunpack.c.l.b16 %v847
        %v872 = vunpack.c.l.b16 %v848
        %v873 = vunpack.c.l.b16 %v849
        %v874 = vunpack.c.l.b16 %v850
        %v875 = vunpack.c.l.b16 %v851
        %v876 = vunpack.c.l.b16 %v852
        %v877 = vunpack.c.l.b16 %v853
        %v878 = vpack.c.b16 %v867, %v866
        %v879 = vpack.c.b16 %v869, %v868
        %v880 = vpack.c.b16 %v871, %v870
        %v881 = vpack.c.b16 %v873, %v872
        %v882 = vpack.c.b16 %v875, %v874
        %v883 = vpack.c.b16 %v877, %v876
        %vm890 = vcmask 785408
        %v891 = vsel %vm890, %v827, 0
        %v893 = vsel %vm890, %v829, 0
        %v895 = vsel %vm890, %v831, 0
        %v897 = vsel %vm890, %v833, 0
        %v899 = vsel %vm890, %v835, 0
        %v901 = vsel %vm890, %v837, 0
        %v903 = vsel %vm890, %v839, 0
        %v905 = vsel %vm890, %v841, 0
        %907 = vmatprep.subr.bf16.mxu0 0
        %908 = vmatpush1.bf16.msra.mxu0 %v878
        %909 = vmatprep.subr.bf16.mxu0 0
        %910 = vmatpush1.bf16.msra.mxu0 %v879
        %911 = vmatprep.subr.bf16.mxu0 0
        %912 = vmatpush1.bf16.msra.mxu0 %v880
        %913 = vmatprep.subr.bf16.mxu0 0
        %914 = vmatpush1.bf16.msra.mxu0 %v881
        %915 = vmatprep.subr.bf16.mxu0 0
        %916 = vmatpush1.bf16.msra.mxu0 %v882
        %917 = vmatprep.subr.bf16.mxu0 0
        %918 = vmatpush1.bf16.msra.mxu0 %v883
        %919 = vmatprep.subr.bf16.mxu0 0
        %920 = vmatpush1.bf16.msra.mxu0 0
        %921 = vmatprep.subr.bf16.mxu0 0
        %922 = vmatpush1.bf16.msra.mxu0 0
        %923 = vmatprep.subr.bf16.mxu0 0
        %924 = vmatpush1.bf16.msra.mxu0 0
        %925 = vmatprep.subr.bf16.mxu0 0
        %926 = vmatpush1.bf16.msra.mxu0 0
        %927 = vmatprep.subr.bf16.mxu0 0
        %928 = vmatpush1.bf16.msra.mxu0 0
        %929 = vmatprep.subr.bf16.mxu0 0
        %930 = vmatpush1.bf16.msra.mxu0 0
        %931 = vmatprep.subr.bf16.mxu0 0
        %932 = vmatpush1.bf16.msra.mxu0 0
        %933 = vmatprep.subr.bf16.mxu0 0
        %934 = vmatpush1.bf16.msra.mxu0 0
        %935 = vmatprep.subr.bf16.mxu0 0
        %936 = vmatpush1.bf16.msra.mxu0 0
        %937 = vmatprep.subr.bf16.mxu0 0
        %938 = vmatpush1.bf16.msra.mxu0 0
        %939 = vmatprep.mubr.bf16.mxu0 0
        %940 = vmatmul.mubr.bf16.gmra.mrb[0].mxu0 %v891
        %v941 = vpop.f32.mrb[0].mxu0
        %v942 = vadd.f32 0.0, %v941
        %v943 = vpop.f32.mrb[0].mxu0
        %v944 = vpop.f32.mrb[0].mxu0
        %v945 = vadd.f32 0.0, %v944
        %v946 = vpop.f32.mrb[0].mxu0
        %947 = vmatprep.mubr.bf16.mxu0 0
        %948 = vmatmul.mubr.bf16.gmra.mrb[0].mxu0 %v893
        %v949 = vpop.f32.mrb[0].mxu0
        %v950 = vadd.f32 0.0, %v949
        %v951 = vpop.f32.mrb[0].mxu0
        %v952 = vpop.f32.mrb[0].mxu0
        %v953 = vadd.f32 0.0, %v952
        %v954 = vpop.f32.mrb[0].mxu0
        %955 = vmatprep.mubr.bf16.mxu0 0
        %956 = vmatmul.mubr.bf16.gmra.mrb[0].mxu0 %v895
        %v957 = vpop.f32.mrb[0].mxu0
        %v958 = vadd.f32 0.0, %v957
        %v959 = vpop.f32.mrb[0].mxu0
        %v960 = vpop.f32.mrb[0].mxu0
        %v961 = vadd.f32 0.0, %v960
        %v962 = vpop.f32.mrb[0].mxu0
        %963 = vmatprep.mubr.bf16.mxu0 0
        %964 = vmatmul.mubr.bf16.gmra.mrb[0].mxu0 %v897
        %v965 = vpop.f32.mrb[0].mxu0
        %v966 = vadd.f32 0.0, %v965
        %v967 = vpop.f32.mrb[0].mxu0
        %v968 = vpop.f32.mrb[0].mxu0
        %v969 = vadd.f32 0.0, %v968
        %v970 = vpop.f32.mrb[0].mxu0
        %971 = vmatprep.mubr.bf16.mxu0 0
        %972 = vmatmul.mubr.bf16.gmra.mrb[0].mxu0 %v899
        %v973 = vpop.f32.mrb[0].mxu0
        %v974 = vadd.f32 0.0, %v973
        %v975 = vpop.f32.mrb[0].mxu0
        %v976 = vpop.f32.mrb[0].mxu0
        %v977 = vadd.f32 0.0, %v976
        %v978 = vpop.f32.mrb[0].mxu0
        %979 = vmatprep.mubr.bf16.mxu0 0
        %980 = vmatmul.mubr.bf16.gmra.mrb[0].mxu0 %v901
        %v981 = vpop.f32.mrb[0].mxu0
        %v982 = vadd.f32 0.0, %v981
        %v983 = vpop.f32.mrb[0].mxu0
        %v984 = vpop.f32.mrb[0].mxu0
        %v985 = vadd.f32 0.0, %v984
        %v986 = vpop.f32.mrb[0].mxu0
        %987 = vmatprep.mubr.bf16.mxu0 0
        %988 = vmatmul.mubr.bf16.gmra.mrb[0].mxu0 %v903
        %v989 = vpop.f32.mrb[0].mxu0
        %v990 = vadd.f32 0.0, %v989
        %v991 = vpop.f32.mrb[0].mxu0
        %v992 = vpop.f32.mrb[0].mxu0
        %v993 = vadd.f32 0.0, %v992
        %v994 = vpop.f32.mrb[0].mxu0
        %995 = vmatprep.mubr.bf16.mxu0 0
        %996 = vmatmul.mubr.bf16.gmra.mrb[0].mxu0 %v905
        %v997 = vpop.f32.mrb[0].mxu0
        %v998 = vadd.f32 0.0, %v997
        %v999 = vpop.f32.mrb[0].mxu0
        %v1000 = vpop.f32.mrb[0].mxu0
        %v1001 = vadd.f32 0.0, %v1000
        %v1002 = vpop.f32.mrb[0].mxu0
        %1003 = vdwg.mxu0
        %1004 = vst [vmem:[#allocation2] sm:$0xff] %v942
        %1005 = vst [vmem:[#allocation2 + $0x8] sm:$0xff] %v945
        %1006 = vst [vmem:[#allocation2 + $0x10] sm:$0xff] %v950
        %1007 = vst [vmem:[#allocation2 + $0x18] sm:$0xff] %v953
        %1008 = vst [vmem:[#allocation2 + $0x20] sm:$0xff] %v958
        %1009 = vst [vmem:[#allocation2 + $0x28] sm:$0xff] %v961
        %1010 = vst [vmem:[#allocation2 + $0x30] sm:$0xff] %v966
        %1011 = vst [vmem:[#allocation2 + $0x38] sm:$0xff] %v969
        %1012 = vst [vmem:[#allocation2 + $0x40] sm:$0xff] %v974
        %1013 = vst [vmem:[#allocation2 + $0x48] sm:$0xff] %v977
        %1014 = vst [vmem:[#allocation2 + $0x50] sm:$0xff] %v982
        %1015 = vst [vmem:[#allocation2 + $0x58] sm:$0xff] %v985
        %1016 = vst [vmem:[#allocation2 + $0x60] sm:$0xff] %v990
        %1017 = vst [vmem:[#allocation2 + $0x68] sm:$0xff] %v993
        %1018 = vst [vmem:[#allocation2 + $0x70] sm:$0xff] %v998
        %1019 = vst [vmem:[#allocation2 + $0x78] sm:$0xff] %v1001
        %v1020 = vld [vmem:[#allocation2] sm:$0xff]
        %v1021 = vld [vmem:[#allocation2 + $0x8] sm:$0xff]
        %v1022 = vld [vmem:[#allocation2 + $0x10] sm:$0xff]
        %v1023 = vld [vmem:[#allocation2 + $0x18] sm:$0xff]
        %v1024 = vld [vmem:[#allocation2 + $0x20] sm:$0xff]
        %v1025 = vld [vmem:[#allocation2 + $0x28] sm:$0xff]
        %v1026 = vld [vmem:[#allocation2 + $0x30] sm:$0xff]
        %v1027 = vld [vmem:[#allocation2 + $0x38] sm:$0xff]
        %v1028 = vld [vmem:[#allocation2 + $0x40] sm:$0xff]
        %v1029 = vld [vmem:[#allocation2 + $0x48] sm:$0xff]
        %v1030 = vld [vmem:[#allocation2 + $0x50] sm:$0xff]
        %v1031 = vld [vmem:[#allocation2 + $0x58] sm:$0xff]
        %v1032 = vld [vmem:[#allocation2 + $0x60] sm:$0xff]
        %v1033 = vld [vmem:[#allocation2 + $0x68] sm:$0xff]
        %v1034 = vld [vmem:[#allocation2 + $0x70] sm:$0xff]
        %v1035 = vld [vmem:[#allocation2 + $0x78] sm:$0xff]
        %v1036 = vlaneseq
        %v1037 = vshrl.u32 %v1036, 7
        %v1038 = vadd.s32 %v1037, 8
        %v1039 = vlaneseq
        %v1040 = vand.u32 %v1039, 127
        %vm1041 = vcmp.ge.s32.totalorder %v1040, 0
        %vm1042 = vcmp.lt.s32.totalorder %v1040, 16
        %vm1043 = vmand %vm1041, %vm1042
        %vm1044 = vcmp.lt.s32.totalorder %v1037, 7
        %vm1045 = vcmp.lt.s32.totalorder %v1038, 7
        %vm1046 = vmand %vm1043, %vm1044
        %vm1047 = vmand %vm1043, %vm1045
        %vm1048 = vcmp.ge.s32.totalorder %v1040, 16
        %vm1049 = vcmp.lt.s32.totalorder %v1040, 32
        %vm1050 = vmand %vm1048, %vm1049
        %vm1051 = vcmp.lt.s32.totalorder %v1037, 6
        %vm1052 = vcmp.lt.s32.totalorder %v1038, 6
        %vm1053 = vmand %vm1050, %vm1051
        %vm1054 = vmand %vm1050, %vm1052
        %vm1055 = vmor %vm1046, %vm1053
        %vm1056 = vmor %vm1047, %vm1054
        %v1057 = vsel %vm1055, 0.0, -1e+30
        %v1058 = vsel %vm1056, 0.0, -1e+30
        %v1059 = vadd.f32 %v1020, %v1057
        %v1060 = vadd.f32 %v1021, %v1058
        %v1061 = vadd.f32 %v1022, %v1057
        %v1062 = vadd.f32 %v1023, %v1058
        %v1063 = vadd.f32 %v1024, %v1057
        %v1064 = vadd.f32 %v1025, %v1058
        %v1065 = vadd.f32 %v1026, %v1057
        %v1066 = vadd.f32 %v1027, %v1058
        %v1067 = vadd.f32 %v1028, %v1057
        %v1068 = vadd.f32 %v1029, %v1058
        %v1069 = vadd.f32 %v1030, %v1057
        %v1070 = vadd.f32 %v1031, %v1058
        %v1071 = vadd.f32 %v1032, %v1057
        %v1072 = vadd.f32 %v1033, %v1058
        %v1073 = vadd.f32 %v1034, %v1057
        %v1074 = vadd.f32 %v1035, %v1058
        %v1075 = vmax.f32 %v1059, %v1060
        %v1076 = vrot.slane %v1075, 4
        %v1077 = vmax.f32 %v1075, %v1076
        %v1078 = vrot.slane %v1077, 2
        %v1079 = vmax.f32 %v1077, %v1078
        %v1080 = vrot.slane %v1079, 1
        %v1081 = vmax.f32 %v1079, %v1080
        %v1082 = vmax.f32 %v1061, %v1062
        %v1083 = vrot.slane %v1082, 4
        %v1084 = vmax.f32 %v1082, %v1083
        %v1085 = vrot.slane %v1084, 2
        %v1086 = vmax.f32 %v1084, %v1085
        %v1087 = vrot.slane %v1086, 1
        %v1088 = vmax.f32 %v1086, %v1087
        %v1089 = vmax.f32 %v1063, %v1064
        %v1090 = vrot.slane %v1089, 4
        %v1091 = vmax.f32 %v1089, %v1090
        %v1092 = vrot.slane %v1091, 2
        %v1093 = vmax.f32 %v1091, %v1092
        %v1094 = vrot.slane %v1093, 1
        %v1095 = vmax.f32 %v1093, %v1094
        %v1096 = vmax.f32 %v1065, %v1066
        %v1097 = vrot.slane %v1096, 4
        %v1098 = vmax.f32 %v1096, %v1097
        %v1099 = vrot.slane %v1098, 2
        %v1100 = vmax.f32 %v1098, %v1099
        %v1101 = vrot.slane %v1100, 1
        %v1102 = vmax.f32 %v1100, %v1101
        %v1103 = vmax.f32 %v1067, %v1068
        %v1104 = vrot.slane %v1103, 4
        %v1105 = vmax.f32 %v1103, %v1104
        %v1106 = vrot.slane %v1105, 2
        %v1107 = vmax.f32 %v1105, %v1106
        %v1108 = vrot.slane %v1107, 1
        %v1109 = vmax.f32 %v1107, %v1108
        %v1110 = vmax.f32 %v1069, %v1070
        %v1111 = vrot.slane %v1110, 4
        %v1112 = vmax.f32 %v1110, %v1111
        %v1113 = vrot.slane %v1112, 2
        %v1114 = vmax.f32 %v1112, %v1113
        %v1115 = vrot.slane %v1114, 1
        %v1116 = vmax.f32 %v1114, %v1115
        %v1117 = vmax.f32 %v1071, %v1072
        %v1118 = vrot.slane %v1117, 4
        %v1119 = vmax.f32 %v1117, %v1118
        %v1120 = vrot.slane %v1119, 2
        %v1121 = vmax.f32 %v1119, %v1120
        %v1122 = vrot.slane %v1121, 1
        %v1123 = vmax.f32 %v1121, %v1122
        %v1124 = vmax.f32 %v1073, %v1074
        %v1125 = vrot.slane %v1124, 4
        %v1126 = vmax.f32 %v1124, %v1125
        %v1127 = vrot.slane %v1126, 2
        %v1128 = vmax.f32 %v1126, %v1127
        %v1129 = vrot.slane %v1128, 1
        %v1130 = vmax.f32 %v1128, %v1129
        %v1131 = vld [vmem:[#allocation8] sm:$0x1]
        %v1133 = vlaneseq
        %v1134 = vshrl.u32 %v1133, 7
        %v1135 = vsub.s32 0, %v1134
        %v1136 = vrot.slane %v1131, %v1135
        %v1138 = vadd.f32 %v1081, %v1136
        %v1139 = vadd.f32 %v1088, %v1136
        %v1140 = vadd.f32 %v1095, %v1136
        %v1141 = vadd.f32 %v1102, %v1136
        %v1142 = vadd.f32 %v1109, %v1136
        %v1143 = vadd.f32 %v1116, %v1136
        %v1144 = vadd.f32 %v1123, %v1136
        %v1145 = vadd.f32 %v1130, %v1136
        %v1146 = vmax.f32 %v1138, 0.0
        %v1147 = vmax.f32 %v1139, 0.0
        %v1148 = vmax.f32 %v1140, 0.0
        %v1149 = vmax.f32 %v1141, 0.0
        %v1150 = vmax.f32 %v1142, 0.0
        %v1151 = vmax.f32 %v1143, 0.0
        %v1152 = vmax.f32 %v1144, 0.0
        %v1153 = vmax.f32 %v1145, 0.0
        %v1154 = vpack.c.bf16 %v1146, %v1146
        %v1155 = vpack.c.bf16 %v1147, %v1147
        %v1156 = vpack.c.bf16 %v1148, %v1148
        %v1157 = vpack.c.bf16 %v1149, %v1149
        %v1158 = vpack.c.bf16 %v1150, %v1150
        %v1159 = vpack.c.bf16 %v1151, %v1151
        %v1160 = vpack.c.bf16 %v1152, %v1152
        %v1161 = vpack.c.bf16 %v1153, %v1153
        %v1162 = vld [vmem:[#allocation9] sm:$0xf]
        %v1163 = vld [vmem:[#allocation9 + $0x4] sm:$0xf]
        %v1164 = vld [vmem:[#allocation9 + $0x8] sm:$0xf]
        %v1165 = vld [vmem:[#allocation9 + $0xc] sm:$0xf]
        %v1166 = vld [vmem:[#allocation9 + $0x10] sm:$0xf]
        %v1167 = vld [vmem:[#allocation9 + $0x14] sm:$0xf]
        %v1168 = vld [vmem:[#allocation9 + $0x18] sm:$0xf]
        %v1169 = vld [vmem:[#allocation9 + $0x1c] sm:$0xf]
        %v1170 = vld [vmem:[#allocation9 + $0x20] sm:$0xf]
        %v1171 = vld [vmem:[#allocation9 + $0x24] sm:$0xf]
        %v1172 = vld [vmem:[#allocation9 + $0x28] sm:$0xf]
        %v1173 = vld [vmem:[#allocation9 + $0x2c] sm:$0xf]
        %v1174 = vld [vmem:[#allocation9 + $0x30] sm:$0xf]
        %v1175 = vld [vmem:[#allocation9 + $0x34] sm:$0xf]
        %v1176 = vld [vmem:[#allocation9 + $0x38] sm:$0xf]
        %v1177 = vld [vmem:[#allocation9 + $0x3c] sm:$0xf]
        %v1178 = vld [vmem:[#allocation11] sm:$0x1]
        %v1180 = vlaneseq
        %v1181 = vshrl.u32 %v1180, 7
        %v1182 = vsub.s32 0, %v1181
        %v1183 = vrot.slane %v1178, %v1182
        %v1193 = vunpack.c.l.b16 %v1154
        %v1194 = vunpack.c.l.b16 %v1155
        %v1195 = vunpack.c.l.b16 %v1156
        %v1196 = vunpack.c.l.b16 %v1157
        %v1197 = vunpack.c.l.b16 %v1158
        %v1198 = vunpack.c.l.b16 %v1159
        %v1199 = vunpack.c.l.b16 %v1160
        %v1200 = vunpack.c.l.b16 %v1161
        %v1201 = vrot.slane %v1194, 7
        %vm1202 = vcmask 1041409
        %v1203 = vsel %vm1202, %v1201, %v1193
        %v1204 = vrot.slane %v1195, 6
        %vm1205 = vcmask 1042434
        %v1206 = vsel %vm1205, %v1204, %v1203
        %v1207 = vrot.slane %v1196, 5
        %vm1208 = vcmask 1043459
        %v1209 = vsel %vm1208, %v1207, %v1206
        %v1210 = vrot.slane %v1197, 4
        %vm1211 = vcmask 1044484
        %v1212 = vsel %vm1211, %v1210, %v1209
        %v1213 = vrot.slane %v1198, 3
        %vm1214 = vcmask 1045509
        %v1215 = vsel %vm1214, %v1213, %v1212
        %v1216 = vrot.slane %v1199, 2
        %vm1217 = vcmask 1046534
        %v1218 = vsel %vm1217, %v1216, %v1215
        %v1219 = vrot.slane %v1200, 1
        %vm1220 = vcmask 1047559
        %v1221 = vsel %vm1220, %v1219, %v1218
        %v1222 = vpack.c.b16 %v1221, %v1221
        %v1240 = vunpack.c.l.b16 %v1162
        %v1241 = vunpack.c.l.b16 %v1163
        %v1242 = vunpack.c.l.b16 %v1164
        %v1243 = vunpack.c.l.b16 %v1165
        %v1244 = vunpack.c.l.b16 %v1166
        %v1245 = vunpack.c.l.b16 %v1167
        %v1246 = vunpack.c.l.b16 %v1168
        %v1247 = vunpack.c.l.b16 %v1169
        %v1248 = vunpack.c.l.b16 %v1170
        %v1249 = vunpack.c.l.b16 %v1171
        %v1250 = vunpack.c.l.b16 %v1172
        %v1251 = vunpack.c.l.b16 %v1173
        %v1252 = vunpack.c.l.b16 %v1174
        %v1253 = vunpack.c.l.b16 %v1175
        %v1254 = vunpack.c.l.b16 %v1176
        %v1255 = vunpack.c.l.b16 %v1177
        %v1256 = vpack.c.b16 %v1241, %v1240
        %v1257 = vpack.c.b16 %v1243, %v1242
        %v1258 = vpack.c.b16 %v1245, %v1244
        %v1259 = vpack.c.b16 %v1247, %v1246
        %v1260 = vpack.c.b16 %v1249, %v1248
        %v1261 = vpack.c.b16 %v1251, %v1250
        %v1262 = vpack.c.b16 %v1253, %v1252
        %v1263 = vpack.c.b16 %v1255, %v1254
        %1272 = vmatprep.subr.bf16.mxu0 0
        %1273 = vmatpush1.bf16.msra.mxu0 %v1256
        %1274 = vmatprep.subr.bf16.mxu0 0
        %1275 = vmatpush1.bf16.msra.mxu0 %v1257
        %1276 = vmatprep.subr.bf16.mxu0 0
        %1277 = vmatpush1.bf16.msra.mxu0 %v1258
        %1278 = vmatprep.subr.bf16.mxu0 0
        %1279 = vmatpush1.bf16.msra.mxu0 %v1259
        %1280 = vmatprep.subr.bf16.mxu0 0
        %1281 = vmatpush1.bf16.msra.mxu0 %v1260
        %1282 = vmatprep.subr.bf16.mxu0 0
        %1283 = vmatpush1.bf16.msra.mxu0 %v1261
        %1284 = vmatprep.subr.bf16.mxu0 0
        %1285 = vmatpush1.bf16.msra.mxu0 %v1262
        %1286 = vmatprep.subr.bf16.mxu0 0
        %1287 = vmatpush1.bf16.msra.mxu0 %v1263
        %1288 = vmatprep.subr.bf16.mxu0 0
        %1289 = vmatpush1.bf16.msra.mxu0 0
        %1290 = vmatprep.subr.bf16.mxu0 0
        %1291 = vmatpush1.bf16.msra.mxu0 0
        %1292 = vmatprep.subr.bf16.mxu0 0
        %1293 = vmatpush1.bf16.msra.mxu0 0
        %1294 = vmatprep.subr.bf16.mxu0 0
        %1295 = vmatpush1.bf16.msra.mxu0 0
        %1296 = vmatprep.subr.bf16.mxu0 0
        %1297 = vmatpush1.bf16.msra.mxu0 0
        %1298 = vmatprep.subr.bf16.mxu0 0
        %1299 = vmatpush1.bf16.msra.mxu0 0
        %1300 = vmatprep.subr.bf16.mxu0 0
        %1301 = vmatpush1.bf16.msra.mxu0 0
        %1302 = vmatprep.subr.bf16.mxu0 0
        %1303 = vmatpush1.bf16.msra.mxu0 0
        %1304 = vmatprep.mubr.bf16.mxu0 0
        %1305 = vmatmul.mubr.bf16.gmra.mrb[0].mxu0 %v1222
        %v1306 = vpop.f32.mrb[0].mxu0
        %v1307 = vadd.f32 %v1183, %v1306
        %v1308 = vpop.f32.mrb[0].mxu0
        %v1309 = vpop.f32.mrb[0].mxu0
        %v1310 = vpop.f32.mrb[0].mxu0
        %1311 = vdwg.mxu0
        %v1312 = vmax.f32 %v1307, 0.0
        %v1313 = vld [vmem:[#allocation12] sm:$0xf]
        %v1314 = vld [vmem:[#allocation12 + $0x4] sm:$0xf]
        %v1315 = vld [vmem:[#allocation12 + $0x8] sm:$0xf]
        %v1316 = vld [vmem:[#allocation12 + $0xc] sm:$0xf]
        %v1317 = vld [vmem:[#allocation12 + $0x10] sm:$0xf]
        %v1318 = vld [vmem:[#allocation12 + $0x14] sm:$0xf]
        %v1319 = vld [vmem:[#allocation12 + $0x18] sm:$0xf]
        %v1320 = vld [vmem:[#allocation12 + $0x1c] sm:$0xf]
        %v1321 = vld [vmem:[#allocation12 + $0x20] sm:$0xf]
        %v1322 = vld [vmem:[#allocation12 + $0x24] sm:$0xf]
        %v1323 = vld [vmem:[#allocation12 + $0x28] sm:$0xf]
        %v1324 = vld [vmem:[#allocation12 + $0x2c] sm:$0xf]
        %v1325 = vld [vmem:[#allocation12 + $0x30] sm:$0xf]
        %v1326 = vld [vmem:[#allocation12 + $0x34] sm:$0xf]
        %v1327 = vld [vmem:[#allocation12 + $0x38] sm:$0xf]
        %v1328 = vld [vmem:[#allocation12 + $0x3c] sm:$0xf]
        %v1329 = vld [vmem:[#allocation14] sm:$0x1]
        %v1331 = vlaneseq
        %v1332 = vshrl.u32 %v1331, 7
        %v1333 = vsub.s32 0, %v1332
        %v1334 = vrot.slane %v1329, %v1333
        %v1352 = vunpack.c.l.b16 %v1313
        %v1353 = vunpack.c.l.b16 %v1314
        %v1354 = vunpack.c.l.b16 %v1315
        %v1355 = vunpack.c.l.b16 %v1316
        %v1356 = vunpack.c.l.b16 %v1317
        %v1357 = vunpack.c.l.b16 %v1318
        %v1358 = vunpack.c.l.b16 %v1319
        %v1359 = vunpack.c.l.b16 %v1320
        %v1360 = vunpack.c.l.b16 %v1321
        %v1361 = vunpack.c.l.b16 %v1322
        %v1362 = vunpack.c.l.b16 %v1323
        %v1363 = vunpack.c.l.b16 %v1324
        %v1364 = vunpack.c.l.b16 %v1325
        %v1365 = vunpack.c.l.b16 %v1326
        %v1366 = vunpack.c.l.b16 %v1327
        %v1367 = vunpack.c.l.b16 %v1328
        %v1368 = vpack.c.b16 %v1353, %v1352
        %v1369 = vpack.c.b16 %v1355, %v1354
        %v1370 = vpack.c.b16 %v1357, %v1356
        %v1371 = vpack.c.b16 %v1359, %v1358
        %v1372 = vpack.c.b16 %v1361, %v1360
        %v1373 = vpack.c.b16 %v1363, %v1362
        %v1374 = vpack.c.b16 %v1365, %v1364
        %v1375 = vpack.c.b16 %v1367, %v1366
        %1384 = vmatprep.subr.bf16.mxu0 0
        %1385 = vmatpush1.bf16.msra.mxu0 %v1368
        %1386 = vmatprep.subr.bf16.mxu0 0
        %1387 = vmatpush1.bf16.msra.mxu0 %v1369
        %1388 = vmatprep.subr.bf16.mxu0 0
        %1389 = vmatpush1.bf16.msra.mxu0 %v1370
        %1390 = vmatprep.subr.bf16.mxu0 0
        %1391 = vmatpush1.bf16.msra.mxu0 %v1371
        %1392 = vmatprep.subr.bf16.mxu0 0
        %1393 = vmatpush1.bf16.msra.mxu0 %v1372
        %1394 = vmatprep.subr.bf16.mxu0 0
        %1395 = vmatpush1.bf16.msra.mxu0 %v1373
        %1396 = vmatprep.subr.bf16.mxu0 0
        %1397 = vmatpush1.bf16.msra.mxu0 %v1374
        %1398 = vmatprep.subr.bf16.mxu0 0
        %1399 = vmatpush1.bf16.msra.mxu0 %v1375
        %1400 = vmatprep.subr.bf16.mxu0 0
        %1401 = vmatpush1.bf16.msra.mxu0 0
        %1402 = vmatprep.subr.bf16.mxu0 0
        %1403 = vmatpush1.bf16.msra.mxu0 0
        %1404 = vmatprep.subr.bf16.mxu0 0
        %1405 = vmatpush1.bf16.msra.mxu0 0
        %1406 = vmatprep.subr.bf16.mxu0 0
        %1407 = vmatpush1.bf16.msra.mxu0 0
        %1408 = vmatprep.subr.bf16.mxu0 0
        %1409 = vmatpush1.bf16.msra.mxu0 0
        %1410 = vmatprep.subr.bf16.mxu0 0
        %1411 = vmatpush1.bf16.msra.mxu0 0
        %1412 = vmatprep.subr.bf16.mxu0 0
        %1413 = vmatpush1.bf16.msra.mxu0 0
        %1414 = vmatprep.subr.bf16.mxu0 0
        %1415 = vmatpush1.bf16.msra.mxu0 0
        %1416 = vmatprep.mubr.bf16.mxu0 0
        %1417 = vmatmul.mubr.bf16.gmra.mrb[0].mxu0 %v1222
        %v1418 = vpop.f32.mrb[0].mxu0
        %v1419 = vadd.f32 %v1334, %v1418
        %v1420 = vpop.f32.mrb[0].mxu0
        %v1421 = vpop.f32.mrb[0].mxu0
        %v1422 = vpop.f32.mrb[0].mxu0
        %1423 = vdwg.mxu0
        %v1424 = vxor.u32 %v1419, 2147483648
        %v1425 = vmul.f32 %v1424, 1.442695
        %v1426 = vpow.pop %v1425
        %v1427 = vadd.f32 %v1426, 1.0
        %v1428 = vrcp.pop %v1427
        %v1429 = vmul.f32 1.0, %v1428
        %v1430 = vmul.f32 %v1429, %v1312
        %v1431 = vsub.f32 1.0, %v1429
        %v1440 = vrot.slane %v1147, 7
        %v1441 = vsel %vm1202, %v1440, %v1146
        %v1442 = vrot.slane %v1148, 6
        %v1443 = vsel %vm1205, %v1442, %v1441
        %v1444 = vrot.slane %v1149, 5
        %v1445 = vsel %vm1208, %v1444, %v1443
        %v1446 = vrot.slane %v1150, 4
        %v1447 = vsel %vm1211, %v1446, %v1445
        %v1448 = vrot.slane %v1151, 3
        %v1449 = vsel %vm1214, %v1448, %v1447
        %v1450 = vrot.slane %v1152, 2
        %v1451 = vsel %vm1217, %v1450, %v1449
        %v1452 = vrot.slane %v1153, 1
        %v1453 = vsel %vm1220, %v1452, %v1451
        %v1455 = vmul.f32 %v1431, %v1453
        %v1456 = vadd.f32 %v1430, %v1455
        %v1457 = vpack.c.bf16 %v1456, %v1456
        %v1458 = vld [vmem:[#allocation15] sm:$0xf]
        %v1459 = vld [vmem:[#allocation15 + $0x4] sm:$0xf]
        %v1460 = vld [vmem:[#allocation15 + $0x8] sm:$0xf]
        %v1461 = vld [vmem:[#allocation15 + $0xc] sm:$0xf]
        %v1462 = vld [vmem:[#allocation15 + $0x10] sm:$0xf]
        %v1463 = vld [vmem:[#allocation15 + $0x14] sm:$0xf]
        %v1464 = vld [vmem:[#allocation15 + $0x18] sm:$0xf]
        %v1465 = vld [vmem:[#allocation15 + $0x1c] sm:$0xf]
        %v1466 = vld [vmem:[#allocation15 + $0x20] sm:$0xf]
        %v1467 = vld [vmem:[#allocation15 + $0x24] sm:$0xf]
        %v1468 = vld [vmem:[#allocation15 + $0x28] sm:$0xf]
        %v1469 = vld [vmem:[#allocation15 + $0x2c] sm:$0xf]
        %v1470 = vld [vmem:[#allocation15 + $0x30] sm:$0xf]
        %v1471 = vld [vmem:[#allocation15 + $0x34] sm:$0xf]
        %v1472 = vld [vmem:[#allocation15 + $0x38] sm:$0xf]
        %v1473 = vld [vmem:[#allocation15 + $0x3c] sm:$0xf]
        %v1474 = vld [vmem:[#allocation17] sm:$0x1]
        %v1476 = vlaneseq
        %v1477 = vshrl.u32 %v1476, 7
        %v1478 = vsub.s32 0, %v1477
        %v1479 = vrot.slane %v1474, %v1478
        %v1497 = vunpack.c.l.b16 %v1458
        %v1498 = vunpack.c.l.b16 %v1459
        %v1499 = vunpack.c.l.b16 %v1460
        %v1500 = vunpack.c.l.b16 %v1461
        %v1501 = vunpack.c.l.b16 %v1462
        %v1502 = vunpack.c.l.b16 %v1463
        %v1503 = vunpack.c.l.b16 %v1464
        %v1504 = vunpack.c.l.b16 %v1465
        %v1505 = vunpack.c.l.b16 %v1466
        %v1506 = vunpack.c.l.b16 %v1467
        %v1507 = vunpack.c.l.b16 %v1468
        %v1508 = vunpack.c.l.b16 %v1469
        %v1509 = vunpack.c.l.b16 %v1470
        %v1510 = vunpack.c.l.b16 %v1471
        %v1511 = vunpack.c.l.b16 %v1472
        %v1512 = vunpack.c.l.b16 %v1473
        %v1513 = vpack.c.b16 %v1498, %v1497
        %v1514 = vpack.c.b16 %v1500, %v1499
        %v1515 = vpack.c.b16 %v1502, %v1501
        %v1516 = vpack.c.b16 %v1504, %v1503
        %v1517 = vpack.c.b16 %v1506, %v1505
        %v1518 = vpack.c.b16 %v1508, %v1507
        %v1519 = vpack.c.b16 %v1510, %v1509
        %v1520 = vpack.c.b16 %v1512, %v1511
        %1529 = vmatprep.subr.bf16.mxu0 0
        %1530 = vmatpush1.bf16.msra.mxu0 %v1513
        %1531 = vmatprep.subr.bf16.mxu0 0
        %1532 = vmatpush1.bf16.msra.mxu0 %v1514
        %1533 = vmatprep.subr.bf16.mxu0 0
        %1534 = vmatpush1.bf16.msra.mxu0 %v1515
        %1535 = vmatprep.subr.bf16.mxu0 0
        %1536 = vmatpush1.bf16.msra.mxu0 %v1516
        %1537 = vmatprep.subr.bf16.mxu0 0
        %1538 = vmatpush1.bf16.msra.mxu0 %v1517
        %1539 = vmatprep.subr.bf16.mxu0 0
        %1540 = vmatpush1.bf16.msra.mxu0 %v1518
        %1541 = vmatprep.subr.bf16.mxu0 0
        %1542 = vmatpush1.bf16.msra.mxu0 %v1519
        %1543 = vmatprep.subr.bf16.mxu0 0
        %1544 = vmatpush1.bf16.msra.mxu0 %v1520
        %1545 = vmatprep.subr.bf16.mxu0 0
        %1546 = vmatpush1.bf16.msra.mxu0 0
        %1547 = vmatprep.subr.bf16.mxu0 0
        %1548 = vmatpush1.bf16.msra.mxu0 0
        %1549 = vmatprep.subr.bf16.mxu0 0
        %1550 = vmatpush1.bf16.msra.mxu0 0
        %1551 = vmatprep.subr.bf16.mxu0 0
        %1552 = vmatpush1.bf16.msra.mxu0 0
        %1553 = vmatprep.subr.bf16.mxu0 0
        %1554 = vmatpush1.bf16.msra.mxu0 0
        %1555 = vmatprep.subr.bf16.mxu0 0
        %1556 = vmatpush1.bf16.msra.mxu0 0
        %1557 = vmatprep.subr.bf16.mxu0 0
        %1558 = vmatpush1.bf16.msra.mxu0 0
        %1559 = vmatprep.subr.bf16.mxu0 0
        %1560 = vmatpush1.bf16.msra.mxu0 0
        %1561 = vmatprep.mubr.bf16.mxu0 0
        %1562 = vmatmul.mubr.bf16.gmra.mrb[0].mxu0 %v1457
        %v1563 = vpop.f32.mrb[0].mxu0
        %v1564 = vadd.f32 %v1479, %v1563
        %v1565 = vpop.f32.mrb[0].mxu0
        %v1566 = vpop.f32.mrb[0].mxu0
        %v1567 = vpop.f32.mrb[0].mxu0
        %1568 = vdwg.mxu0
        %1569 = vmax.xlane.f32.xlu0 %v1564
        %v1570 = vpop.xlane.xlu0 %1569
        %v1571 = vsub.f32 %v1564, %v1570
        %v1572 = vmul.f32 %v1571, 1.442695
        %v1573 = vpow.pop %v1572
        %1574 = vadd.xlane.f32.xlu0 %v1573
        %v1575 = vpop.xlane.xlu0 %1574
        %v1576 = vrcp.pop %v1575
        %v1577 = vmul.f32 %v1573, %v1576
        %1578 = vst [vmem:[%s517] sm:$0xff] %v1456
        %1579 = vst [vmem:[%s524] sm:$0xff] %v1564
        %1580 = vst [vmem:[%s531] sm:$0xff] %v1577
        %s1581 = sand.u32 %s238, 1
        %s1582 = scalar_lea.sflag [#allocation5], %s1581
        %s1583 = sand.u32 %s238, 1
        %s1584 = smul.addr %s1583, 8
        %s1585 = scalar_lea.vmem [#allocation18], %s1584
        %s1586 = sand.u32 %s36, 1
        %s1587 = scalar_lea.sflag [#allocation20], %s1586
        %s1588 = sand.u32 %s264, 1
        %s1589 = smul.addr %s1588, 8
        %s1590 = scalar_lea.vmem [#allocation19], %s1589
        %s1591 = sand.u32 %s36, 1
        %s1592 = scalar_lea.sflag [#allocation20], %s1591
        %s1593 = sand.u32 %s290, 1
        %s1594 = smul.addr %s1593, 8
        %s1595 = scalar_lea.vmem [#allocation21], %s1594
        // Predicated region
        $region93: #{tpu_custom_call.1} parent=55 // pred_check
          %p1596 = pneg %p248
        $region94: #{tpu_custom_call.1} parent=55 // pred_check_branch
          %1598 = sbr.rel (%p1596) target = $region96
        $region95: #{tpu_custom_call.1} parent=55 // pred_region
          %s1600 = ssub.s32 128, 128
          %1601 = vsyncadd %s1582, %s1600
          %s1602 = smul.addr %s36, 128
          %s1603 = scalar_lea.hbm %s9, %s1602
          %s1605 = sshll.u32 %s1585, 4
          %s1606 = int_to_ptr.vmem [resolvable:$true] %s1605
          %1608 = dma.vmem_to_hbm [thread:$0]  %s1606, 128, %s1603, %s1582
        $region96: #{tpu_custom_call.1} parent=55 // pred_fallthru
          _
        // Predicated region
        $region97: #{tpu_custom_call.1} parent=55 // pred_check
          %p1609 = pneg %p274
        $region98: #{tpu_custom_call.1} parent=55 // pred_check_branch
          %1611 = sbr.rel (%p1609) target = $region100
        $region99: #{tpu_custom_call.1} parent=55 // pred_region
          %s1613 = ssub.s32 128, 128
          %1614 = vsyncadd %s1587, %s1613
          %s1615 = smul.addr %s36, 128
          %s1616 = scalar_lea.hbm %s10, %s1615
          %s1618 = sshll.u32 %s1590, 4
          %s1619 = int_to_ptr.vmem [resolvable:$true] %s1618
          %1621 = dma.vmem_to_hbm [thread:$0]  %s1619, 128, %s1616, %s1587
        $region100: #{tpu_custom_call.1} parent=55 // pred_fallthru
          _
        // Predicated region
        $region101: #{tpu_custom_call.1} parent=55 // pred_check
          %p1622 = pneg %p300
        $region102: #{tpu_custom_call.1} parent=55 // pred_check_branch
          %1624 = sbr.rel (%p1622) target = $region104
        $region103: #{tpu_custom_call.1} parent=55 // pred_region
          %s1626 = ssub.s32 128, 128
          %1627 = vsyncadd %s1592, %s1626
          %s1628 = smul.addr %s36, 128
          %s1629 = scalar_lea.hbm %s11, %s1628
          %s1631 = sshll.u32 %s1595, 4
          %s1632 = int_to_ptr.vmem [resolvable:$true] %s1631
          %1634 = dma.vmem_to_hbm [thread:$0]  %s1632, 128, %s1629, %s1592
        $region104: #{tpu_custom_call.1} parent=55 // pred_fallthru
          _
      $region56: #{tpu_custom_call.1} parent=5 // pred_fallthru
        _
      %p1635 = scmp.le.s32.totalorder 2, %s31
      // Predicated region
      $region105: #{tpu_custom_call.1} parent=5 // pred_check
        %p1636 = pneg %p1635
      $region106: #{tpu_custom_call.1} parent=5 // pred_check_branch
        %1638 = sbr.rel (%p1636) target = $region108
      $region107: #{tpu_custom_call.1} parent=5 // pred_region
        %s1639 = ssub.s32 %s31, 2
        // Predicated region
        $region109: #{tpu_custom_call.1} parent=107 // pred_check
          %p1640 = pneg %p254
        $region110: #{tpu_custom_call.1} parent=107 // pred_check_branch
          %1642 = sbr.rel (%p1640) target = $region112
        $region111: #{tpu_custom_call.1} parent=107 // pred_region
          %s1643 = sand.u32 %s239, 1
          %s1644 = scalar_lea.sflag [#allocation5], %s1643
          %s1645 = sand.u32 %s239, 1
          %s1646 = smul.addr %s1645, 8
          %s1647 = scalar_lea.vmem [#allocation18], %s1646
          %1648 = dma.done %s1644, 128
        $region112: #{tpu_custom_call.1} parent=107 // pred_fallthru
          _
        // Predicated region
        $region113: #{tpu_custom_call.1} parent=107 // pred_check
          %p1649 = pneg %p280
        $region114: #{tpu_custom_call.1} parent=107 // pred_check_branch
          %1651 = sbr.rel (%p1649) target = $region116
        $region115: #{tpu_custom_call.1} parent=107 // pred_region
          %s1652 = sand.u32 %s37, 1
          %s1653 = scalar_lea.sflag [#allocation20], %s1652
          %s1654 = sand.u32 %s265, 1
          %s1655 = smul.addr %s1654, 8
          %s1656 = scalar_lea.vmem [#allocation19], %s1655
          %1657 = dma.done %s1653, 128
        $region116: #{tpu_custom_call.1} parent=107 // pred_fallthru
          _
        // Predicated region
        $region117: #{tpu_custom_call.1} parent=107 // pred_check
          %p1658 = pneg %p306
        $region118: #{tpu_custom_call.1} parent=107 // pred_check_branch
          %1660 = sbr.rel (%p1658) target = $region120
        $region119: #{tpu_custom_call.1} parent=107 // pred_region
          %s1661 = sand.u32 %s37, 1
          %s1662 = scalar_lea.sflag [#allocation20], %s1661
          %s1663 = sand.u32 %s291, 1
          %s1664 = smul.addr %s1663, 8
          %s1665 = scalar_lea.vmem [#allocation21], %s1664
          %1666 = dma.done %s1662, 128
        $region120: #{tpu_custom_call.1} parent=107 // pred_fallthru
          _
      $region108: #{tpu_custom_call.1} parent=5 // pred_fallthru
        _
    $region6: #{tpu_custom_call.1} parent=1 // loop_footer
      %s35 = sadd.s32 1, %s31
    $region7: #{tpu_custom_call.1} parent=1 // loop_footer_branch
      %30 = sbr.rel target = $region3
    $region8: #{tpu_custom_call.1} parent=1 // loop_exit
      _
    %1667 = vsyncpa [#allocation4], 1
    %s1668 = scalar_lea.sflag [#allocation4], 1
    %1669 = vsyncpa %s1668, 1
    %1670 = vsyncpa [#allocation7], 1
    %1671 = vsyncpa [#allocation10], 1
    %1672 = vsyncpa [#allocation13], 1
    %1673 = vsyncpa [#allocation16], 1
    %1674 = vsyncpa [#allocation5], 1
    %s1675 = scalar_lea.sflag [#allocation5], 1
    %1676 = vsyncpa %s1675, 1
    %1677 = vsyncpa [#allocation20], 1
    %s1678 = scalar_lea.sflag [#allocation20], 1
    %1679 = vsyncpa %s1678, 1

</llo_original>
